<compile_context>
chip_gen: v6e
topology: v6e:2x2x1
jax: 0.10.0
libtpu: 0.0.40
codegen_flags: <defaults>
</compile_context>

<pallas_src>
import functools

import jax
import jax.numpy as jnp
from jax.experimental import pallas as pl
from jax.experimental.pallas import tpu as pltpu


def block_kernel(seq_ref,                      # scalar-prefetch (SMEM): (B,) int32
                 x_ref,                        # (B_blk, T, E)
                 ln1w_ref, ln1b_ref,           # (1, E), (1, E)   f32
                 wqkv_ref,                     # (E, 3E)          bf16 (q | k | v)
                 wproj_ref, bproj_ref,         # (E, E) bf16, (1, E) f32
                 ln2w_ref, ln2b_ref,           # (1, E), (1, E)   f32
                 w1_ref, b1_ref,               # (E, 4E) bf16, (1, 4E) f32
                 w2_ref, b2_ref,               # (4E, E) bf16, (1, E)  f32
                 out_ref,                      # (B_blk, T, E)
                 *, num_heads):
    g = pl.program_id(0)
    Bblk, T, E = x_ref.shape
    hs = E // num_heads
    R = Bblk * T
    eps = 1e-5

    # Fold batch into rows: (B_blk, T, E) -> (B_blk*T, E).  Leading-dim merge,
    # no relayout (E stays the lane dim, T is a multiple of 8 sublanes).
    x = x_ref[...].astype(jnp.float32).reshape(R, E)

    def layernorm(v, w, bias):
        mu = jnp.mean(v, axis=-1, keepdims=True)
        var = jnp.mean((v - mu) ** 2, axis=-1, keepdims=True)
        return (v - mu) * jax.lax.rsqrt(var + eps) * w + bias

    normed = layernorm(x, ln1w_ref[0], ln1b_ref[0])        # (R, E) f32

    # ---- fused QKV projection: one MXU pass, M = B_blk*T rows ----
    qkv = jnp.dot(normed.astype(jnp.bfloat16), wqkv_ref[...],
                  preferred_element_type=jnp.float32)      # (R, 3E) f32

    scale = hs ** -0.5                                     # folded into q
    t_idx = jax.lax.broadcasted_iota(jnp.int32, (T, 1), 0)

    # ---- attention, unrolled over the (static, small) batch block ----
    # Each batch element uses leading-batch 3-D einsums over the head axis
    # (proven to lower on Mosaic); attention is ~2% of the block's FLOPs, the
    # dense matmuls above/below carry the batch-folded M.
    sa_blocks = []
    for bi in range(Bblk):
        seq_len = seq_ref[g * Bblk + bi]
        pad_mask = t_idx >= seq_len                        # True at padding rows
        lo = bi * T                                        # static, 8-aligned

        # mask q and k (not v), exactly like the torch reference
        qb = jnp.where(pad_mask, 0.0, qkv[lo:lo + T, :E]) * scale
        kb = jnp.where(pad_mask, 0.0, qkv[lo:lo + T, E:2 * E])
        vb = qkv[lo:lo + T, 2 * E:]

        # bf16 before the head transposes (halves relayout bytes)
        qh = jnp.transpose(qb.astype(jnp.bfloat16).reshape(T, num_heads, hs), (1, 0, 2))
        kh = jnp.transpose(kb.astype(jnp.bfloat16).reshape(T, num_heads, hs), (1, 0, 2))
        vh = jnp.transpose(vb.astype(jnp.bfloat16).reshape(T, num_heads, hs), (1, 0, 2))

        s = jnp.einsum("hqd,hkd->hqk", qh, kh,
                       preferred_element_type=jnp.float32)  # (nh, T, T) f32
        m = jnp.max(s, axis=-1, keepdims=True)
        e = jnp.exp(s - m)
        denom = jnp.sum(e, axis=-1, keepdims=True)
        p = (e * pl.reciprocal(denom, approx=True)).astype(jnp.bfloat16)
        # torch's `where(isnan(w), 0, w)` can never trigger here (finite inputs,
        # zero-masked q/k -> finite uniform softmax rows), so it is omitted.

        oh = jnp.einsum("hqk,hkd->hqd", p, vh,
                        preferred_element_type=jnp.float32)  # (nh, T, hs) f32
        # bf16 before the output relayout; it feeds a bf16 MXU dot next anyway
        sa_blocks.append(
            jnp.transpose(oh.astype(jnp.bfloat16), (1, 0, 2)).reshape(T, E))

    sa_cat = (jnp.concatenate(sa_blocks, axis=0)
              if Bblk > 1 else sa_blocks[0])               # (R, E) bf16

    # ---- output projection (batch-folded M) ----
    sa_out = (jnp.dot(sa_cat, wproj_ref[...],
                      preferred_element_type=jnp.float32) + bproj_ref[0])
    # nn.Dropout -> identity (inference)

    after_attn = normed + sa_out                           # residual on `normed`

    normed2 = layernorm(after_attn, ln2w_ref[0], ln2b_ref[0])

    # ---- feed-forward (bf16 MXU operands, f32 accumulate / bias / relu) ----
    h1 = (jnp.dot(normed2.astype(jnp.bfloat16), w1_ref[...],
                  preferred_element_type=jnp.float32) + b1_ref[0])
    h1 = jnp.maximum(h1, 0.0).astype(jnp.bfloat16)         # keep the (R,4E) act bf16
    ff = (jnp.dot(h1, w2_ref[...],
                  preferred_element_type=jnp.float32) + b2_ref[0])
    # nn.Dropout -> identity (inference)

    out_ref[...] = (normed2 + ff).astype(out_ref.dtype).reshape(Bblk, T, E)


def prepare_block_params(params):
    """One-time parameter prep (hoisted out of the per-call path).

    Fuses Wq|Wk|Wv into one (E, 3E) matrix and casts all matmul weights to
    bfloat16 once, so every kernel invocation reuses the prepared buffers
    instead of re-touching the f32 weights in HBM.
    """
    return {
        "ln1_w": params["ln1_w"], "ln1_b": params["ln1_b"],
        "wqkv": jnp.concatenate([params["wq"], params["wk"], params["wv"]],
                                axis=1).astype(jnp.bfloat16),
        "wproj": params["wproj"].astype(jnp.bfloat16),
        "bproj": params["bproj"],
        "ln2_w": params["ln2_w"], "ln2_b": params["ln2_b"],
        "w1": params["w1"].astype(jnp.bfloat16), "b1": params["b1"],
        "w2": params["w2"].astype(jnp.bfloat16), "b2": params["b2"],
    }


def transformer_block(x, seq_lengths, prepared, num_heads, batch_block=None):
    """Returns (after_ffwd, seq_lengths), matching Block.forward (inference)."""
    B, T, E = x.shape
    H = 4 * E
    assert E % num_heads == 0
    if batch_block is None:
        batch_block = B            # fold the whole batch into one MXU M dimension
    assert B % batch_block == 0
    grid = (B // batch_block,)

    # Weight blocks have constant index maps, so they are DMA'd once; default
    # double-buffering only costs a few hundred KiB at these sizes.  For large
    # models use pipeline_mode=pl.Buffered(1) / memory_space=pl.ANY for weights.
    full = lambda shape: pl.BlockSpec(shape, lambda g, seq: tuple(0 for _ in shape))
    in_specs = [
        pl.BlockSpec((batch_block, T, E), lambda g, seq: (g, 0, 0)),   # x
        full((1, E)), full((1, E)),                                     # ln1 w, b
        full((E, 3 * E)),                                               # fused Wqkv
        full((E, E)), full((1, E)),                                     # Wproj, bproj
        full((1, E)), full((1, E)),                                     # ln2 w, b
        full((E, H)), full((1, H)),                                     # W1, b1
        full((H, E)), full((1, E)),                                     # W2, b2
    ]

    grid_spec = pltpu.PrefetchScalarGridSpec(
        num_scalar_prefetch=1,
        grid=grid,
        in_specs=in_specs,
        out_specs=pl.BlockSpec((batch_block, T, E), lambda g, seq: (g, 0, 0)),
    )

    kern = functools.partial(block_kernel, num_heads=num_heads)
    out = pl.pallas_call(
        kern,
        out_shape=jax.ShapeDtypeStruct((B, T, E), x.dtype),
        grid_spec=grid_spec,
        compiler_params=pltpu.CompilerParams(
            dimension_semantics=("parallel",)),
    )(seq_lengths,
      x,
      prepared["ln1_w"], prepared["ln1_b"],
      prepared["wqkv"],
      prepared["wproj"], prepared["bproj"],
      prepared["ln2_w"], prepared["ln2_b"],
      prepared["w1"], prepared["b1"],
      prepared["w2"], prepared["b2"])
    return out, seq_lengths


def reference_block(x, seq_lengths, p, num_heads):
    """Pure-JAX (f32) mirror of the PyTorch Block.forward (inference mode)."""
    B, T, E = x.shape
    hs = E // num_heads
    eps = 1e-5

    def ln(v, w, b):
        mu = jnp.mean(v, axis=-1, keepdims=True)
        var = jnp.mean((v - mu) ** 2, axis=-1, keepdims=True)
        return (v - mu) / jnp.sqrt(var + eps) * w[0] + b[0]

    normed = ln(x, p["ln1_w"], p["ln1_b"])
    q = normed @ p["wq"]
    k = normed @ p["wk"]
    v = normed @ p["wv"]
    idx = jnp.arange(T)[None, :, None]
    mask = idx >= seq_lengths[:, None, None]
    q = jnp.where(mask, 0.0, q)
    k = jnp.where(mask, 0.0, k)
    outs = []
    for h in range(num_heads):
        sl = slice(h * hs, (h + 1) * hs)
        s = jnp.einsum("btd,bsd->bts", q[..., sl], k[..., sl]) / (hs ** 0.5)
        w = jax.nn.softmax(s, axis=-1)
        w = jnp.where(jnp.isnan(w), 0.0, w)
        outs.append(jnp.einsum("bts,bsd->btd", w, v[..., sl]))
    sa = jnp.concatenate(outs, axis=-1) @ p["wproj"] + p["bproj"][0]
    after_attn = normed + sa
    normed2 = ln(after_attn, p["ln2_w"], p["ln2_b"])
    h1 = jnp.maximum(normed2 @ p["w1"] + p["b1"][0], 0.0)
    ff = h1 @ p["w2"] + p["b2"][0]
    return normed2 + ff, seq_lengths


if __name__ == "__main__":
    # Lane-dense demo shapes: E multiple of 128, T multiple of 8.
    B, T, E, num_heads = 2, 16, 128, 4
    H = 4 * E

    key = jax.random.PRNGKey(0)
    keys = jax.random.split(key, 16)

    def init(k, shape, scale=0.05):
        return (scale * jax.random.normal(k, shape)).astype(jnp.float32)

    params = {
        "ln1_w": jnp.ones((1, E), jnp.float32),
        "ln1_b": jnp.zeros((1, E), jnp.float32),
        "wq": init(keys[0], (E, E)),
        "wk": init(keys[1], (E, E)),
        "wv": init(keys[2], (E, E)),
        "wproj": init(keys[3], (E, E)),
        "bproj": init(keys[4], (1, E)),
        "ln2_w": jnp.ones((1, E), jnp.float32),
        "ln2_b": jnp.zeros((1, E), jnp.float32),
        "w1": init(keys[5], (E, H)),
        "b1": init(keys[6], (1, H)),
        "w2": init(keys[7], (H, E)),
        "b2": init(keys[8], (1, E)),
    }

    x = jax.random.normal(keys[9], (B, T, E), dtype=jnp.float32)
    seq_lengths = jnp.array([11, 16], dtype=jnp.int32)   # includes a padded batch element

    prepared = prepare_block_params(params)              # one-time weight prep
    out, lens = transformer_block(x, seq_lengths, prepared, num_heads)
    out = jax.block_until_ready(out)

    ref, _ = reference_block(x, seq_lengths, params, num_heads)
    assert out.shape == (B, T, E)
    # bf16 MXU operands + approx reciprocal => compare to the f32 reference with
    # a tolerance that comfortably covers bf16 rounding at these scales.
    assert jnp.allclose(out, ref, atol=3e-2, rtol=3e-2), "mismatch vs pure-JAX reference"

    print("KERNEL_OK")
</pallas_src>

<mosaic_0001>
module attributes {stable_mosaic.version = 11 : i64} {
  func.func @block_kernel(%arg0: i32, %arg1: memref<2xi32, #tpu.memory_space<smem>>, %arg2: memref<2x16x128xf32, #tpu.memory_space<vmem>>, %arg3: memref<1x128xf32, #tpu.memory_space<vmem>>, %arg4: memref<1x128xf32, #tpu.memory_space<vmem>>, %arg5: memref<128x384xbf16, #tpu.memory_space<vmem>>, %arg6: memref<128x128xbf16, #tpu.memory_space<vmem>>, %arg7: memref<1x128xf32, #tpu.memory_space<vmem>>, %arg8: memref<1x128xf32, #tpu.memory_space<vmem>>, %arg9: memref<1x128xf32, #tpu.memory_space<vmem>>, %arg10: memref<128x512xbf16, #tpu.memory_space<vmem>>, %arg11: memref<1x512xf32, #tpu.memory_space<vmem>>, %arg12: memref<512x128xbf16, #tpu.memory_space<vmem>>, %arg13: memref<1x128xf32, #tpu.memory_space<vmem>>, %arg14: memref<2x16x128xf32, #tpu.memory_space<vmem>>) attributes {dimension_semantics = [#tpu.dimension_semantics<parallel>], iteration_bounds = array<i64: 1>, scalar_prefetch = 1 : i64, scratch_operands = 0 : i64, tpu.core_type = #tpu.core_type<tc>, window_params = [{transform_indices = @transform_0, window_bounds = array<i64: 2, 16, 128>}, {pipeline_mode = #tpu.pipeline_mode<synchronous>, transform_indices = @transform_1, window_bounds = array<i64: 1, 128>}, {pipeline_mode = #tpu.pipeline_mode<synchronous>, transform_indices = @transform_2, window_bounds = array<i64: 1, 128>}, {pipeline_mode = #tpu.pipeline_mode<synchronous>, transform_indices = @transform_3, window_bounds = array<i64: 128, 384>}, {pipeline_mode = #tpu.pipeline_mode<synchronous>, transform_indices = @transform_4, window_bounds = array<i64: 128, 128>}, {pipeline_mode = #tpu.pipeline_mode<synchronous>, transform_indices = @transform_5, window_bounds = array<i64: 1, 128>}, {pipeline_mode = #tpu.pipeline_mode<synchronous>, transform_indices = @transform_6, window_bounds = array<i64: 1, 128>}, {pipeline_mode = #tpu.pipeline_mode<synchronous>, transform_indices = @transform_7, window_bounds = array<i64: 1, 128>}, {pipeline_mode = #tpu.pipeline_mode<synchronous>, transform_indices = @transform_8, window_bounds = array<i64: 128, 512>}, {pipeline_mode = #tpu.pipeline_mode<synchronous>, transform_indices = @transform_9, window_bounds = array<i64: 1, 512>}, {pipeline_mode = #tpu.pipeline_mode<synchronous>, transform_indices = @transform_10, window_bounds = array<i64: 512, 128>}, {pipeline_mode = #tpu.pipeline_mode<synchronous>, transform_indices = @transform_11, window_bounds = array<i64: 1, 128>}, {transform_indices = @transform_12, window_bounds = array<i64: 2, 16, 128>}]} {
    %c0 = arith.constant 0 : index
    %c0_0 = arith.constant 0 : index
    %c0_1 = arith.constant 0 : index
    %0 = vector.load %arg2[%c0, %c0_0, %c0_1] : memref<2x16x128xf32, #tpu.memory_space<vmem>>, vector<2x16x128xf32>
    %1 = vector.shape_cast %0 : vector<2x16x128xf32> to vector<32x128xf32>
    %c0_2 = arith.constant 0 : index
    %c0_3 = arith.constant 0 : index
    %2 = vector.load %arg3[%c0_2, %c0_3] : memref<1x128xf32, #tpu.memory_space<vmem>>, vector<1x128xf32>
    %3 = vector.shape_cast %2 : vector<1x128xf32> to vector<128xf32>
    %c0_4 = arith.constant 0 : index
    %c0_5 = arith.constant 0 : index
    %4 = vector.load %arg4[%c0_4, %c0_5] : memref<1x128xf32, #tpu.memory_space<vmem>>, vector<1x128xf32>
    %5 = vector.shape_cast %4 : vector<1x128xf32> to vector<128xf32>
    %cst = arith.constant dense<0.000000e+00> : vector<32xf32>
    %6 = vector.multi_reduction <add>, %1, %cst [1] : vector<32x128xf32> to vector<32xf32>
    %7 = vector.shape_cast %6 : vector<32xf32> to vector<32x1xf32>
    %cst_6 = arith.constant 1.280000e+02 : f32
    %8 = vector.broadcast %cst_6 : f32 to vector<32x1xf32>
    %9 = arith.divf %7, %8 : vector<32x1xf32>
    %10 = vector.broadcast %9 : vector<32x1xf32> to vector<32x128xf32>
    %11 = arith.subf %1, %10 : vector<32x128xf32>
    %12 = arith.mulf %11, %11 : vector<32x128xf32>
    %cst_7 = arith.constant dense<0.000000e+00> : vector<32xf32>
    %13 = vector.multi_reduction <add>, %12, %cst_7 [1] : vector<32x128xf32> to vector<32xf32>
    %14 = vector.shape_cast %13 : vector<32xf32> to vector<32x1xf32>
    %cst_8 = arith.constant 1.280000e+02 : f32
    %15 = vector.broadcast %cst_8 : f32 to vector<32x1xf32>
    %16 = arith.divf %14, %15 : vector<32x1xf32>
    %17 = vector.broadcast %9 : vector<32x1xf32> to vector<32x128xf32>
    %18 = arith.subf %1, %17 : vector<32x128xf32>
    %cst_9 = arith.constant 9.99999974E-6 : f32
    %19 = vector.broadcast %cst_9 : f32 to vector<32x1xf32>
    %20 = arith.addf %16, %19 : vector<32x1xf32>
    %21 = math.rsqrt %20 : vector<32x1xf32>
    %22 = vector.broadcast %21 : vector<32x1xf32> to vector<32x128xf32>
    %23 = arith.mulf %18, %22 : vector<32x128xf32>
    %24 = vector.shape_cast %3 : vector<128xf32> to vector<1x128xf32>
    %25 = vector.broadcast %24 : vector<1x128xf32> to vector<32x128xf32>
    %26 = arith.mulf %23, %25 : vector<32x128xf32>
    %27 = vector.shape_cast %5 : vector<128xf32> to vector<1x128xf32>
    %28 = vector.broadcast %27 : vector<1x128xf32> to vector<32x128xf32>
    %29 = arith.addf %26, %28 : vector<32x128xf32>
    %30 = arith.truncf %29 : vector<32x128xf32> to vector<32x128xbf16>
    %c0_10 = arith.constant 0 : index
    %c0_11 = arith.constant 0 : index
    %31 = vector.load %arg5[%c0_10, %c0_11] : memref<128x384xbf16, #tpu.memory_space<vmem>>, vector<128x384xbf16>
    %cst_12 = arith.constant dense<0.000000e+00> : vector<32x384xf32>
    %32 = tpu.matmul %30, %31, %cst_12 {dimension_numbers = #tpu.dot_dimension_numbers<[1], [0], [0], [1], [0, 0, 1, 1], [], []>} : vector<32x128xbf16>, vector<128x384xbf16>, vector<32x384xf32> -> vector<32x384xf32>
    %33 = tpu.iota {dimensions = array<i32: 0>} : vector<16x1xi32>
    %c2_i32 = arith.constant 2 : i32
    %34 = arith.muli %arg0, %c2_i32 : i32
    %c0_i32 = arith.constant 0 : i32
    %35 = arith.addi %34, %c0_i32 : i32
    %36 = arith.index_cast %35 : i32 to index
    %37 = memref.load %arg1[%36] : memref<2xi32, #tpu.memory_space<smem>>
    %38 = vector.broadcast %37 : i32 to vector<16x1xi32>
    %39 = arith.cmpi sge, %33, %38 : vector<16x1xi32>
    %40 = vector.extract_strided_slice %32 {offsets = [0, 0], sizes = [16, 128], strides = [1, 1]} : vector<32x384xf32> to vector<16x128xf32>
    %cst_13 = arith.constant 0.000000e+00 : f32
    %41 = vector.shape_cast %39 : vector<16x1xi1> to vector<16x1xi1>
    %42 = vector.broadcast %41 : vector<16x1xi1> to vector<16x128xi1>
    %43 = vector.broadcast %cst_13 : f32 to vector<16x128xf32>
    %44 = arith.select %42, %43, %40 : vector<16x128xi1>, vector<16x128xf32>
    %cst_14 = arith.constant 0.176776692 : f32
    %45 = vector.broadcast %cst_14 : f32 to vector<16x128xf32>
    %46 = arith.mulf %44, %45 : vector<16x128xf32>
    %47 = vector.extract_strided_slice %32 {offsets = [0, 128], sizes = [16, 128], strides = [1, 1]} : vector<32x384xf32> to vector<16x128xf32>
    %cst_15 = arith.constant 0.000000e+00 : f32
    %48 = vector.shape_cast %39 : vector<16x1xi1> to vector<16x1xi1>
    %49 = vector.broadcast %48 : vector<16x1xi1> to vector<16x128xi1>
    %50 = vector.broadcast %cst_15 : f32 to vector<16x128xf32>
    %51 = arith.select %49, %50, %47 : vector<16x128xi1>, vector<16x128xf32>
    %52 = vector.extract_strided_slice %32 {offsets = [0, 256], sizes = [16, 128], strides = [1, 1]} : vector<32x384xf32> to vector<16x128xf32>
    %53 = arith.truncf %46 : vector<16x128xf32> to vector<16x128xbf16>
    %54 = vector.shape_cast %53 : vector<16x128xbf16> to vector<16x4x32xbf16>
    %55 = tpu.transpose %54, [1, 0, 2] : vector<16x4x32xbf16> -> vector<4x16x32xbf16>
    %56 = arith.truncf %51 : vector<16x128xf32> to vector<16x128xbf16>
    %57 = vector.shape_cast %56 : vector<16x128xbf16> to vector<16x4x32xbf16>
    %58 = tpu.transpose %57, [1, 0, 2] : vector<16x4x32xbf16> -> vector<4x16x32xbf16>
    %59 = arith.truncf %52 : vector<16x128xf32> to vector<16x128xbf16>
    %60 = vector.shape_cast %59 : vector<16x128xbf16> to vector<16x4x32xbf16>
    %61 = tpu.transpose %60, [1, 0, 2] : vector<16x4x32xbf16> -> vector<4x16x32xbf16>
    "tpu.trace_start"() <{level = 10 : i32, message = "hqd,hkd->hqk"}> : () -> ()
    %cst_16 = arith.constant dense<0.000000e+00> : vector<4x16x16xf32>
    %62 = tpu.matmul %55, %58, %cst_16 {dimension_numbers = #tpu.dot_dimension_numbers<[2], [2], [1], [1], [0, 0, 0, 1, 1, 1], [0], [0]>} : vector<4x16x32xbf16>, vector<4x16x32xbf16>, vector<4x16x16xf32> -> vector<4x16x16xf32>
    "tpu.trace_stop"() : () -> ()
    %cst_17 = arith.constant dense<0xFF800000> : vector<4x16xf32>
    %63 = vector.multi_reduction <maximumf>, %62, %cst_17 [2] : vector<4x16x16xf32> to vector<4x16xf32>
    %64 = vector.shape_cast %63 : vector<4x16xf32> to vector<4x16x1xf32>
    %65 = vector.broadcast %64 : vector<4x16x1xf32> to vector<4x16x16xf32>
    %66 = arith.subf %62, %65 : vector<4x16x16xf32>
    %67 = math.exp %66 : vector<4x16x16xf32>
    %cst_18 = arith.constant dense<0.000000e+00> : vector<4x16xf32>
    %68 = vector.multi_reduction <add>, %67, %cst_18 [2] : vector<4x16x16xf32> to vector<4x16xf32>
    %69 = vector.shape_cast %68 : vector<4x16xf32> to vector<4x16x1xf32>
    %70 = tpu.reciprocal %69 {approx = true} : vector<4x16x1xf32> -> vector<4x16x1xf32>
    %71 = vector.broadcast %70 : vector<4x16x1xf32> to vector<4x16x16xf32>
    %72 = arith.mulf %67, %71 : vector<4x16x16xf32>
    %73 = arith.truncf %72 : vector<4x16x16xf32> to vector<4x16x16xbf16>
    "tpu.trace_start"() <{level = 10 : i32, message = "hqk,hkd->hqd"}> : () -> ()
    %cst_19 = arith.constant dense<0.000000e+00> : vector<4x16x32xf32>
    %74 = tpu.matmul %73, %61, %cst_19 {dimension_numbers = #tpu.dot_dimension_numbers<[2], [1], [1], [2], [0, 0, 0, 1, 1, 2], [0], [0]>} : vector<4x16x16xbf16>, vector<4x16x32xbf16>, vector<4x16x32xf32> -> vector<4x16x32xf32>
    "tpu.trace_stop"() : () -> ()
    %75 = arith.truncf %74 : vector<4x16x32xf32> to vector<4x16x32xbf16>
    %76 = tpu.transpose %75, [1, 0, 2] : vector<4x16x32xbf16> -> vector<16x4x32xbf16>
    %77 = vector.shape_cast %76 : vector<16x4x32xbf16> to vector<16x128xbf16>
    %c2_i32_20 = arith.constant 2 : i32
    %78 = arith.muli %arg0, %c2_i32_20 : i32
    %c1_i32 = arith.constant 1 : i32
    %79 = arith.addi %78, %c1_i32 : i32
    %80 = arith.index_cast %79 : i32 to index
    %81 = memref.load %arg1[%80] : memref<2xi32, #tpu.memory_space<smem>>
    %82 = vector.broadcast %81 : i32 to vector<16x1xi32>
    %83 = arith.cmpi sge, %33, %82 : vector<16x1xi32>
    %84 = vector.extract_strided_slice %32 {offsets = [16, 0], sizes = [16, 128], strides = [1, 1]} : vector<32x384xf32> to vector<16x128xf32>
    %cst_21 = arith.constant 0.000000e+00 : f32
    %85 = vector.shape_cast %83 : vector<16x1xi1> to vector<16x1xi1>
    %86 = vector.broadcast %85 : vector<16x1xi1> to vector<16x128xi1>
    %87 = vector.broadcast %cst_21 : f32 to vector<16x128xf32>
    %88 = arith.select %86, %87, %84 : vector<16x128xi1>, vector<16x128xf32>
    %cst_22 = arith.constant 0.176776692 : f32
    %89 = vector.broadcast %cst_22 : f32 to vector<16x128xf32>
    %90 = arith.mulf %88, %89 : vector<16x128xf32>
    %91 = vector.extract_strided_slice %32 {offsets = [16, 128], sizes = [16, 128], strides = [1, 1]} : vector<32x384xf32> to vector<16x128xf32>
    %cst_23 = arith.constant 0.000000e+00 : f32
    %92 = vector.shape_cast %83 : vector<16x1xi1> to vector<16x1xi1>
    %93 = vector.broadcast %92 : vector<16x1xi1> to vector<16x128xi1>
    %94 = vector.broadcast %cst_23 : f32 to vector<16x128xf32>
    %95 = arith.select %93, %94, %91 : vector<16x128xi1>, vector<16x128xf32>
    %96 = vector.extract_strided_slice %32 {offsets = [16, 256], sizes = [16, 128], strides = [1, 1]} : vector<32x384xf32> to vector<16x128xf32>
    %97 = arith.truncf %90 : vector<16x128xf32> to vector<16x128xbf16>
    %98 = vector.shape_cast %97 : vector<16x128xbf16> to vector<16x4x32xbf16>
    %99 = tpu.transpose %98, [1, 0, 2] : vector<16x4x32xbf16> -> vector<4x16x32xbf16>
    %100 = arith.truncf %95 : vector<16x128xf32> to vector<16x128xbf16>
    %101 = vector.shape_cast %100 : vector<16x128xbf16> to vector<16x4x32xbf16>
    %102 = tpu.transpose %101, [1, 0, 2] : vector<16x4x32xbf16> -> vector<4x16x32xbf16>
    %103 = arith.truncf %96 : vector<16x128xf32> to vector<16x128xbf16>
    %104 = vector.shape_cast %103 : vector<16x128xbf16> to vector<16x4x32xbf16>
    %105 = tpu.transpose %104, [1, 0, 2] : vector<16x4x32xbf16> -> vector<4x16x32xbf16>
    "tpu.trace_start"() <{level = 10 : i32, message = "hqd,hkd->hqk"}> : () -> ()
    %cst_24 = arith.constant dense<0.000000e+00> : vector<4x16x16xf32>
    %106 = tpu.matmul %99, %102, %cst_24 {dimension_numbers = #tpu.dot_dimension_numbers<[2], [2], [1], [1], [0, 0, 0, 1, 1, 1], [0], [0]>} : vector<4x16x32xbf16>, vector<4x16x32xbf16>, vector<4x16x16xf32> -> vector<4x16x16xf32>
    "tpu.trace_stop"() : () -> ()
    %cst_25 = arith.constant dense<0xFF800000> : vector<4x16xf32>
    %107 = vector.multi_reduction <maximumf>, %106, %cst_25 [2] : vector<4x16x16xf32> to vector<4x16xf32>
    %108 = vector.shape_cast %107 : vector<4x16xf32> to vector<4x16x1xf32>
    %109 = vector.broadcast %108 : vector<4x16x1xf32> to vector<4x16x16xf32>
    %110 = arith.subf %106, %109 : vector<4x16x16xf32>
    %111 = math.exp %110 : vector<4x16x16xf32>
    %cst_26 = arith.constant dense<0.000000e+00> : vector<4x16xf32>
    %112 = vector.multi_reduction <add>, %111, %cst_26 [2] : vector<4x16x16xf32> to vector<4x16xf32>
    %113 = vector.shape_cast %112 : vector<4x16xf32> to vector<4x16x1xf32>
    %114 = tpu.reciprocal %113 {approx = true} : vector<4x16x1xf32> -> vector<4x16x1xf32>
    %115 = vector.broadcast %114 : vector<4x16x1xf32> to vector<4x16x16xf32>
    %116 = arith.mulf %111, %115 : vector<4x16x16xf32>
    %117 = arith.truncf %116 : vector<4x16x16xf32> to vector<4x16x16xbf16>
    "tpu.trace_start"() <{level = 10 : i32, message = "hqk,hkd->hqd"}> : () -> ()
    %cst_27 = arith.constant dense<0.000000e+00> : vector<4x16x32xf32>
    %118 = tpu.matmul %117, %105, %cst_27 {dimension_numbers = #tpu.dot_dimension_numbers<[2], [1], [1], [2], [0, 0, 0, 1, 1, 2], [0], [0]>} : vector<4x16x16xbf16>, vector<4x16x32xbf16>, vector<4x16x32xf32> -> vector<4x16x32xf32>
    "tpu.trace_stop"() : () -> ()
    %119 = arith.truncf %118 : vector<4x16x32xf32> to vector<4x16x32xbf16>
    %120 = tpu.transpose %119, [1, 0, 2] : vector<4x16x32xbf16> -> vector<16x4x32xbf16>
    %121 = vector.shape_cast %120 : vector<16x4x32xbf16> to vector<16x128xbf16>
    %122 = tpu.concatenate %77, %121 in 0 : vector<16x128xbf16>, vector<16x128xbf16> -> vector<32x128xbf16>
    %c0_28 = arith.constant 0 : index
    %c0_29 = arith.constant 0 : index
    %123 = vector.load %arg6[%c0_28, %c0_29] : memref<128x128xbf16, #tpu.memory_space<vmem>>, vector<128x128xbf16>
    %cst_30 = arith.constant dense<0.000000e+00> : vector<32x128xf32>
    %124 = tpu.matmul %122, %123, %cst_30 {dimension_numbers = #tpu.dot_dimension_numbers<[1], [0], [0], [1], [0, 0, 1, 1], [], []>} : vector<32x128xbf16>, vector<128x128xbf16>, vector<32x128xf32> -> vector<32x128xf32>
    %c0_31 = arith.constant 0 : index
    %c0_32 = arith.constant 0 : index
    %125 = vector.load %arg7[%c0_31, %c0_32] : memref<1x128xf32, #tpu.memory_space<vmem>>, vector<1x128xf32>
    %126 = vector.shape_cast %125 : vector<1x128xf32> to vector<128xf32>
    %127 = vector.shape_cast %126 : vector<128xf32> to vector<1x128xf32>
    %128 = vector.broadcast %127 : vector<1x128xf32> to vector<32x128xf32>
    %129 = arith.addf %124, %128 : vector<32x128xf32>
    %130 = arith.addf %29, %129 : vector<32x128xf32>
    %c0_33 = arith.constant 0 : index
    %c0_34 = arith.constant 0 : index
    %131 = vector.load %arg8[%c0_33, %c0_34] : memref<1x128xf32, #tpu.memory_space<vmem>>, vector<1x128xf32>
    %132 = vector.shape_cast %131 : vector<1x128xf32> to vector<128xf32>
    %c0_35 = arith.constant 0 : index
    %c0_36 = arith.constant 0 : index
    %133 = vector.load %arg9[%c0_35, %c0_36] : memref<1x128xf32, #tpu.memory_space<vmem>>, vector<1x128xf32>
    %134 = vector.shape_cast %133 : vector<1x128xf32> to vector<128xf32>
    %cst_37 = arith.constant dense<0.000000e+00> : vector<32xf32>
    %135 = vector.multi_reduction <add>, %130, %cst_37 [1] : vector<32x128xf32> to vector<32xf32>
    %136 = vector.shape_cast %135 : vector<32xf32> to vector<32x1xf32>
    %cst_38 = arith.constant 1.280000e+02 : f32
    %137 = vector.broadcast %cst_38 : f32 to vector<32x1xf32>
    %138 = arith.divf %136, %137 : vector<32x1xf32>
    %139 = vector.broadcast %138 : vector<32x1xf32> to vector<32x128xf32>
    %140 = arith.subf %130, %139 : vector<32x128xf32>
    %141 = arith.mulf %140, %140 : vector<32x128xf32>
    %cst_39 = arith.constant dense<0.000000e+00> : vector<32xf32>
    %142 = vector.multi_reduction <add>, %141, %cst_39 [1] : vector<32x128xf32> to vector<32xf32>
    %143 = vector.shape_cast %142 : vector<32xf32> to vector<32x1xf32>
    %cst_40 = arith.constant 1.280000e+02 : f32
    %144 = vector.broadcast %cst_40 : f32 to vector<32x1xf32>
    %145 = arith.divf %143, %144 : vector<32x1xf32>
    %146 = vector.broadcast %138 : vector<32x1xf32> to vector<32x128xf32>
    %147 = arith.subf %130, %146 : vector<32x128xf32>
    %cst_41 = arith.constant 9.99999974E-6 : f32
    %148 = vector.broadcast %cst_41 : f32 to vector<32x1xf32>
    %149 = arith.addf %145, %148 : vector<32x1xf32>
    %150 = math.rsqrt %149 : vector<32x1xf32>
    %151 = vector.broadcast %150 : vector<32x1xf32> to vector<32x128xf32>
    %152 = arith.mulf %147, %151 : vector<32x128xf32>
    %153 = vector.shape_cast %132 : vector<128xf32> to vector<1x128xf32>
    %154 = vector.broadcast %153 : vector<1x128xf32> to vector<32x128xf32>
    %155 = arith.mulf %152, %154 : vector<32x128xf32>
    %156 = vector.shape_cast %134 : vector<128xf32> to vector<1x128xf32>
    %157 = vector.broadcast %156 : vector<1x128xf32> to vector<32x128xf32>
    %158 = arith.addf %155, %157 : vector<32x128xf32>
    %159 = arith.truncf %158 : vector<32x128xf32> to vector<32x128xbf16>
    %c0_42 = arith.constant 0 : index
    %c0_43 = arith.constant 0 : index
    %160 = vector.load %arg10[%c0_42, %c0_43] : memref<128x512xbf16, #tpu.memory_space<vmem>>, vector<128x512xbf16>
    %cst_44 = arith.constant dense<0.000000e+00> : vector<32x512xf32>
    %161 = tpu.matmul %159, %160, %cst_44 {dimension_numbers = #tpu.dot_dimension_numbers<[1], [0], [0], [1], [0, 0, 1, 1], [], []>} : vector<32x128xbf16>, vector<128x512xbf16>, vector<32x512xf32> -> vector<32x512xf32>
    %c0_45 = arith.constant 0 : index
    %c0_46 = arith.constant 0 : index
    %162 = vector.load %arg11[%c0_45, %c0_46] : memref<1x512xf32, #tpu.memory_space<vmem>>, vector<1x512xf32>
    %163 = vector.shape_cast %162 : vector<1x512xf32> to vector<512xf32>
    %164 = vector.shape_cast %163 : vector<512xf32> to vector<1x512xf32>
    %165 = vector.broadcast %164 : vector<1x512xf32> to vector<32x512xf32>
    %166 = arith.addf %161, %165 : vector<32x512xf32>
    %cst_47 = arith.constant 0.000000e+00 : f32
    %167 = vector.broadcast %cst_47 : f32 to vector<32x512xf32>
    %168 = arith.maximumf %166, %167 : vector<32x512xf32>
    %169 = arith.truncf %168 : vector<32x512xf32> to vector<32x512xbf16>
    %c0_48 = arith.constant 0 : index
    %c0_49 = arith.constant 0 : index
    %170 = vector.load %arg12[%c0_48, %c0_49] : memref<512x128xbf16, #tpu.memory_space<vmem>>, vector<512x128xbf16>
    %cst_50 = arith.constant dense<0.000000e+00> : vector<32x128xf32>
    %171 = tpu.matmul %169, %170, %cst_50 {dimension_numbers = #tpu.dot_dimension_numbers<[1], [0], [0], [1], [0, 0, 1, 1], [], []>} : vector<32x512xbf16>, vector<512x128xbf16>, vector<32x128xf32> -> vector<32x128xf32>
    %c0_51 = arith.constant 0 : index
    %c0_52 = arith.constant 0 : index
    %172 = vector.load %arg13[%c0_51, %c0_52] : memref<1x128xf32, #tpu.memory_space<vmem>>, vector<1x128xf32>
    %173 = vector.shape_cast %172 : vector<1x128xf32> to vector<128xf32>
    %174 = vector.shape_cast %173 : vector<128xf32> to vector<1x128xf32>
    %175 = vector.broadcast %174 : vector<1x128xf32> to vector<32x128xf32>
    %176 = arith.addf %171, %175 : vector<32x128xf32>
    %177 = arith.addf %158, %176 : vector<32x128xf32>
    %178 = vector.shape_cast %177 : vector<32x128xf32> to vector<2x16x128xf32>
    %c0_53 = arith.constant 0 : index
    %c0_54 = arith.constant 0 : index
    %c0_55 = arith.constant 0 : index
    %179 = vector.load %arg14[%c0_53, %c0_54, %c0_55] : memref<2x16x128xf32, #tpu.memory_space<vmem>>, vector<2x16x128xf32>
    tpu.vector_store %arg14[%c0_53, %c0_54, %c0_55], %178 {strides = array<i32>} : memref<2x16x128xf32, #tpu.memory_space<vmem>>, vector<2x16x128xf32>,
    return
  }
  func.func @transform_0(%arg0: i32, %arg1: memref<2xi32, #tpu.memory_space<smem>>) -> (i32, i32, i32) {
    %c0_i32 = arith.constant 0 : i32
    %c0_i32_0 = arith.constant 0 : i32
    %c0_i32_1 = arith.constant 0 : i32
    return %arg0, %c0_i32, %c0_i32_0 : i32, i32, i32
  }
  func.func @transform_1(%arg0: i32, %arg1: memref<2xi32, #tpu.memory_space<smem>>) -> (i32, i32) {
    %c0_i32 = arith.constant 0 : i32
    %c0_i32_0 = arith.constant 0 : i32
    %c0_i32_1 = arith.constant 0 : i32
    return %c0_i32, %c0_i32_0 : i32, i32
  }
  func.func @transform_2(%arg0: i32, %arg1: memref<2xi32, #tpu.memory_space<smem>>) -> (i32, i32) {
    %c0_i32 = arith.constant 0 : i32
    %c0_i32_0 = arith.constant 0 : i32
    %c0_i32_1 = arith.constant 0 : i32
    return %c0_i32, %c0_i32_0 : i32, i32
  }
  func.func @transform_3(%arg0: i32, %arg1: memref<2xi32, #tpu.memory_space<smem>>) -> (i32, i32) {
    %c0_i32 = arith.constant 0 : i32
    %c0_i32_0 = arith.constant 0 : i32
    %c0_i32_1 = arith.constant 0 : i32
    return %c0_i32, %c0_i32_0 : i32, i32
  }
  func.func @transform_4(%arg0: i32, %arg1: memref<2xi32, #tpu.memory_space<smem>>) -> (i32, i32) {
    %c0_i32 = arith.constant 0 : i32
    %c0_i32_0 = arith.constant 0 : i32
    %c0_i32_1 = arith.constant 0 : i32
    return %c0_i32, %c0_i32_0 : i32, i32
  }
  func.func @transform_5(%arg0: i32, %arg1: memref<2xi32, #tpu.memory_space<smem>>) -> (i32, i32) {
    %c0_i32 = arith.constant 0 : i32
    %c0_i32_0 = arith.constant 0 : i32
    %c0_i32_1 = arith.constant 0 : i32
    return %c0_i32, %c0_i32_0 : i32, i32
  }
  func.func @transform_6(%arg0: i32, %arg1: memref<2xi32, #tpu.memory_space<smem>>) -> (i32, i32) {
    %c0_i32 = arith.constant 0 : i32
    %c0_i32_0 = arith.constant 0 : i32
    %c0_i32_1 = arith.constant 0 : i32
    return %c0_i32, %c0_i32_0 : i32, i32
  }
  func.func @transform_7(%arg0: i32, %arg1: memref<2xi32, #tpu.memory_space<smem>>) -> (i32, i32) {
    %c0_i32 = arith.constant 0 : i32
    %c0_i32_0 = arith.constant 0 : i32
    %c0_i32_1 = arith.constant 0 : i32
    return %c0_i32, %c0_i32_0 : i32, i32
  }
  func.func @transform_8(%arg0: i32, %arg1: memref<2xi32, #tpu.memory_space<smem>>) -> (i32, i32) {
    %c0_i32 = arith.constant 0 : i32
    %c0_i32_0 = arith.constant 0 : i32
    %c0_i32_1 = arith.constant 0 : i32
    return %c0_i32, %c0_i32_0 : i32, i32
  }
  func.func @transform_9(%arg0: i32, %arg1: memref<2xi32, #tpu.memory_space<smem>>) -> (i32, i32) {
    %c0_i32 = arith.constant 0 : i32
    %c0_i32_0 = arith.constant 0 : i32
    %c0_i32_1 = arith.constant 0 : i32
    return %c0_i32, %c0_i32_0 : i32, i32
  }
  func.func @transform_10(%arg0: i32, %arg1: memref<2xi32, #tpu.memory_space<smem>>) -> (i32, i32) {
    %c0_i32 = arith.constant 0 : i32
    %c0_i32_0 = arith.constant 0 : i32
    %c0_i32_1 = arith.constant 0 : i32
    return %c0_i32, %c0_i32_0 : i32, i32
  }
  func.func @transform_11(%arg0: i32, %arg1: memref<2xi32, #tpu.memory_space<smem>>) -> (i32, i32) {
    %c0_i32 = arith.constant 0 : i32
    %c0_i32_0 = arith.constant 0 : i32
    %c0_i32_1 = arith.constant 0 : i32
    return %c0_i32, %c0_i32_0 : i32, i32
  }
  func.func @transform_12(%arg0: i32, %arg1: memref<2xi32, #tpu.memory_space<smem>>) -> (i32, i32, i32) {
    %c0_i32 = arith.constant 0 : i32
    %c0_i32_0 = arith.constant 0 : i32
    %c0_i32_1 = arith.constant 0 : i32
    return %arg0, %c0_i32, %c0_i32_0 : i32, i32, i32
  }
}

</mosaic_0001>

<llo_original>
// kernel: tpu_custom_call.1
$region0: #{tpu_custom_call.1}
  #allocation0 [shape = 'u32[]', space=smem, size = 0x4, offset = 0x4, fixed_abs, tag = 'smem constant byte address 0x4 - core index']
  #allocation1 [shape = 'u32[144,128]{1,0:T(1,128)}', space=vmem, size = 0x12000, scoped, tag = 'internal scratch']
  #allocation2 [shape = 's32[1]{0}', space=sflag, size = 0x4, scoped, tag = 'scoped memory for tpu_custom_call.1']
  #allocation3 [shape = 'u8[512]{0}', space=smem, size = 0x200, scoped, tag = 'prefetched SMEM operand 0']
  %s0 = inlined_call_operand.hbm [shape: s32[2], index: 0, kind: input, shape index: {}]
  %s1 = inlined_call_operand.hbm [shape: f32[2,16,128], index: 1, kind: input, shape index: {}]
  %s2 = inlined_call_operand.vmem [shape: f32[1,128], index: 2, kind: input, shape index: {}]
  %s3 = inlined_call_operand.vmem [shape: f32[1,128], index: 3, kind: input, shape index: {}]
  %s4 = inlined_call_operand.hbm [shape: bf16[128,384], index: 4, kind: input, shape index: {}]
  %s5 = inlined_call_operand.hbm [shape: bf16[128,128], index: 5, kind: input, shape index: {}]
  %s6 = inlined_call_operand.vmem [shape: f32[1,128], index: 6, kind: input, shape index: {}]
  %s7 = inlined_call_operand.vmem [shape: f32[1,128], index: 7, kind: input, shape index: {}]
  %s8 = inlined_call_operand.vmem [shape: f32[1,128], index: 8, kind: input, shape index: {}]
  %s9 = inlined_call_operand.hbm [shape: bf16[128,512], index: 9, kind: input, shape index: {}]
  %s10 = inlined_call_operand.vmem [shape: f32[1,512], index: 10, kind: input, shape index: {}]
  %s11 = inlined_call_operand.hbm [shape: bf16[512,128], index: 11, kind: input, shape index: {}]
  %s12 = inlined_call_operand.vmem [shape: f32[1,128], index: 12, kind: input, shape index: {}]
  %s13 = inlined_call_operand.hbm [shape: f32[2,16,128], index: 13, kind: output, shape index: {}]
  %s14 = sld [smem:[#allocation0]]
  $region78: #{tpu_custom_call.1} parent=0
    _
  %s16 = ssub.s32 1, %s14
  %s17 = scalar_select 0, %s16, %s14
  %19 = dma.hbm_to_smem %s0, 16, [#allocation3], [#allocation2]
  %20 = dma.done [#allocation2], 16
  %21 = sfence
  $region1: #{tpu_custom_call.1} parent=0
    #allocation4 [shape = 'u8[16384]{0}', space=vmem, size = 0x4000, scoped, tag = 'input window, operand 1, single buffered']
    #allocation5 [shape = 's32[1]{0}', space=sflag, size = 0x4, scoped, tag = 'scoped memory for tpu_custom_call.1']
    #allocation6 [shape = 's32[1]{0}', space=sflag, size = 0x4, scoped, tag = 'scoped memory for tpu_custom_call.1']
    #allocation7 [shape = 'u8[98304]{0}', space=vmem, size = 0x18000, scoped, tag = 'input window, operand 4, single buffered']
    #allocation8 [shape = 's32[1]{0}', space=sflag, size = 0x4, scoped, tag = 'scoped memory for tpu_custom_call.1']
    #allocation9 [shape = 'u8[32768]{0}', space=vmem, size = 0x8000, scoped, tag = 'input window, operand 5, single buffered']
    #allocation10 [shape = 'u8[131072]{0}', space=vmem, size = 0x20000, scoped, tag = 'input window, operand 9, single buffered']
    #allocation11 [shape = 's32[1]{0}', space=sflag, size = 0x4, scoped, tag = 'scoped memory for tpu_custom_call.1']
    #allocation12 [shape = 'u8[131072]{0}', space=vmem, size = 0x20000, scoped, tag = 'input window, operand 11, single buffered']
    #allocation13 [shape = 'u8[16384]{0}', space=vmem, size = 0x4000, scoped, tag = 'output window, operand 0, single buffered']
    %22 = vsyncpa [#allocation5], 0
    %23 = vsyncpa [#allocation8], 0
    %24 = vsyncpa [#allocation11], 0
    %25 = vsyncpa [#allocation6], 0
    // Predicated region
    $region2: #{tpu_custom_call.1} parent=1 // pred_check
      _
    $region3: #{tpu_custom_call.1} parent=1 // pred_check_branch
      %27 = sbr.rel (0) target = $region5
    $region4: #{tpu_custom_call.1} parent=1 // pred_region
      %s29 = ssub.s32 512, 512
      %30 = vsyncadd [#allocation5], %s29
      %s31 = sshll.u32 [#allocation4], 4
      %s32 = int_to_ptr.vmem [resolvable:$true] %s31
      %37 = dma.hbm_to_vmem [thread:$0]  %s1, 512, %s32, [#allocation5], 128, 128, 8
    $region5: #{tpu_custom_call.1} parent=1 // pred_fallthru
      _
    // Predicated region
    $region6: #{tpu_custom_call.1} parent=1 // pred_check
      _
    $region7: #{tpu_custom_call.1} parent=1 // pred_check_branch
      %39 = sbr.rel (0) target = $region9
    $region8: #{tpu_custom_call.1} parent=1 // pred_region
      _
    $region9: #{tpu_custom_call.1} parent=1 // pred_fallthru
      _
    // Predicated region
    $region10: #{tpu_custom_call.1} parent=1 // pred_check
      _
    $region11: #{tpu_custom_call.1} parent=1 // pred_check_branch
      %41 = sbr.rel (0) target = $region13
    $region12: #{tpu_custom_call.1} parent=1 // pred_region
      _
    $region13: #{tpu_custom_call.1} parent=1 // pred_fallthru
      _
    // Predicated region
    $region14: #{tpu_custom_call.1} parent=1 // pred_check
      _
    $region15: #{tpu_custom_call.1} parent=1 // pred_check_branch
      %43 = sbr.rel (0) target = $region17
    $region16: #{tpu_custom_call.1} parent=1 // pred_region
      %s45 = ssub.s32 3072, 3072
      %46 = vsyncadd [#allocation8], %s45
      %s47 = sshll.u32 [#allocation7], 4
      %s48 = int_to_ptr.vmem [resolvable:$true] %s47
      %53 = dma.hbm_to_vmem [thread:$0]  %s4, 3072, %s48, [#allocation8], 192, 192, 12
    $region17: #{tpu_custom_call.1} parent=1 // pred_fallthru
      _
    // Predicated region
    $region18: #{tpu_custom_call.1} parent=1 // pred_check
      _
    $region19: #{tpu_custom_call.1} parent=1 // pred_check_branch
      %55 = sbr.rel (0) target = $region21
    $region20: #{tpu_custom_call.1} parent=1 // pred_region
      %s57 = ssub.s32 1024, 1024
      %58 = vsyncadd [#allocation8], %s57
      %s59 = sshll.u32 [#allocation9], 4
      %s60 = int_to_ptr.vmem [resolvable:$true] %s59
      %65 = dma.hbm_to_vmem [thread:$0]  %s5, 1024, %s60, [#allocation8], 64, 64, 4
    $region21: #{tpu_custom_call.1} parent=1 // pred_fallthru
      _
    // Predicated region
    $region22: #{tpu_custom_call.1} parent=1 // pred_check
      _
    $region23: #{tpu_custom_call.1} parent=1 // pred_check_branch
      %67 = sbr.rel (0) target = $region25
    $region24: #{tpu_custom_call.1} parent=1 // pred_region
      _
    $region25: #{tpu_custom_call.1} parent=1 // pred_fallthru
      _
    // Predicated region
    $region26: #{tpu_custom_call.1} parent=1 // pred_check
      _
    $region27: #{tpu_custom_call.1} parent=1 // pred_check_branch
      %69 = sbr.rel (0) target = $region29
    $region28: #{tpu_custom_call.1} parent=1 // pred_region
      _
    $region29: #{tpu_custom_call.1} parent=1 // pred_fallthru
      _
    // Predicated region
    $region30: #{tpu_custom_call.1} parent=1 // pred_check
      _
    $region31: #{tpu_custom_call.1} parent=1 // pred_check_branch
      %71 = sbr.rel (0) target = $region33
    $region32: #{tpu_custom_call.1} parent=1 // pred_region
      _
    $region33: #{tpu_custom_call.1} parent=1 // pred_fallthru
      _
    // Predicated region
    $region34: #{tpu_custom_call.1} parent=1 // pred_check
      _
    $region35: #{tpu_custom_call.1} parent=1 // pred_check_branch
      %73 = sbr.rel (0) target = $region37
    $region36: #{tpu_custom_call.1} parent=1 // pred_region
      %s75 = ssub.s32 4096, 4096
      %76 = vsyncadd [#allocation11], %s75
      %s77 = sshll.u32 [#allocation10], 4
      %s78 = int_to_ptr.vmem [resolvable:$true] %s77
      %83 = dma.hbm_to_vmem [thread:$0]  %s9, 4096, %s78, [#allocation11], 256, 256, 16
    $region37: #{tpu_custom_call.1} parent=1 // pred_fallthru
      _
    // Predicated region
    $region38: #{tpu_custom_call.1} parent=1 // pred_check
      _
    $region39: #{tpu_custom_call.1} parent=1 // pred_check_branch
      %85 = sbr.rel (0) target = $region41
    $region40: #{tpu_custom_call.1} parent=1 // pred_region
      _
    $region41: #{tpu_custom_call.1} parent=1 // pred_fallthru
      _
    // Predicated region
    $region42: #{tpu_custom_call.1} parent=1 // pred_check
      _
    $region43: #{tpu_custom_call.1} parent=1 // pred_check_branch
      %87 = sbr.rel (0) target = $region45
    $region44: #{tpu_custom_call.1} parent=1 // pred_region
      %s89 = ssub.s32 4096, 4096
      %90 = vsyncadd [#allocation11], %s89
      %s91 = sshll.u32 [#allocation12], 4
      %s92 = int_to_ptr.vmem [resolvable:$true] %s91
      %97 = dma.hbm_to_vmem [thread:$0]  %s11, 4096, %s92, [#allocation11], 64, 64, 4
    $region45: #{tpu_custom_call.1} parent=1 // pred_fallthru
      _
    // Predicated region
    $region46: #{tpu_custom_call.1} parent=1 // pred_check
      _
    $region47: #{tpu_custom_call.1} parent=1 // pred_check_branch
      %99 = sbr.rel (0) target = $region49
    $region48: #{tpu_custom_call.1} parent=1 // pred_region
      _
    $region49: #{tpu_custom_call.1} parent=1 // pred_fallthru
      _
    // Predicated region
    $region50: #{tpu_custom_call.1} parent=1 // pred_check
      _
    $region51: #{tpu_custom_call.1} parent=1 // pred_check_branch
      %101 = sbr.rel (0) target = $region53
    $region52: #{tpu_custom_call.1} parent=1 // pred_region
      %102 = dma.done [#allocation5], 512
    $region53: #{tpu_custom_call.1} parent=1 // pred_fallthru
      _
    // Predicated region
    $region54: #{tpu_custom_call.1} parent=1 // pred_check
      _
    $region55: #{tpu_custom_call.1} parent=1 // pred_check_branch
      %104 = sbr.rel (0) target = $region57
    $region56: #{tpu_custom_call.1} parent=1 // pred_region
      %105 = dma.done [#allocation8], 3072
    $region57: #{tpu_custom_call.1} parent=1 // pred_fallthru
      _
    // Predicated region
    $region58: #{tpu_custom_call.1} parent=1 // pred_check
      _
    $region59: #{tpu_custom_call.1} parent=1 // pred_check_branch
      %107 = sbr.rel (0) target = $region61
    $region60: #{tpu_custom_call.1} parent=1 // pred_region
      %108 = dma.done [#allocation8], 1024
    $region61: #{tpu_custom_call.1} parent=1 // pred_fallthru
      _
    // Predicated region
    $region62: #{tpu_custom_call.1} parent=1 // pred_check
      _
    $region63: #{tpu_custom_call.1} parent=1 // pred_check_branch
      %110 = sbr.rel (0) target = $region65
    $region64: #{tpu_custom_call.1} parent=1 // pred_region
      %111 = dma.done [#allocation11], 4096
    $region65: #{tpu_custom_call.1} parent=1 // pred_fallthru
      _
    // Predicated region
    $region66: #{tpu_custom_call.1} parent=1 // pred_check
      _
    $region67: #{tpu_custom_call.1} parent=1 // pred_check_branch
      %113 = sbr.rel (0) target = $region69
    $region68: #{tpu_custom_call.1} parent=1 // pred_region
      %114 = dma.done [#allocation11], 4096
    $region69: #{tpu_custom_call.1} parent=1 // pred_fallthru
      _
    %v116 = vld [vmem:[#allocation4] sm:$0xff]
    %v117 = vld [vmem:[#allocation4 + $0x8] sm:$0xff]
    %v118 = vld [vmem:[#allocation4 + $0x10] sm:$0xff]
    %v119 = vld [vmem:[#allocation4 + $0x18] sm:$0xff]
    %v120 = vld [vmem:[%s2] sm:$0x1]
    %v121 = vld [vmem:[%s3] sm:$0x1]
    %122 = vadd.xlane.f32.xlu0 %v116
    %v123 = vpop.xlane.xlu0 %122
    %124 = vadd.xlane.f32.xlu0 %v117
    %v125 = vpop.xlane.xlu0 %124
    %126 = vadd.xlane.f32.xlu0 %v118
    %v127 = vpop.xlane.xlu0 %126
    %128 = vadd.xlane.f32.xlu0 %v119
    %v129 = vpop.xlane.xlu0 %128
    %v130 = vrcp.pop 128.0
    %v131 = vmul.f32 %v123, %v130
    %v132 = vmul.f32 %v125, %v130
    %v133 = vmul.f32 %v127, %v130
    %v134 = vmul.f32 %v129, %v130
    %v135 = vsub.f32 %v116, %v131
    %v136 = vsub.f32 %v117, %v132
    %v137 = vsub.f32 %v118, %v133
    %v138 = vsub.f32 %v119, %v134
    %v139 = vmul.f32 %v135, %v135
    %v140 = vmul.f32 %v136, %v136
    %v141 = vmul.f32 %v137, %v137
    %v142 = vmul.f32 %v138, %v138
    %143 = vadd.xlane.f32.xlu0 %v139
    %v144 = vpop.xlane.xlu0 %143
    %145 = vadd.xlane.f32.xlu0 %v140
    %v146 = vpop.xlane.xlu0 %145
    %147 = vadd.xlane.f32.xlu0 %v141
    %v148 = vpop.xlane.xlu0 %147
    %149 = vadd.xlane.f32.xlu0 %v142
    %v150 = vpop.xlane.xlu0 %149
    %v151 = vmul.f32 %v144, %v130
    %v152 = vmul.f32 %v146, %v130
    %v153 = vmul.f32 %v148, %v130
    %v154 = vmul.f32 %v150, %v130
    %v155 = vadd.f32 %v151, 1e-05
    %v156 = vadd.f32 %v152, 1e-05
    %v157 = vadd.f32 %v153, 1e-05
    %v158 = vadd.f32 %v154, 1e-05
    %v159 = vrsqrt.pop %v155
    %v160 = vrsqrt.pop %v156
    %v161 = vrsqrt.pop %v157
    %v162 = vrsqrt.pop %v158
    %v163 = vmul.f32 %v135, %v159
    %v164 = vmul.f32 %v136, %v160
    %v165 = vmul.f32 %v137, %v161
    %v166 = vmul.f32 %v138, %v162
    %v168 = vlaneseq
    %v169 = vshrl.u32 %v168, 7
    %v170 = vsub.s32 0, %v169
    %v171 = vrot.slane %v120, %v170
    %v173 = vmul.f32 %v163, %v171
    %v174 = vmul.f32 %v164, %v171
    %v175 = vmul.f32 %v165, %v171
    %v176 = vmul.f32 %v166, %v171
    %v178 = vlaneseq
    %v179 = vshrl.u32 %v178, 7
    %v180 = vsub.s32 0, %v179
    %v181 = vrot.slane %v121, %v180
    %v183 = vadd.f32 %v173, %v181
    %v184 = vadd.f32 %v174, %v181
    %v185 = vadd.f32 %v175, %v181
    %v186 = vadd.f32 %v176, %v181
    %v187 = vpack.c.bf16 %v184, %v183
    %v188 = vpack.c.bf16 %v186, %v185
    %v189 = vld [vmem:[#allocation7] sm:$0xff]
    %v190 = vld [vmem:[#allocation7 + $0x8] sm:$0xf]
    %v191 = vld [vmem:[#allocation7 + $0xc] sm:$0xff]
    %v192 = vld [vmem:[#allocation7 + $0x14] sm:$0xf]
    %v193 = vld [vmem:[#allocation7 + $0x18] sm:$0xff]
    %v194 = vld [vmem:[#allocation7 + $0x20] sm:$0xf]
    %v195 = vld [vmem:[#allocation7 + $0x24] sm:$0xff]
    %v196 = vld [vmem:[#allocation7 + $0x2c] sm:$0xf]
    %v197 = vld [vmem:[#allocation7 + $0x30] sm:$0xff]
    %v198 = vld [vmem:[#allocation7 + $0x38] sm:$0xf]
    %v199 = vld [vmem:[#allocation7 + $0x3c] sm:$0xff]
    %v200 = vld [vmem:[#allocation7 + $0x44] sm:$0xf]
    %v201 = vld [vmem:[#allocation7 + $0x48] sm:$0xff]
    %v202 = vld [vmem:[#allocation7 + $0x50] sm:$0xf]
    %v203 = vld [vmem:[#allocation7 + $0x54] sm:$0xff]
    %v204 = vld [vmem:[#allocation7 + $0x5c] sm:$0xf]
    %v205 = vld [vmem:[#allocation7 + $0x60] sm:$0xff]
    %v206 = vld [vmem:[#allocation7 + $0x68] sm:$0xf]
    %v207 = vld [vmem:[#allocation7 + $0x6c] sm:$0xff]
    %v208 = vld [vmem:[#allocation7 + $0x74] sm:$0xf]
    %v209 = vld [vmem:[#allocation7 + $0x78] sm:$0xff]
    %v210 = vld [vmem:[#allocation7 + $0x80] sm:$0xf]
    %v211 = vld [vmem:[#allocation7 + $0x84] sm:$0xff]
    %v212 = vld [vmem:[#allocation7 + $0x8c] sm:$0xf]
    %v213 = vld [vmem:[#allocation7 + $0x90] sm:$0xff]
    %v214 = vld [vmem:[#allocation7 + $0x98] sm:$0xf]
    %v215 = vld [vmem:[#allocation7 + $0x9c] sm:$0xff]
    %v216 = vld [vmem:[#allocation7 + $0xa4] sm:$0xf]
    %v217 = vld [vmem:[#allocation7 + $0xa8] sm:$0xff]
    %v218 = vld [vmem:[#allocation7 + $0xb0] sm:$0xf]
    %v219 = vld [vmem:[#allocation7 + $0xb4] sm:$0xff]
    %v220 = vld [vmem:[#allocation7 + $0xbc] sm:$0xf]
    %v253 = vunpack.c.l.b16 %v189
    %v254 = vunpack.c.h.b16 %v189
    %v255 = vunpack.c.l.b16 %v190
    %v256 = vunpack.c.l.b16 %v191
    %v257 = vunpack.c.h.b16 %v191
    %v258 = vunpack.c.l.b16 %v192
    %v259 = vunpack.c.l.b16 %v193
    %v260 = vunpack.c.h.b16 %v193
    %v261 = vunpack.c.l.b16 %v194
    %v262 = vunpack.c.l.b16 %v195
    %v263 = vunpack.c.h.b16 %v195
    %v264 = vunpack.c.l.b16 %v196
    %v265 = vunpack.c.l.b16 %v197
    %v266 = vunpack.c.h.b16 %v197
    %v267 = vunpack.c.l.b16 %v198
    %v268 = vunpack.c.l.b16 %v199
    %v269 = vunpack.c.h.b16 %v199
    %v270 = vunpack.c.l.b16 %v200
    %v271 = vunpack.c.l.b16 %v201
    %v272 = vunpack.c.h.b16 %v201
    %v273 = vunpack.c.l.b16 %v202
    %v274 = vunpack.c.l.b16 %v203
    %v275 = vunpack.c.h.b16 %v203
    %v276 = vunpack.c.l.b16 %v204
    %v277 = vunpack.c.l.b16 %v205
    %v278 = vunpack.c.h.b16 %v205
    %v279 = vunpack.c.l.b16 %v206
    %v280 = vunpack.c.l.b16 %v207
    %v281 = vunpack.c.h.b16 %v207
    %v282 = vunpack.c.l.b16 %v208
    %v283 = vunpack.c.l.b16 %v209
    %v284 = vunpack.c.h.b16 %v209
    %v285 = vunpack.c.l.b16 %v210
    %v286 = vunpack.c.l.b16 %v211
    %v287 = vunpack.c.h.b16 %v211
    %v288 = vunpack.c.l.b16 %v212
    %v289 = vunpack.c.l.b16 %v213
    %v290 = vunpack.c.h.b16 %v213
    %v291 = vunpack.c.l.b16 %v214
    %v292 = vunpack.c.l.b16 %v215
    %v293 = vunpack.c.h.b16 %v215
    %v294 = vunpack.c.l.b16 %v216
    %v295 = vunpack.c.l.b16 %v217
    %v296 = vunpack.c.h.b16 %v217
    %v297 = vunpack.c.l.b16 %v218
    %v298 = vunpack.c.l.b16 %v219
    %v299 = vunpack.c.h.b16 %v219
    %v300 = vunpack.c.l.b16 %v220
    %v301 = vpack.c.b16 %v256, %v253
    %v302 = vpack.c.b16 %v257, %v254
    %v303 = vpack.c.b16 %v258, %v255
    %v304 = vpack.c.b16 %v262, %v259
    %v305 = vpack.c.b16 %v263, %v260
    %v306 = vpack.c.b16 %v264, %v261
    %v307 = vpack.c.b16 %v268, %v265
    %v308 = vpack.c.b16 %v269, %v266
    %v309 = vpack.c.b16 %v270, %v267
    %v310 = vpack.c.b16 %v274, %v271
    %v311 = vpack.c.b16 %v275, %v272
    %v312 = vpack.c.b16 %v276, %v273
    %v313 = vpack.c.b16 %v280, %v277
    %v314 = vpack.c.b16 %v281, %v278
    %v315 = vpack.c.b16 %v282, %v279
    %v316 = vpack.c.b16 %v286, %v283
    %v317 = vpack.c.b16 %v287, %v284
    %v318 = vpack.c.b16 %v288, %v285
    %v319 = vpack.c.b16 %v292, %v289
    %v320 = vpack.c.b16 %v293, %v290
    %v321 = vpack.c.b16 %v294, %v291
    %v322 = vpack.c.b16 %v298, %v295
    %v323 = vpack.c.b16 %v299, %v296
    %v324 = vpack.c.b16 %v300, %v297
    %349 = vmatprep.subr.bf16.mxu0 %v323
    %350 = vmatpush1.bf16.msra.mxu0 %v322
    %351 = vmatprep.subr.bf16.mxu0 %v320
    %352 = vmatpush1.bf16.msra.mxu0 %v319
    %353 = vmatprep.subr.bf16.mxu0 %v317
    %354 = vmatpush1.bf16.msra.mxu0 %v316
    %355 = vmatprep.subr.bf16.mxu0 %v314
    %356 = vmatpush1.bf16.msra.mxu0 %v313
    %357 = vmatprep.subr.bf16.mxu0 %v311
    %358 = vmatpush1.bf16.msra.mxu0 %v310
    %359 = vmatprep.subr.bf16.mxu0 %v308
    %360 = vmatpush1.bf16.msra.mxu0 %v307
    %361 = vmatprep.subr.bf16.mxu0 %v305
    %362 = vmatpush1.bf16.msra.mxu0 %v304
    %363 = vmatprep.subr.bf16.mxu0 %v302
    %364 = vmatpush1.bf16.msra.mxu0 %v301
    %365 = vmatprep.subr.bf16.mxu0 0
    %366 = vmatpush2.bf16.msra.mxu0 0
    %367 = vmatprep.subr.bf16.mxu0 0
    %368 = vmatpush2.bf16.msra.mxu0 0
    %369 = vmatprep.subr.bf16.mxu0 0
    %370 = vmatpush2.bf16.msra.mxu0 0
    %371 = vmatprep.subr.bf16.mxu0 0
    %372 = vmatpush2.bf16.msra.mxu0 0
    %373 = vmatprep.subr.bf16.mxu0 0
    %374 = vmatpush2.bf16.msra.mxu0 0
    %375 = vmatprep.subr.bf16.mxu0 0
    %376 = vmatpush2.bf16.msra.mxu0 0
    %377 = vmatprep.subr.bf16.mxu0 0
    %378 = vmatpush2.bf16.msra.mxu0 0
    %379 = vmatprep.subr.bf16.mxu0 0
    %380 = vmatpush2.bf16.msra.mxu0 0
    %381 = vmatprep.mubr.bf16.mxu0 0
    %382 = vmatmul.mubr.bf16.gmra.mxu0 %v187
    %v383 = vpop.f32.mrf.mxu0
    %v384 = vadd.f32 0.0, %v383
    %v385 = vpop.f32.mrf.mxu0
    %v386 = vadd.f32 0.0, %v385
    %v387 = vpop.f32.mrf.mxu0
    %v388 = vadd.f32 0.0, %v387
    %v389 = vpop.f32.mrf.mxu0
    %v390 = vadd.f32 0.0, %v389
    %391 = vmatprep.mubr.bf16.mxu0 0
    %392 = vmatmul.mubr.bf16.gmra.mxu0 %v188
    %v393 = vpop.f32.mrf.mxu0
    %v394 = vadd.f32 0.0, %v393
    %v395 = vpop.f32.mrf.mxu0
    %v396 = vadd.f32 0.0, %v395
    %v397 = vpop.f32.mrf.mxu0
    %v398 = vadd.f32 0.0, %v397
    %v399 = vpop.f32.mrf.mxu0
    %v400 = vadd.f32 0.0, %v399
    %401 = vdwg.mxu0
    %402 = vmatprep.subr.bf16.mxu0 0
    %403 = vmatpush1.bf16.msra.mxu0 %v324
    %404 = vmatprep.subr.bf16.mxu0 0
    %405 = vmatpush1.bf16.msra.mxu0 %v321
    %406 = vmatprep.subr.bf16.mxu0 0
    %407 = vmatpush1.bf16.msra.mxu0 %v318
    %408 = vmatprep.subr.bf16.mxu0 0
    %409 = vmatpush1.bf16.msra.mxu0 %v315
    %410 = vmatprep.subr.bf16.mxu0 0
    %411 = vmatpush1.bf16.msra.mxu0 %v312
    %412 = vmatprep.subr.bf16.mxu0 0
    %413 = vmatpush1.bf16.msra.mxu0 %v309
    %414 = vmatprep.subr.bf16.mxu0 0
    %415 = vmatpush1.bf16.msra.mxu0 %v306
    %416 = vmatprep.subr.bf16.mxu0 0
    %417 = vmatpush1.bf16.msra.mxu0 %v303
    %418 = vmatprep.subr.bf16.mxu0 0
    %419 = vmatpush2.bf16.msra.mxu0 0
    %420 = vmatprep.subr.bf16.mxu0 0
    %421 = vmatpush2.bf16.msra.mxu0 0
    %422 = vmatprep.subr.bf16.mxu0 0
    %423 = vmatpush2.bf16.msra.mxu0 0
    %424 = vmatprep.subr.bf16.mxu0 0
    %425 = vmatpush2.bf16.msra.mxu0 0
    %426 = vmatprep.subr.bf16.mxu0 0
    %427 = vmatpush2.bf16.msra.mxu0 0
    %428 = vmatprep.subr.bf16.mxu0 0
    %429 = vmatpush2.bf16.msra.mxu0 0
    %430 = vmatprep.subr.bf16.mxu0 0
    %431 = vmatpush2.bf16.msra.mxu0 0
    %432 = vmatprep.subr.bf16.mxu0 0
    %433 = vmatpush2.bf16.msra.mxu0 0
    %434 = vmatprep.mubr.bf16.mxu0 0
    %435 = vmatmul.mubr.bf16.gmra.mxu0 %v187
    %v436 = vpop.f32.mrf.mxu0
    %v437 = vadd.f32 0.0, %v436
    %v438 = vpop.f32.mrf.mxu0
    %v439 = vpop.f32.mrf.mxu0
    %v440 = vadd.f32 0.0, %v439
    %v441 = vpop.f32.mrf.mxu0
    %442 = vmatprep.mubr.bf16.mxu0 0
    %443 = vmatmul.mubr.bf16.gmra.mxu0 %v188
    %v444 = vpop.f32.mrf.mxu0
    %v445 = vadd.f32 0.0, %v444
    %v446 = vpop.f32.mrf.mxu0
    %v447 = vpop.f32.mrf.mxu0
    %v448 = vadd.f32 0.0, %v447
    %v449 = vpop.f32.mrf.mxu0
    %450 = vdwg.mxu0
    %v451 = vlaneseq
    %v452 = vshrl.u32 %v451, 7
    %v453 = vadd.s32 %v452, 8
    %s454 = smul.u32 0, 2
    %s455 = sld [smem:[#allocation3 + %s454]]
    %v456 = vstv %s455
    %vm457 = vcmp.ge.s32.totalorder %v452, %v456
    %vm458 = vcmp.ge.s32.totalorder %v453, %v456
    %v459 = vsel %vm457, 1, 0
    %v460 = vsel %vm458, 1, 0
    %vm461 = vcmp.eq.s32.totalorder %v459, 1
    %vm462 = vcmp.eq.s32.totalorder %v460, 1
    %v463 = vsel %vm461, 0.0, %v384
    %v464 = vsel %vm462, 0.0, %v388
    %v465 = vmul.f32 %v463, 0.17677669
    %v466 = vmul.f32 %v464, 0.17677669
    %v467 = vsel %vm461, 0.0, %v386
    %v468 = vsel %vm462, 0.0, %v390
    %v469 = vpack.c.bf16 %v466, %v465
    %471 = vrot.lane.b32.xlu0 %v469, 96
    %v472 = vpop.permute.xlu0 %471
    %473 = vrot.lane.b32.xlu0 %v469, 64
    %v474 = vpop.permute.xlu0 %473
    %475 = vrot.lane.b32.xlu0 %v469, 32
    %v476 = vpop.permute.xlu0 %475
    %v479 = vpack.i.b16 %v472, %v469
    %v481 = vshrl.u32 %v469, 16
    %v482 = vshrl.u32 %v472, 16
    %v483 = vpack.i.b16 %v482, %v481
    %v487 = vpack.i.b16 %v476, %v474
    %v489 = vshrl.u32 %v474, 16
    %v490 = vshrl.u32 %v476, 16
    %v491 = vpack.i.b16 %v490, %v489
    %v494 = vpack.i.b16 0, 0
    %v496 = vshrl.u32 0, 16
    %v497 = vpack.i.b16 %v496, %v496
    %v499 = vcombine.high %v479, %v494
    %v501 = vunpack.c.l.s4 1983009808
    %v502 = vunpack.c.0.s8 %v501
    %v503 = vlaneseq
    %v504 = vshrl.u32 %v503, 7
    %v505 = vsub.s32 %v502, %v504
    %v506 = vrot.slane %v479, %v505
    %v508 = vunpack.c.l.s4 1983009808
    %v509 = vunpack.c.0.s8 %v508
    %v510 = vlaneseq
    %v511 = vshrl.u32 %v510, 7
    %v512 = vsub.s32 %v509, %v511
    %v513 = vrot.slane %v499, %v512
    %v514 = vcombine.high %v487, %v494
    %v516 = vunpack.c.l.s4 1983009808
    %v517 = vunpack.c.0.s8 %v516
    %v518 = vlaneseq
    %v519 = vshrl.u32 %v518, 7
    %v520 = vsub.s32 %v517, %v519
    %v521 = vrot.slane %v487, %v520
    %v523 = vunpack.c.l.s4 1983009808
    %v524 = vunpack.c.0.s8 %v523
    %v525 = vlaneseq
    %v526 = vshrl.u32 %v525, 7
    %v527 = vsub.s32 %v524, %v526
    %v528 = vrot.slane %v514, %v527
    %v529 = vcombine.low %v506, %v521
    %v530 = vcombine.high %v506, %v521
    %v532 = vunpack.c.l.s4 1934713408
    %v533 = vunpack.c.0.s8 %v532
    %v534 = vlaneseq
    %v535 = vshrl.u32 %v534, 7
    %v536 = vsub.s32 %v533, %v535
    %v537 = vrot.slane %v529, %v536
    %v539 = vunpack.c.l.s4 1934713408
    %v540 = vunpack.c.0.s8 %v539
    %v541 = vlaneseq
    %v542 = vshrl.u32 %v541, 7
    %v543 = vsub.s32 %v540, %v542
    %v544 = vrot.slane %v530, %v543
    %v545 = vcombine.low %v513, %v528
    %v546 = vcombine.high %v513, %v528
    %v548 = vunpack.c.l.s4 1934713408
    %v549 = vunpack.c.0.s8 %v548
    %v550 = vlaneseq
    %v551 = vshrl.u32 %v550, 7
    %v552 = vsub.s32 %v549, %v551
    %v553 = vrot.slane %v545, %v552
    %v555 = vunpack.c.l.s4 1934713408
    %v556 = vunpack.c.0.s8 %v555
    %v557 = vlaneseq
    %v558 = vshrl.u32 %v557, 7
    %v559 = vsub.s32 %v556, %v558
    %v560 = vrot.slane %v546, %v559
    %v561 = vcombine.high %v537, 0
    %v562 = vcombine.high %v544, 0
    %v563 = vcombine.high %v553, 0
    %v564 = vcombine.high %v560, 0
    %v565 = vcombine.high %v483, %v497
    %v567 = vunpack.c.l.s4 1983009808
    %v568 = vunpack.c.0.s8 %v567
    %v569 = vlaneseq
    %v570 = vshrl.u32 %v569, 7
    %v571 = vsub.s32 %v568, %v570
    %v572 = vrot.slane %v483, %v571
    %v574 = vunpack.c.l.s4 1983009808
    %v575 = vunpack.c.0.s8 %v574
    %v576 = vlaneseq
    %v577 = vshrl.u32 %v576, 7
    %v578 = vsub.s32 %v575, %v577
    %v579 = vrot.slane %v565, %v578
    %v580 = vcombine.high %v491, %v497
    %v582 = vunpack.c.l.s4 1983009808
    %v583 = vunpack.c.0.s8 %v582
    %v584 = vlaneseq
    %v585 = vshrl.u32 %v584, 7
    %v586 = vsub.s32 %v583, %v585
    %v587 = vrot.slane %v491, %v586
    %v589 = vunpack.c.l.s4 1983009808
    %v590 = vunpack.c.0.s8 %v589
    %v591 = vlaneseq
    %v592 = vshrl.u32 %v591, 7
    %v593 = vsub.s32 %v590, %v592
    %v594 = vrot.slane %v580, %v593
    %v595 = vcombine.low %v572, %v587
    %v596 = vcombine.high %v572, %v587
    %v598 = vunpack.c.l.s4 1934713408
    %v599 = vunpack.c.0.s8 %v598
    %v600 = vlaneseq
    %v601 = vshrl.u32 %v600, 7
    %v602 = vsub.s32 %v599, %v601
    %v603 = vrot.slane %v595, %v602
    %v605 = vunpack.c.l.s4 1934713408
    %v606 = vunpack.c.0.s8 %v605
    %v607 = vlaneseq
    %v608 = vshrl.u32 %v607, 7
    %v609 = vsub.s32 %v606, %v608
    %v610 = vrot.slane %v596, %v609
    %v611 = vcombine.low %v579, %v594
    %v612 = vcombine.high %v579, %v594
    %v614 = vunpack.c.l.s4 1934713408
    %v615 = vunpack.c.0.s8 %v614
    %v616 = vlaneseq
    %v617 = vshrl.u32 %v616, 7
    %v618 = vsub.s32 %v615, %v617
    %v619 = vrot.slane %v611, %v618
    %v621 = vunpack.c.l.s4 1934713408
    %v622 = vunpack.c.0.s8 %v621
    %v623 = vlaneseq
    %v624 = vshrl.u32 %v623, 7
    %v625 = vsub.s32 %v622, %v624
    %v626 = vrot.slane %v612, %v625
    %v627 = vcombine.high %v603, 0
    %v628 = vcombine.high %v610, 0
    %v629 = vcombine.high %v619, 0
    %v630 = vcombine.high %v626, 0
    %v631 = vcombine.low %v537, %v544
    %v633 = vunpack.c.l.s4 1983009808
    %v634 = vunpack.c.0.s8 %v633
    %v635 = vlaneseq
    %v636 = vshrl.u32 %v635, 7
    %v637 = vsub.s32 %v634, %v636
    %v638 = vrot.slane %v631, %v637
    %v639 = vcombine.low %v561, %v562
    %v641 = vunpack.c.l.s4 1983009808
    %v642 = vunpack.c.0.s8 %v641
    %v643 = vlaneseq
    %v644 = vshrl.u32 %v643, 7
    %v645 = vsub.s32 %v642, %v644
    %v646 = vrot.slane %v639, %v645
    %v647 = vcombine.low %v553, %v560
    %v649 = vunpack.c.l.s4 1983009808
    %v650 = vunpack.c.0.s8 %v649
    %v651 = vlaneseq
    %v652 = vshrl.u32 %v651, 7
    %v653 = vsub.s32 %v650, %v652
    %v654 = vrot.slane %v647, %v653
    %v655 = vcombine.low %v563, %v564
    %v657 = vunpack.c.l.s4 1983009808
    %v658 = vunpack.c.0.s8 %v657
    %v659 = vlaneseq
    %v660 = vshrl.u32 %v659, 7
    %v661 = vsub.s32 %v658, %v660
    %v662 = vrot.slane %v655, %v661
    %v663 = vcombine.low %v638, %v646
    %v665 = vunpack.c.l.s4 1934713408
    %v666 = vunpack.c.0.s8 %v665
    %v667 = vlaneseq
    %v668 = vshrl.u32 %v667, 7
    %v669 = vsub.s32 %v666, %v668
    %v670 = vrot.slane %v663, %v669
    %v671 = vcombine.low %v654, %v662
    %v673 = vunpack.c.l.s4 1934713408
    %v674 = vunpack.c.0.s8 %v673
    %v675 = vlaneseq
    %v676 = vshrl.u32 %v675, 7
    %v677 = vsub.s32 %v674, %v676
    %v678 = vrot.slane %v671, %v677
    %v679 = vcombine.low %v670, %v678
    %v680 = vcombine.high %v670, %v678
    %v681 = vcombine.low %v603, %v610
    %v683 = vunpack.c.l.s4 1983009808
    %v684 = vunpack.c.0.s8 %v683
    %v685 = vlaneseq
    %v686 = vshrl.u32 %v685, 7
    %v687 = vsub.s32 %v684, %v686
    %v688 = vrot.slane %v681, %v687
    %v689 = vcombine.low %v627, %v628
    %v691 = vunpack.c.l.s4 1983009808
    %v692 = vunpack.c.0.s8 %v691
    %v693 = vlaneseq
    %v694 = vshrl.u32 %v693, 7
    %v695 = vsub.s32 %v692, %v694
    %v696 = vrot.slane %v689, %v695
    %v697 = vcombine.low %v619, %v626
    %v699 = vunpack.c.l.s4 1983009808
    %v700 = vunpack.c.0.s8 %v699
    %v701 = vlaneseq
    %v702 = vshrl.u32 %v701, 7
    %v703 = vsub.s32 %v700, %v702
    %v704 = vrot.slane %v697, %v703
    %v705 = vcombine.low %v629, %v630
    %v707 = vunpack.c.l.s4 1983009808
    %v708 = vunpack.c.0.s8 %v707
    %v709 = vlaneseq
    %v710 = vshrl.u32 %v709, 7
    %v711 = vsub.s32 %v708, %v710
    %v712 = vrot.slane %v705, %v711
    %v713 = vcombine.low %v688, %v696
    %v715 = vunpack.c.l.s4 1934713408
    %v716 = vunpack.c.0.s8 %v715
    %v717 = vlaneseq
    %v718 = vshrl.u32 %v717, 7
    %v719 = vsub.s32 %v716, %v718
    %v720 = vrot.slane %v713, %v719
    %v721 = vcombine.low %v704, %v712
    %v723 = vunpack.c.l.s4 1934713408
    %v724 = vunpack.c.0.s8 %v723
    %v725 = vlaneseq
    %v726 = vshrl.u32 %v725, 7
    %v727 = vsub.s32 %v724, %v726
    %v728 = vrot.slane %v721, %v727
    %v729 = vcombine.low %v720, %v728
    %v730 = vcombine.high %v720, %v728
    %v733 = vpack.i.b16 %v729, %v679
    %v734 = vshrl.u32 %v679, 16
    %v735 = vshrl.u32 %v729, 16
    %v736 = vpack.i.b16 %v735, %v734
    %v739 = vpack.i.b16 %v730, %v680
    %v740 = vshrl.u32 %v680, 16
    %v741 = vshrl.u32 %v730, 16
    %v742 = vpack.i.b16 %v741, %v740
    %v743 = vpack.c.bf16 %v468, %v467
    %745 = vrot.lane.b32.xlu0 %v743, 96
    %v746 = vpop.permute.xlu0 %745
    %747 = vrot.lane.b32.xlu0 %v743, 64
    %v748 = vpop.permute.xlu0 %747
    %749 = vrot.lane.b32.xlu0 %v743, 32
    %v750 = vpop.permute.xlu0 %749
    %v753 = vpack.i.b16 %v746, %v743
    %v755 = vshrl.u32 %v743, 16
    %v756 = vshrl.u32 %v746, 16
    %v757 = vpack.i.b16 %v756, %v755
    %v761 = vpack.i.b16 %v750, %v748
    %v763 = vshrl.u32 %v748, 16
    %v764 = vshrl.u32 %v750, 16
    %v765 = vpack.i.b16 %v764, %v763
    %v767 = vcombine.high %v753, %v494
    %v769 = vunpack.c.l.s4 1983009808
    %v770 = vunpack.c.0.s8 %v769
    %v771 = vlaneseq
    %v772 = vshrl.u32 %v771, 7
    %v773 = vsub.s32 %v770, %v772
    %v774 = vrot.slane %v753, %v773
    %v776 = vunpack.c.l.s4 1983009808
    %v777 = vunpack.c.0.s8 %v776
    %v778 = vlaneseq
    %v779 = vshrl.u32 %v778, 7
    %v780 = vsub.s32 %v777, %v779
    %v781 = vrot.slane %v767, %v780
    %v782 = vcombine.high %v761, %v494
    %v784 = vunpack.c.l.s4 1983009808
    %v785 = vunpack.c.0.s8 %v784
    %v786 = vlaneseq
    %v787 = vshrl.u32 %v786, 7
    %v788 = vsub.s32 %v785, %v787
    %v789 = vrot.slane %v761, %v788
    %v791 = vunpack.c.l.s4 1983009808
    %v792 = vunpack.c.0.s8 %v791
    %v793 = vlaneseq
    %v794 = vshrl.u32 %v793, 7
    %v795 = vsub.s32 %v792, %v794
    %v796 = vrot.slane %v782, %v795
    %v797 = vcombine.low %v774, %v789
    %v798 = vcombine.high %v774, %v789
    %v800 = vunpack.c.l.s4 1934713408
    %v801 = vunpack.c.0.s8 %v800
    %v802 = vlaneseq
    %v803 = vshrl.u32 %v802, 7
    %v804 = vsub.s32 %v801, %v803
    %v805 = vrot.slane %v797, %v804
    %v807 = vunpack.c.l.s4 1934713408
    %v808 = vunpack.c.0.s8 %v807
    %v809 = vlaneseq
    %v810 = vshrl.u32 %v809, 7
    %v811 = vsub.s32 %v808, %v810
    %v812 = vrot.slane %v798, %v811
    %v813 = vcombine.low %v781, %v796
    %v814 = vcombine.high %v781, %v796
    %v816 = vunpack.c.l.s4 1934713408
    %v817 = vunpack.c.0.s8 %v816
    %v818 = vlaneseq
    %v819 = vshrl.u32 %v818, 7
    %v820 = vsub.s32 %v817, %v819
    %v821 = vrot.slane %v813, %v820
    %v823 = vunpack.c.l.s4 1934713408
    %v824 = vunpack.c.0.s8 %v823
    %v825 = vlaneseq
    %v826 = vshrl.u32 %v825, 7
    %v827 = vsub.s32 %v824, %v826
    %v828 = vrot.slane %v814, %v827
    %v829 = vcombine.high %v805, 0
    %v830 = vcombine.high %v812, 0
    %v831 = vcombine.high %v821, 0
    %v832 = vcombine.high %v828, 0
    %v833 = vcombine.high %v757, %v497
    %v835 = vunpack.c.l.s4 1983009808
    %v836 = vunpack.c.0.s8 %v835
    %v837 = vlaneseq
    %v838 = vshrl.u32 %v837, 7
    %v839 = vsub.s32 %v836, %v838
    %v840 = vrot.slane %v757, %v839
    %v842 = vunpack.c.l.s4 1983009808
    %v843 = vunpack.c.0.s8 %v842
    %v844 = vlaneseq
    %v845 = vshrl.u32 %v844, 7
    %v846 = vsub.s32 %v843, %v845
    %v847 = vrot.slane %v833, %v846
    %v848 = vcombine.high %v765, %v497
    %v850 = vunpack.c.l.s4 1983009808
    %v851 = vunpack.c.0.s8 %v850
    %v852 = vlaneseq
    %v853 = vshrl.u32 %v852, 7
    %v854 = vsub.s32 %v851, %v853
    %v855 = vrot.slane %v765, %v854
    %v857 = vunpack.c.l.s4 1983009808
    %v858 = vunpack.c.0.s8 %v857
    %v859 = vlaneseq
    %v860 = vshrl.u32 %v859, 7
    %v861 = vsub.s32 %v858, %v860
    %v862 = vrot.slane %v848, %v861
    %v863 = vcombine.low %v840, %v855
    %v864 = vcombine.high %v840, %v855
    %v866 = vunpack.c.l.s4 1934713408
    %v867 = vunpack.c.0.s8 %v866
    %v868 = vlaneseq
    %v869 = vshrl.u32 %v868, 7
    %v870 = vsub.s32 %v867, %v869
    %v871 = vrot.slane %v863, %v870
    %v873 = vunpack.c.l.s4 1934713408
    %v874 = vunpack.c.0.s8 %v873
    %v875 = vlaneseq
    %v876 = vshrl.u32 %v875, 7
    %v877 = vsub.s32 %v874, %v876
    %v878 = vrot.slane %v864, %v877
    %v879 = vcombine.low %v847, %v862
    %v880 = vcombine.high %v847, %v862
    %v882 = vunpack.c.l.s4 1934713408
    %v883 = vunpack.c.0.s8 %v882
    %v884 = vlaneseq
    %v885 = vshrl.u32 %v884, 7
    %v886 = vsub.s32 %v883, %v885
    %v887 = vrot.slane %v879, %v886
    %v889 = vunpack.c.l.s4 1934713408
    %v890 = vunpack.c.0.s8 %v889
    %v891 = vlaneseq
    %v892 = vshrl.u32 %v891, 7
    %v893 = vsub.s32 %v890, %v892
    %v894 = vrot.slane %v880, %v893
    %v895 = vcombine.high %v871, 0
    %v896 = vcombine.high %v878, 0
    %v897 = vcombine.high %v887, 0
    %v898 = vcombine.high %v894, 0
    %v899 = vcombine.low %v805, %v812
    %v901 = vunpack.c.l.s4 1983009808
    %v902 = vunpack.c.0.s8 %v901
    %v903 = vlaneseq
    %v904 = vshrl.u32 %v903, 7
    %v905 = vsub.s32 %v902, %v904
    %v906 = vrot.slane %v899, %v905
    %v907 = vcombine.low %v829, %v830
    %v909 = vunpack.c.l.s4 1983009808
    %v910 = vunpack.c.0.s8 %v909
    %v911 = vlaneseq
    %v912 = vshrl.u32 %v911, 7
    %v913 = vsub.s32 %v910, %v912
    %v914 = vrot.slane %v907, %v913
    %v915 = vcombine.low %v821, %v828
    %v917 = vunpack.c.l.s4 1983009808
    %v918 = vunpack.c.0.s8 %v917
    %v919 = vlaneseq
    %v920 = vshrl.u32 %v919, 7
    %v921 = vsub.s32 %v918, %v920
    %v922 = vrot.slane %v915, %v921
    %v923 = vcombine.low %v831, %v832
    %v925 = vunpack.c.l.s4 1983009808
    %v926 = vunpack.c.0.s8 %v925
    %v927 = vlaneseq
    %v928 = vshrl.u32 %v927, 7
    %v929 = vsub.s32 %v926, %v928
    %v930 = vrot.slane %v923, %v929
    %v931 = vcombine.low %v906, %v914
    %v933 = vunpack.c.l.s4 1934713408
    %v934 = vunpack.c.0.s8 %v933
    %v935 = vlaneseq
    %v936 = vshrl.u32 %v935, 7
    %v937 = vsub.s32 %v934, %v936
    %v938 = vrot.slane %v931, %v937
    %v939 = vcombine.low %v922, %v930
    %v941 = vunpack.c.l.s4 1934713408
    %v942 = vunpack.c.0.s8 %v941
    %v943 = vlaneseq
    %v944 = vshrl.u32 %v943, 7
    %v945 = vsub.s32 %v942, %v944
    %v946 = vrot.slane %v939, %v945
    %v947 = vcombine.low %v938, %v946
    %v948 = vcombine.high %v938, %v946
    %v949 = vcombine.low %v871, %v878
    %v951 = vunpack.c.l.s4 1983009808
    %v952 = vunpack.c.0.s8 %v951
    %v953 = vlaneseq
    %v954 = vshrl.u32 %v953, 7
    %v955 = vsub.s32 %v952, %v954
    %v956 = vrot.slane %v949, %v955
    %v957 = vcombine.low %v895, %v896
    %v959 = vunpack.c.l.s4 1983009808
    %v960 = vunpack.c.0.s8 %v959
    %v961 = vlaneseq
    %v962 = vshrl.u32 %v961, 7
    %v963 = vsub.s32 %v960, %v962
    %v964 = vrot.slane %v957, %v963
    %v965 = vcombine.low %v887, %v894
    %v967 = vunpack.c.l.s4 1983009808
    %v968 = vunpack.c.0.s8 %v967
    %v969 = vlaneseq
    %v970 = vshrl.u32 %v969, 7
    %v971 = vsub.s32 %v968, %v970
    %v972 = vrot.slane %v965, %v971
    %v973 = vcombine.low %v897, %v898
    %v975 = vunpack.c.l.s4 1983009808
    %v976 = vunpack.c.0.s8 %v975
    %v977 = vlaneseq
    %v978 = vshrl.u32 %v977, 7
    %v979 = vsub.s32 %v976, %v978
    %v980 = vrot.slane %v973, %v979
    %v981 = vcombine.low %v956, %v964
    %v983 = vunpack.c.l.s4 1934713408
    %v984 = vunpack.c.0.s8 %v983
    %v985 = vlaneseq
    %v986 = vshrl.u32 %v985, 7
    %v987 = vsub.s32 %v984, %v986
    %v988 = vrot.slane %v981, %v987
    %v989 = vcombine.low %v972, %v980
    %v991 = vunpack.c.l.s4 1934713408
    %v992 = vunpack.c.0.s8 %v991
    %v993 = vlaneseq
    %v994 = vshrl.u32 %v993, 7
    %v995 = vsub.s32 %v992, %v994
    %v996 = vrot.slane %v989, %v995
    %v997 = vcombine.low %v988, %v996
    %v998 = vcombine.high %v988, %v996
    %v1001 = vpack.i.b16 %v997, %v947
    %v1002 = vshrl.u32 %v947, 16
    %v1003 = vshrl.u32 %v997, 16
    %v1004 = vpack.i.b16 %v1003, %v1002
    %v1007 = vpack.i.b16 %v998, %v948
    %v1008 = vshrl.u32 %v948, 16
    %v1009 = vshrl.u32 %v998, 16
    %v1010 = vpack.i.b16 %v1009, %v1008
    %v1011 = vpack.c.bf16 %v440, %v437
    %1013 = vrot.lane.b32.xlu0 %v1011, 96
    %v1014 = vpop.permute.xlu0 %1013
    %1015 = vrot.lane.b32.xlu0 %v1011, 64
    %v1016 = vpop.permute.xlu0 %1015
    %1017 = vrot.lane.b32.xlu0 %v1011, 32
    %v1018 = vpop.permute.xlu0 %1017
    %v1021 = vpack.i.b16 %v1014, %v1011
    %v1023 = vshrl.u32 %v1011, 16
    %v1024 = vshrl.u32 %v1014, 16
    %v1025 = vpack.i.b16 %v1024, %v1023
    %v1029 = vpack.i.b16 %v1018, %v1016
    %v1031 = vshrl.u32 %v1016, 16
    %v1032 = vshrl.u32 %v1018, 16
    %v1033 = vpack.i.b16 %v1032, %v1031
    %v1035 = vcombine.high %v1021, %v494
    %v1037 = vunpack.c.l.s4 1983009808
    %v1038 = vunpack.c.0.s8 %v1037
    %v1039 = vlaneseq
    %v1040 = vshrl.u32 %v1039, 7
    %v1041 = vsub.s32 %v1038, %v1040
    %v1042 = vrot.slane %v1021, %v1041
    %v1044 = vunpack.c.l.s4 1983009808
    %v1045 = vunpack.c.0.s8 %v1044
    %v1046 = vlaneseq
    %v1047 = vshrl.u32 %v1046, 7
    %v1048 = vsub.s32 %v1045, %v1047
    %v1049 = vrot.slane %v1035, %v1048
    %v1050 = vcombine.high %v1029, %v494
    %v1052 = vunpack.c.l.s4 1983009808
    %v1053 = vunpack.c.0.s8 %v1052
    %v1054 = vlaneseq
    %v1055 = vshrl.u32 %v1054, 7
    %v1056 = vsub.s32 %v1053, %v1055
    %v1057 = vrot.slane %v1029, %v1056
    %v1059 = vunpack.c.l.s4 1983009808
    %v1060 = vunpack.c.0.s8 %v1059
    %v1061 = vlaneseq
    %v1062 = vshrl.u32 %v1061, 7
    %v1063 = vsub.s32 %v1060, %v1062
    %v1064 = vrot.slane %v1050, %v1063
    %v1065 = vcombine.low %v1042, %v1057
    %v1066 = vcombine.high %v1042, %v1057
    %v1068 = vunpack.c.l.s4 1934713408
    %v1069 = vunpack.c.0.s8 %v1068
    %v1070 = vlaneseq
    %v1071 = vshrl.u32 %v1070, 7
    %v1072 = vsub.s32 %v1069, %v1071
    %v1073 = vrot.slane %v1065, %v1072
    %v1075 = vunpack.c.l.s4 1934713408
    %v1076 = vunpack.c.0.s8 %v1075
    %v1077 = vlaneseq
    %v1078 = vshrl.u32 %v1077, 7
    %v1079 = vsub.s32 %v1076, %v1078
    %v1080 = vrot.slane %v1066, %v1079
    %v1081 = vcombine.low %v1049, %v1064
    %v1082 = vcombine.high %v1049, %v1064
    %v1084 = vunpack.c.l.s4 1934713408
    %v1085 = vunpack.c.0.s8 %v1084
    %v1086 = vlaneseq
    %v1087 = vshrl.u32 %v1086, 7
    %v1088 = vsub.s32 %v1085, %v1087
    %v1089 = vrot.slane %v1081, %v1088
    %v1091 = vunpack.c.l.s4 1934713408
    %v1092 = vunpack.c.0.s8 %v1091
    %v1093 = vlaneseq
    %v1094 = vshrl.u32 %v1093, 7
    %v1095 = vsub.s32 %v1092, %v1094
    %v1096 = vrot.slane %v1082, %v1095
    %v1097 = vcombine.high %v1073, 0
    %v1098 = vcombine.high %v1080, 0
    %v1099 = vcombine.high %v1089, 0
    %v1100 = vcombine.high %v1096, 0
    %v1101 = vcombine.high %v1025, %v497
    %v1103 = vunpack.c.l.s4 1983009808
    %v1104 = vunpack.c.0.s8 %v1103
    %v1105 = vlaneseq
    %v1106 = vshrl.u32 %v1105, 7
    %v1107 = vsub.s32 %v1104, %v1106
    %v1108 = vrot.slane %v1025, %v1107
    %v1110 = vunpack.c.l.s4 1983009808
    %v1111 = vunpack.c.0.s8 %v1110
    %v1112 = vlaneseq
    %v1113 = vshrl.u32 %v1112, 7
    %v1114 = vsub.s32 %v1111, %v1113
    %v1115 = vrot.slane %v1101, %v1114
    %v1116 = vcombine.high %v1033, %v497
    %v1118 = vunpack.c.l.s4 1983009808
    %v1119 = vunpack.c.0.s8 %v1118
    %v1120 = vlaneseq
    %v1121 = vshrl.u32 %v1120, 7
    %v1122 = vsub.s32 %v1119, %v1121
    %v1123 = vrot.slane %v1033, %v1122
    %v1125 = vunpack.c.l.s4 1983009808
    %v1126 = vunpack.c.0.s8 %v1125
    %v1127 = vlaneseq
    %v1128 = vshrl.u32 %v1127, 7
    %v1129 = vsub.s32 %v1126, %v1128
    %v1130 = vrot.slane %v1116, %v1129
    %v1131 = vcombine.low %v1108, %v1123
    %v1132 = vcombine.high %v1108, %v1123
    %v1134 = vunpack.c.l.s4 1934713408
    %v1135 = vunpack.c.0.s8 %v1134
    %v1136 = vlaneseq
    %v1137 = vshrl.u32 %v1136, 7
    %v1138 = vsub.s32 %v1135, %v1137
    %v1139 = vrot.slane %v1131, %v1138
    %v1141 = vunpack.c.l.s4 1934713408
    %v1142 = vunpack.c.0.s8 %v1141
    %v1143 = vlaneseq
    %v1144 = vshrl.u32 %v1143, 7
    %v1145 = vsub.s32 %v1142, %v1144
    %v1146 = vrot.slane %v1132, %v1145
    %v1147 = vcombine.low %v1115, %v1130
    %v1148 = vcombine.high %v1115, %v1130
    %v1150 = vunpack.c.l.s4 1934713408
    %v1151 = vunpack.c.0.s8 %v1150
    %v1152 = vlaneseq
    %v1153 = vshrl.u32 %v1152, 7
    %v1154 = vsub.s32 %v1151, %v1153
    %v1155 = vrot.slane %v1147, %v1154
    %v1157 = vunpack.c.l.s4 1934713408
    %v1158 = vunpack.c.0.s8 %v1157
    %v1159 = vlaneseq
    %v1160 = vshrl.u32 %v1159, 7
    %v1161 = vsub.s32 %v1158, %v1160
    %v1162 = vrot.slane %v1148, %v1161
    %v1163 = vcombine.high %v1139, 0
    %v1164 = vcombine.high %v1146, 0
    %v1165 = vcombine.high %v1155, 0
    %v1166 = vcombine.high %v1162, 0
    %v1167 = vcombine.low %v1073, %v1080
    %v1169 = vunpack.c.l.s4 1983009808
    %v1170 = vunpack.c.0.s8 %v1169
    %v1171 = vlaneseq
    %v1172 = vshrl.u32 %v1171, 7
    %v1173 = vsub.s32 %v1170, %v1172
    %v1174 = vrot.slane %v1167, %v1173
    %v1175 = vcombine.low %v1097, %v1098
    %v1177 = vunpack.c.l.s4 1983009808
    %v1178 = vunpack.c.0.s8 %v1177
    %v1179 = vlaneseq
    %v1180 = vshrl.u32 %v1179, 7
    %v1181 = vsub.s32 %v1178, %v1180
    %v1182 = vrot.slane %v1175, %v1181
    %v1183 = vcombine.low %v1089, %v1096
    %v1185 = vunpack.c.l.s4 1983009808
    %v1186 = vunpack.c.0.s8 %v1185
    %v1187 = vlaneseq
    %v1188 = vshrl.u32 %v1187, 7
    %v1189 = vsub.s32 %v1186, %v1188
    %v1190 = vrot.slane %v1183, %v1189
    %v1191 = vcombine.low %v1099, %v1100
    %v1193 = vunpack.c.l.s4 1983009808
    %v1194 = vunpack.c.0.s8 %v1193
    %v1195 = vlaneseq
    %v1196 = vshrl.u32 %v1195, 7
    %v1197 = vsub.s32 %v1194, %v1196
    %v1198 = vrot.slane %v1191, %v1197
    %v1199 = vcombine.low %v1174, %v1182
    %v1201 = vunpack.c.l.s4 1934713408
    %v1202 = vunpack.c.0.s8 %v1201
    %v1203 = vlaneseq
    %v1204 = vshrl.u32 %v1203, 7
    %v1205 = vsub.s32 %v1202, %v1204
    %v1206 = vrot.slane %v1199, %v1205
    %v1207 = vcombine.low %v1190, %v1198
    %v1209 = vunpack.c.l.s4 1934713408
    %v1210 = vunpack.c.0.s8 %v1209
    %v1211 = vlaneseq
    %v1212 = vshrl.u32 %v1211, 7
    %v1213 = vsub.s32 %v1210, %v1212
    %v1214 = vrot.slane %v1207, %v1213
    %v1215 = vcombine.low %v1206, %v1214
    %v1216 = vcombine.high %v1206, %v1214
    %v1217 = vcombine.low %v1139, %v1146
    %v1219 = vunpack.c.l.s4 1983009808
    %v1220 = vunpack.c.0.s8 %v1219
    %v1221 = vlaneseq
    %v1222 = vshrl.u32 %v1221, 7
    %v1223 = vsub.s32 %v1220, %v1222
    %v1224 = vrot.slane %v1217, %v1223
    %v1225 = vcombine.low %v1163, %v1164
    %v1227 = vunpack.c.l.s4 1983009808
    %v1228 = vunpack.c.0.s8 %v1227
    %v1229 = vlaneseq
    %v1230 = vshrl.u32 %v1229, 7
    %v1231 = vsub.s32 %v1228, %v1230
    %v1232 = vrot.slane %v1225, %v1231
    %v1233 = vcombine.low %v1155, %v1162
    %v1235 = vunpack.c.l.s4 1983009808
    %v1236 = vunpack.c.0.s8 %v1235
    %v1237 = vlaneseq
    %v1238 = vshrl.u32 %v1237, 7
    %v1239 = vsub.s32 %v1236, %v1238
    %v1240 = vrot.slane %v1233, %v1239
    %v1241 = vcombine.low %v1165, %v1166
    %v1243 = vunpack.c.l.s4 1983009808
    %v1244 = vunpack.c.0.s8 %v1243
    %v1245 = vlaneseq
    %v1246 = vshrl.u32 %v1245, 7
    %v1247 = vsub.s32 %v1244, %v1246
    %v1248 = vrot.slane %v1241, %v1247
    %v1249 = vcombine.low %v1224, %v1232
    %v1251 = vunpack.c.l.s4 1934713408
    %v1252 = vunpack.c.0.s8 %v1251
    %v1253 = vlaneseq
    %v1254 = vshrl.u32 %v1253, 7
    %v1255 = vsub.s32 %v1252, %v1254
    %v1256 = vrot.slane %v1249, %v1255
    %v1257 = vcombine.low %v1240, %v1248
    %v1259 = vunpack.c.l.s4 1934713408
    %v1260 = vunpack.c.0.s8 %v1259
    %v1261 = vlaneseq
    %v1262 = vshrl.u32 %v1261, 7
    %v1263 = vsub.s32 %v1260, %v1262
    %v1264 = vrot.slane %v1257, %v1263
    %v1265 = vcombine.low %v1256, %v1264
    %v1266 = vcombine.high %v1256, %v1264
    %v1269 = vpack.i.b16 %v1265, %v1215
    %v1271 = vshrl.u32 %v1215, 16
    %v1272 = vshrl.u32 %v1265, 16
    %v1273 = vpack.i.b16 %v1272, %v1271
    %v1277 = vpack.i.b16 %v1266, %v1216
    %v1279 = vshrl.u32 %v1216, 16
    %v1280 = vshrl.u32 %v1266, 16
    %v1281 = vpack.i.b16 %v1280, %v1279
    %vm1283 = vcmask 261120
    %v1285 = vsel %vm1283, %v733, 0
    %v1288 = vsel %vm1283, %v1001, 0
    %1290 = vmatprep.subr.bf16.mxu0 0
    %1291 = vmatpush1.bf16.xpose.msra.mxu0 0
    %1292 = vmatprep.subr.bf16.mxu0 0
    %1293 = vmatpush1.bf16.xpose.msra.mxu0 0
    %1294 = vmatprep.subr.bf16.mxu0 0
    %1295 = vmatpush1.bf16.xpose.msra.mxu0 0
    %1296 = vmatprep.subr.bf16.mxu0 0
    %1297 = vmatpush1.bf16.xpose.msra.mxu0 0
    %1298 = vmatprep.subr.bf16.mxu0 0
    %1299 = vmatpush1.bf16.xpose.msra.mxu0 0
    %1300 = vmatprep.subr.bf16.mxu0 0
    %1301 = vmatpush1.bf16.xpose.msra.mxu0 0
    %1302 = vmatprep.subr.bf16.mxu0 0
    %1303 = vmatpush1.bf16.xpose.msra.mxu0 0
    %1304 = vmatprep.subr.bf16.mxu0 0
    %1305 = vmatpush1.bf16.xpose.msra.mxu0 %v1288
    %1306 = vmatprep.subr.bf16.mxu0 0
    %1307 = vmatpush2.bf16.xpose.msra.mxu0 0
    %1308 = vmatprep.subr.bf16.mxu0 0
    %1309 = vmatpush2.bf16.xpose.msra.mxu0 0
    %1310 = vmatprep.subr.bf16.mxu0 0
    %1311 = vmatpush2.bf16.xpose.msra.mxu0 0
    %1312 = vmatprep.subr.bf16.mxu0 0
    %1313 = vmatpush2.bf16.xpose.msra.mxu0 0
    %1314 = vmatprep.subr.bf16.mxu0 0
    %1315 = vmatpush2.bf16.xpose.msra.mxu0 0
    %1316 = vmatprep.subr.bf16.mxu0 0
    %1317 = vmatpush2.bf16.xpose.msra.mxu0 0
    %1318 = vmatprep.subr.bf16.mxu0 0
    %1319 = vmatpush2.bf16.xpose.msra.mxu0 0
    %1320 = vmatprep.subr.bf16.mxu0 0
    %1321 = vmatpush2.bf16.xpose.msra.mxu0 0
    %1322 = vmatprep.mubr.bf16.mxu0 0
    %1323 = vmatmul.mubr.bf16.gmra.mxu0 %v1285
    %v1324 = vpop.f32.mrf.mxu0
    %v1325 = vadd.f32 0.0, %v1324
    %v1326 = vpop.f32.mrf.mxu0
    %v1327 = vpop.f32.mrf.mxu0
    %v1328 = vadd.f32 0.0, %v1327
    %v1329 = vpop.f32.mrf.mxu0
    %1330 = vdwg.mxu0
    %v1332 = vsel %vm1283, %v736, 0
    %v1335 = vsel %vm1283, %v1004, 0
    %1337 = vmatprep.subr.bf16.mxu0 0
    %1338 = vmatpush1.bf16.xpose.msra.mxu0 0
    %1339 = vmatprep.subr.bf16.mxu0 0
    %1340 = vmatpush1.bf16.xpose.msra.mxu0 0
    %1341 = vmatprep.subr.bf16.mxu0 0
    %1342 = vmatpush1.bf16.xpose.msra.mxu0 0
    %1343 = vmatprep.subr.bf16.mxu0 0
    %1344 = vmatpush1.bf16.xpose.msra.mxu0 0
    %1345 = vmatprep.subr.bf16.mxu0 0
    %1346 = vmatpush1.bf16.xpose.msra.mxu0 0
    %1347 = vmatprep.subr.bf16.mxu0 0
    %1348 = vmatpush1.bf16.xpose.msra.mxu0 0
    %1349 = vmatprep.subr.bf16.mxu0 0
    %1350 = vmatpush1.bf16.xpose.msra.mxu0 0
    %1351 = vmatprep.subr.bf16.mxu0 0
    %1352 = vmatpush1.bf16.xpose.msra.mxu0 %v1335
    %1353 = vmatprep.subr.bf16.mxu0 0
    %1354 = vmatpush2.bf16.xpose.msra.mxu0 0
    %1355 = vmatprep.subr.bf16.mxu0 0
    %1356 = vmatpush2.bf16.xpose.msra.mxu0 0
    %1357 = vmatprep.subr.bf16.mxu0 0
    %1358 = vmatpush2.bf16.xpose.msra.mxu0 0
    %1359 = vmatprep.subr.bf16.mxu0 0
    %1360 = vmatpush2.bf16.xpose.msra.mxu0 0
    %1361 = vmatprep.subr.bf16.mxu0 0
    %1362 = vmatpush2.bf16.xpose.msra.mxu0 0
    %1363 = vmatprep.subr.bf16.mxu0 0
    %1364 = vmatpush2.bf16.xpose.msra.mxu0 0
    %1365 = vmatprep.subr.bf16.mxu0 0
    %1366 = vmatpush2.bf16.xpose.msra.mxu0 0
    %1367 = vmatprep.subr.bf16.mxu0 0
    %1368 = vmatpush2.bf16.xpose.msra.mxu0 0
    %1369 = vmatprep.mubr.bf16.mxu0 0
    %1370 = vmatmul.mubr.bf16.gmra.mxu0 %v1332
    %v1371 = vpop.f32.mrf.mxu0
    %v1372 = vadd.f32 0.0, %v1371
    %v1373 = vpop.f32.mrf.mxu0
    %v1374 = vpop.f32.mrf.mxu0
    %v1375 = vadd.f32 0.0, %v1374
    %v1376 = vpop.f32.mrf.mxu0
    %1377 = vdwg.mxu0
    %v1379 = vsel %vm1283, %v739, 0
    %v1382 = vsel %vm1283, %v1007, 0
    %1384 = vmatprep.subr.bf16.mxu0 0
    %1385 = vmatpush1.bf16.xpose.msra.mxu0 0
    %1386 = vmatprep.subr.bf16.mxu0 0
    %1387 = vmatpush1.bf16.xpose.msra.mxu0 0
    %1388 = vmatprep.subr.bf16.mxu0 0
    %1389 = vmatpush1.bf16.xpose.msra.mxu0 0
    %1390 = vmatprep.subr.bf16.mxu0 0
    %1391 = vmatpush1.bf16.xpose.msra.mxu0 0
    %1392 = vmatprep.subr.bf16.mxu0 0
    %1393 = vmatpush1.bf16.xpose.msra.mxu0 0
    %1394 = vmatprep.subr.bf16.mxu0 0
    %1395 = vmatpush1.bf16.xpose.msra.mxu0 0
    %1396 = vmatprep.subr.bf16.mxu0 0
    %1397 = vmatpush1.bf16.xpose.msra.mxu0 0
    %1398 = vmatprep.subr.bf16.mxu0 0
    %1399 = vmatpush1.bf16.xpose.msra.mxu0 %v1382
    %1400 = vmatprep.subr.bf16.mxu0 0
    %1401 = vmatpush2.bf16.xpose.msra.mxu0 0
    %1402 = vmatprep.subr.bf16.mxu0 0
    %1403 = vmatpush2.bf16.xpose.msra.mxu0 0
    %1404 = vmatprep.subr.bf16.mxu0 0
    %1405 = vmatpush2.bf16.xpose.msra.mxu0 0
    %1406 = vmatprep.subr.bf16.mxu0 0
    %1407 = vmatpush2.bf16.xpose.msra.mxu0 0
    %1408 = vmatprep.subr.bf16.mxu0 0
    %1409 = vmatpush2.bf16.xpose.msra.mxu0 0
    %1410 = vmatprep.subr.bf16.mxu0 0
    %1411 = vmatpush2.bf16.xpose.msra.mxu0 0
    %1412 = vmatprep.subr.bf16.mxu0 0
    %1413 = vmatpush2.bf16.xpose.msra.mxu0 0
    %1414 = vmatprep.subr.bf16.mxu0 0
    %1415 = vmatpush2.bf16.xpose.msra.mxu0 0
    %1416 = vmatprep.mubr.bf16.mxu0 0
    %1417 = vmatmul.mubr.bf16.gmra.mxu0 %v1379
    %v1418 = vpop.f32.mrf.mxu0
    %v1419 = vadd.f32 0.0, %v1418
    %v1420 = vpop.f32.mrf.mxu0
    %v1421 = vpop.f32.mrf.mxu0
    %v1422 = vadd.f32 0.0, %v1421
    %v1423 = vpop.f32.mrf.mxu0
    %1424 = vdwg.mxu0
    %v1426 = vsel %vm1283, %v742, 0
    %v1429 = vsel %vm1283, %v1010, 0
    %1431 = vmatprep.subr.bf16.mxu0 0
    %1432 = vmatpush1.bf16.xpose.msra.mxu0 0
    %1433 = vmatprep.subr.bf16.mxu0 0
    %1434 = vmatpush1.bf16.xpose.msra.mxu0 0
    %1435 = vmatprep.subr.bf16.mxu0 0
    %1436 = vmatpush1.bf16.xpose.msra.mxu0 0
    %1437 = vmatprep.subr.bf16.mxu0 0
    %1438 = vmatpush1.bf16.xpose.msra.mxu0 0
    %1439 = vmatprep.subr.bf16.mxu0 0
    %1440 = vmatpush1.bf16.xpose.msra.mxu0 0
    %1441 = vmatprep.subr.bf16.mxu0 0
    %1442 = vmatpush1.bf16.xpose.msra.mxu0 0
    %1443 = vmatprep.subr.bf16.mxu0 0
    %1444 = vmatpush1.bf16.xpose.msra.mxu0 0
    %1445 = vmatprep.subr.bf16.mxu0 0
    %1446 = vmatpush1.bf16.xpose.msra.mxu0 %v1429
    %1447 = vmatprep.subr.bf16.mxu0 0
    %1448 = vmatpush2.bf16.xpose.msra.mxu0 0
    %1449 = vmatprep.subr.bf16.mxu0 0
    %1450 = vmatpush2.bf16.xpose.msra.mxu0 0
    %1451 = vmatprep.subr.bf16.mxu0 0
    %1452 = vmatpush2.bf16.xpose.msra.mxu0 0
    %1453 = vmatprep.subr.bf16.mxu0 0
    %1454 = vmatpush2.bf16.xpose.msra.mxu0 0
    %1455 = vmatprep.subr.bf16.mxu0 0
    %1456 = vmatpush2.bf16.xpose.msra.mxu0 0
    %1457 = vmatprep.subr.bf16.mxu0 0
    %1458 = vmatpush2.bf16.xpose.msra.mxu0 0
    %1459 = vmatprep.subr.bf16.mxu0 0
    %1460 = vmatpush2.bf16.xpose.msra.mxu0 0
    %1461 = vmatprep.subr.bf16.mxu0 0
    %1462 = vmatpush2.bf16.xpose.msra.mxu0 0
    %1463 = vmatprep.mubr.bf16.mxu0 0
    %1464 = vmatmul.mubr.bf16.gmra.mxu0 %v1426
    %v1465 = vpop.f32.mrf.mxu0
    %v1466 = vadd.f32 0.0, %v1465
    %v1467 = vpop.f32.mrf.mxu0
    %v1468 = vpop.f32.mrf.mxu0
    %v1469 = vadd.f32 0.0, %v1468
    %v1470 = vpop.f32.mrf.mxu0
    %1471 = vdwg.mxu0
    %vm1472 = vcmask 130048
    %v1473 = vsel %vm1472, %v1325, -inf
    %1474 = vmax.xlane.f32.xlu0 %v1473
    %v1475 = vpop.xlane.xlu0 %1474
    %v1476 = vsel %vm1472, %v1328, -inf
    %1477 = vmax.xlane.f32.xlu0 %v1476
    %v1478 = vpop.xlane.xlu0 %1477
    %v1479 = vsel %vm1472, %v1372, -inf
    %1480 = vmax.xlane.f32.xlu0 %v1479
    %v1481 = vpop.xlane.xlu0 %1480
    %v1482 = vsel %vm1472, %v1375, -inf
    %1483 = vmax.xlane.f32.xlu0 %v1482
    %v1484 = vpop.xlane.xlu0 %1483
    %v1485 = vsel %vm1472, %v1419, -inf
    %1486 = vmax.xlane.f32.xlu0 %v1485
    %v1487 = vpop.xlane.xlu0 %1486
    %v1488 = vsel %vm1472, %v1422, -inf
    %1489 = vmax.xlane.f32.xlu0 %v1488
    %v1490 = vpop.xlane.xlu0 %1489
    %v1491 = vsel %vm1472, %v1466, -inf
    %1492 = vmax.xlane.f32.xlu0 %v1491
    %v1493 = vpop.xlane.xlu0 %1492
    %v1494 = vsel %vm1472, %v1469, -inf
    %1495 = vmax.xlane.f32.xlu0 %v1494
    %v1496 = vpop.xlane.xlu0 %1495
    %v1497 = vsub.f32 %v1325, %v1475
    %v1498 = vsub.f32 %v1328, %v1478
    %v1499 = vsub.f32 %v1372, %v1481
    %v1500 = vsub.f32 %v1375, %v1484
    %v1501 = vsub.f32 %v1419, %v1487
    %v1502 = vsub.f32 %v1422, %v1490
    %v1503 = vsub.f32 %v1466, %v1493
    %v1504 = vsub.f32 %v1469, %v1496
    %v1505 = vmul.f32 %v1497, 1.442695
    %v1506 = vpow.pop %v1505
    %v1507 = vmul.f32 %v1498, 1.442695
    %v1508 = vpow.pop %v1507
    %v1509 = vmul.f32 %v1499, 1.442695
    %v1510 = vpow.pop %v1509
    %v1511 = vmul.f32 %v1500, 1.442695
    %v1512 = vpow.pop %v1511
    %v1513 = vmul.f32 %v1501, 1.442695
    %v1514 = vpow.pop %v1513
    %v1515 = vmul.f32 %v1502, 1.442695
    %v1516 = vpow.pop %v1515
    %v1517 = vmul.f32 %v1503, 1.442695
    %v1518 = vpow.pop %v1517
    %v1519 = vmul.f32 %v1504, 1.442695
    %v1520 = vpow.pop %v1519
    %v1521 = vsel %vm1472, %v1506, 0.0
    %1522 = vadd.xlane.f32.xlu0 %v1521
    %v1523 = vpop.xlane.xlu0 %1522
    %v1524 = vsel %vm1472, %v1508, 0.0
    %1525 = vadd.xlane.f32.xlu0 %v1524
    %v1526 = vpop.xlane.xlu0 %1525
    %v1527 = vsel %vm1472, %v1510, 0.0
    %1528 = vadd.xlane.f32.xlu0 %v1527
    %v1529 = vpop.xlane.xlu0 %1528
    %v1530 = vsel %vm1472, %v1512, 0.0
    %1531 = vadd.xlane.f32.xlu0 %v1530
    %v1532 = vpop.xlane.xlu0 %1531
    %v1533 = vsel %vm1472, %v1514, 0.0
    %1534 = vadd.xlane.f32.xlu0 %v1533
    %v1535 = vpop.xlane.xlu0 %1534
    %v1536 = vsel %vm1472, %v1516, 0.0
    %1537 = vadd.xlane.f32.xlu0 %v1536
    %v1538 = vpop.xlane.xlu0 %1537
    %v1539 = vsel %vm1472, %v1518, 0.0
    %1540 = vadd.xlane.f32.xlu0 %v1539
    %v1541 = vpop.xlane.xlu0 %1540
    %v1542 = vsel %vm1472, %v1520, 0.0
    %1543 = vadd.xlane.f32.xlu0 %v1542
    %v1544 = vpop.xlane.xlu0 %1543
    %v1545 = vrcp.pop %v1523
    %v1546 = vrcp.pop %v1526
    %v1547 = vrcp.pop %v1529
    %v1548 = vrcp.pop %v1532
    %v1549 = vrcp.pop %v1535
    %v1550 = vrcp.pop %v1538
    %v1551 = vrcp.pop %v1541
    %v1552 = vrcp.pop %v1544
    %v1553 = vmul.f32 %v1506, %v1545
    %v1554 = vmul.f32 %v1508, %v1546
    %v1555 = vmul.f32 %v1510, %v1547
    %v1556 = vmul.f32 %v1512, %v1548
    %v1557 = vmul.f32 %v1514, %v1549
    %v1558 = vmul.f32 %v1516, %v1550
    %v1559 = vmul.f32 %v1518, %v1551
    %v1560 = vmul.f32 %v1520, %v1552
    %v1561 = vpack.c.bf16 %v1554, %v1553
    %v1562 = vpack.c.bf16 %v1556, %v1555
    %v1563 = vpack.c.bf16 %v1558, %v1557
    %v1564 = vpack.c.bf16 %v1560, %v1559
    %v1566 = vsel %vm1472, %v1561, 0
    %1568 = vmatprep.subr.bf16.mxu0 0
    %1569 = vmatpush1.bf16.msra.mxu0 0
    %1570 = vmatprep.subr.bf16.mxu0 0
    %1571 = vmatpush1.bf16.msra.mxu0 0
    %1572 = vmatprep.subr.bf16.mxu0 0
    %1573 = vmatpush1.bf16.msra.mxu0 0
    %1574 = vmatprep.subr.bf16.mxu0 0
    %1575 = vmatpush1.bf16.msra.mxu0 0
    %1576 = vmatprep.subr.bf16.mxu0 0
    %1577 = vmatpush1.bf16.msra.mxu0 0
    %1578 = vmatprep.subr.bf16.mxu0 0
    %1579 = vmatpush1.bf16.msra.mxu0 0
    %1580 = vmatprep.subr.bf16.mxu0 0
    %1581 = vmatpush1.bf16.msra.mxu0 0
    %1582 = vmatprep.subr.bf16.mxu0 0
    %1583 = vmatpush1.bf16.msra.mxu0 %v1269
    %1584 = vmatprep.subr.bf16.mxu0 0
    %1585 = vmatpush2.bf16.msra.mxu0 0
    %1586 = vmatprep.subr.bf16.mxu0 0
    %1587 = vmatpush2.bf16.msra.mxu0 0
    %1588 = vmatprep.subr.bf16.mxu0 0
    %1589 = vmatpush2.bf16.msra.mxu0 0
    %1590 = vmatprep.subr.bf16.mxu0 0
    %1591 = vmatpush2.bf16.msra.mxu0 0
    %1592 = vmatprep.subr.bf16.mxu0 0
    %1593 = vmatpush2.bf16.msra.mxu0 0
    %1594 = vmatprep.subr.bf16.mxu0 0
    %1595 = vmatpush2.bf16.msra.mxu0 0
    %1596 = vmatprep.subr.bf16.mxu0 0
    %1597 = vmatpush2.bf16.msra.mxu0 0
    %1598 = vmatprep.subr.bf16.mxu0 0
    %1599 = vmatpush2.bf16.msra.mxu0 0
    %1600 = vmatprep.mubr.bf16.mxu0 0
    %1601 = vmatmul.mubr.bf16.gmra.mxu0 %v1566
    %v1602 = vpop.f32.mrf.mxu0
    %v1603 = vadd.f32 0.0, %v1602
    %v1604 = vpop.f32.mrf.mxu0
    %v1605 = vpop.f32.mrf.mxu0
    %v1606 = vadd.f32 0.0, %v1605
    %v1607 = vpop.f32.mrf.mxu0
    %1608 = vdwg.mxu0
    %v1610 = vsel %vm1472, %v1562, 0
    %1612 = vmatprep.subr.bf16.mxu0 0
    %1613 = vmatpush1.bf16.msra.mxu0 0
    %1614 = vmatprep.subr.bf16.mxu0 0
    %1615 = vmatpush1.bf16.msra.mxu0 0
    %1616 = vmatprep.subr.bf16.mxu0 0
    %1617 = vmatpush1.bf16.msra.mxu0 0
    %1618 = vmatprep.subr.bf16.mxu0 0
    %1619 = vmatpush1.bf16.msra.mxu0 0
    %1620 = vmatprep.subr.bf16.mxu0 0
    %1621 = vmatpush1.bf16.msra.mxu0 0
    %1622 = vmatprep.subr.bf16.mxu0 0
    %1623 = vmatpush1.bf16.msra.mxu0 0
    %1624 = vmatprep.subr.bf16.mxu0 0
    %1625 = vmatpush1.bf16.msra.mxu0 0
    %1626 = vmatprep.subr.bf16.mxu0 0
    %1627 = vmatpush1.bf16.msra.mxu0 %v1273
    %1628 = vmatprep.subr.bf16.mxu0 0
    %1629 = vmatpush2.bf16.msra.mxu0 0
    %1630 = vmatprep.subr.bf16.mxu0 0
    %1631 = vmatpush2.bf16.msra.mxu0 0
    %1632 = vmatprep.subr.bf16.mxu0 0
    %1633 = vmatpush2.bf16.msra.mxu0 0
    %1634 = vmatprep.subr.bf16.mxu0 0
    %1635 = vmatpush2.bf16.msra.mxu0 0
    %1636 = vmatprep.subr.bf16.mxu0 0
    %1637 = vmatpush2.bf16.msra.mxu0 0
    %1638 = vmatprep.subr.bf16.mxu0 0
    %1639 = vmatpush2.bf16.msra.mxu0 0
    %1640 = vmatprep.subr.bf16.mxu0 0
    %1641 = vmatpush2.bf16.msra.mxu0 0
    %1642 = vmatprep.subr.bf16.mxu0 0
    %1643 = vmatpush2.bf16.msra.mxu0 0
    %1644 = vmatprep.mubr.bf16.mxu0 0
    %1645 = vmatmul.mubr.bf16.gmra.mxu0 %v1610
    %v1646 = vpop.f32.mrf.mxu0
    %v1647 = vadd.f32 0.0, %v1646
    %v1648 = vpop.f32.mrf.mxu0
    %v1649 = vpop.f32.mrf.mxu0
    %v1650 = vadd.f32 0.0, %v1649
    %v1651 = vpop.f32.mrf.mxu0
    %1652 = vdwg.mxu0
    %v1654 = vsel %vm1472, %v1563, 0
    %1656 = vmatprep.subr.bf16.mxu0 0
    %1657 = vmatpush1.bf16.msra.mxu0 0
    %1658 = vmatprep.subr.bf16.mxu0 0
    %1659 = vmatpush1.bf16.msra.mxu0 0
    %1660 = vmatprep.subr.bf16.mxu0 0
    %1661 = vmatpush1.bf16.msra.mxu0 0
    %1662 = vmatprep.subr.bf16.mxu0 0
    %1663 = vmatpush1.bf16.msra.mxu0 0
    %1664 = vmatprep.subr.bf16.mxu0 0
    %1665 = vmatpush1.bf16.msra.mxu0 0
    %1666 = vmatprep.subr.bf16.mxu0 0
    %1667 = vmatpush1.bf16.msra.mxu0 0
    %1668 = vmatprep.subr.bf16.mxu0 0
    %1669 = vmatpush1.bf16.msra.mxu0 0
    %1670 = vmatprep.subr.bf16.mxu0 0
    %1671 = vmatpush1.bf16.msra.mxu0 %v1277
    %1672 = vmatprep.subr.bf16.mxu0 0
    %1673 = vmatpush2.bf16.msra.mxu0 0
    %1674 = vmatprep.subr.bf16.mxu0 0
    %1675 = vmatpush2.bf16.msra.mxu0 0
    %1676 = vmatprep.subr.bf16.mxu0 0
    %1677 = vmatpush2.bf16.msra.mxu0 0
    %1678 = vmatprep.subr.bf16.mxu0 0
    %1679 = vmatpush2.bf16.msra.mxu0 0
    %1680 = vmatprep.subr.bf16.mxu0 0
    %1681 = vmatpush2.bf16.msra.mxu0 0
    %1682 = vmatprep.subr.bf16.mxu0 0
    %1683 = vmatpush2.bf16.msra.mxu0 0
    %1684 = vmatprep.subr.bf16.mxu0 0
    %1685 = vmatpush2.bf16.msra.mxu0 0
    %1686 = vmatprep.subr.bf16.mxu0 0
    %1687 = vmatpush2.bf16.msra.mxu0 0
    %1688 = vmatprep.mubr.bf16.mxu0 0
    %1689 = vmatmul.mubr.bf16.gmra.mxu0 %v1654
    %v1690 = vpop.f32.mrf.mxu0
    %v1691 = vadd.f32 0.0, %v1690
    %v1692 = vpop.f32.mrf.mxu0
    %v1693 = vpop.f32.mrf.mxu0
    %v1694 = vadd.f32 0.0, %v1693
    %v1695 = vpop.f32.mrf.mxu0
    %1696 = vdwg.mxu0
    %v1698 = vsel %vm1472, %v1564, 0
    %1700 = vmatprep.subr.bf16.mxu0 0
    %1701 = vmatpush1.bf16.msra.mxu0 0
    %1702 = vmatprep.subr.bf16.mxu0 0
    %1703 = vmatpush1.bf16.msra.mxu0 0
    %1704 = vmatprep.subr.bf16.mxu0 0
    %1705 = vmatpush1.bf16.msra.mxu0 0
    %1706 = vmatprep.subr.bf16.mxu0 0
    %1707 = vmatpush1.bf16.msra.mxu0 0
    %1708 = vmatprep.subr.bf16.mxu0 0
    %1709 = vmatpush1.bf16.msra.mxu0 0
    %1710 = vmatprep.subr.bf16.mxu0 0
    %1711 = vmatpush1.bf16.msra.mxu0 0
    %1712 = vmatprep.subr.bf16.mxu0 0
    %1713 = vmatpush1.bf16.msra.mxu0 0
    %1714 = vmatprep.subr.bf16.mxu0 0
    %1715 = vmatpush1.bf16.msra.mxu0 %v1281
    %1716 = vmatprep.subr.bf16.mxu0 0
    %1717 = vmatpush2.bf16.msra.mxu0 0
    %1718 = vmatprep.subr.bf16.mxu0 0
    %1719 = vmatpush2.bf16.msra.mxu0 0
    %1720 = vmatprep.subr.bf16.mxu0 0
    %1721 = vmatpush2.bf16.msra.mxu0 0
    %1722 = vmatprep.subr.bf16.mxu0 0
    %1723 = vmatpush2.bf16.msra.mxu0 0
    %1724 = vmatprep.subr.bf16.mxu0 0
    %1725 = vmatpush2.bf16.msra.mxu0 0
    %1726 = vmatprep.subr.bf16.mxu0 0
    %1727 = vmatpush2.bf16.msra.mxu0 0
    %1728 = vmatprep.subr.bf16.mxu0 0
    %1729 = vmatpush2.bf16.msra.mxu0 0
    %1730 = vmatprep.subr.bf16.mxu0 0
    %1731 = vmatpush2.bf16.msra.mxu0 0
    %1732 = vmatprep.mubr.bf16.mxu0 0
    %1733 = vmatmul.mubr.bf16.gmra.mxu0 %v1698
    %v1734 = vpop.f32.mrf.mxu0
    %v1735 = vadd.f32 0.0, %v1734
    %v1736 = vpop.f32.mrf.mxu0
    %v1737 = vpop.f32.mrf.mxu0
    %v1738 = vadd.f32 0.0, %v1737
    %v1739 = vpop.f32.mrf.mxu0
    %1740 = vdwg.mxu0
    %v1741 = vpack.c.bf16 %v1606, %v1603
    %v1742 = vpack.c.bf16 %v1650, %v1647
    %v1743 = vpack.c.bf16 %v1694, %v1691
    %v1744 = vpack.c.bf16 %v1738, %v1735
    %v1747 = vpack.i.b16 %v1742, %v1741
    %v1749 = vshrl.u32 %v1741, 16
    %v1750 = vshrl.u32 %v1742, 16
    %v1751 = vpack.i.b16 %v1750, %v1749
    %v1755 = vpack.i.b16 %v1744, %v1743
    %v1757 = vshrl.u32 %v1743, 16
    %v1758 = vshrl.u32 %v1744, 16
    %v1759 = vpack.i.b16 %v1758, %v1757
    %v1761 = vcombine.high %v1747, %v494
    %v1763 = vunpack.c.l.s4 1983009808
    %v1764 = vunpack.c.0.s8 %v1763
    %v1765 = vlaneseq
    %v1766 = vshrl.u32 %v1765, 7
    %v1767 = vsub.s32 %v1764, %v1766
    %v1768 = vrot.slane %v1747, %v1767
    %v1770 = vunpack.c.l.s4 1983009808
    %v1771 = vunpack.c.0.s8 %v1770
    %v1772 = vlaneseq
    %v1773 = vshrl.u32 %v1772, 7
    %v1774 = vsub.s32 %v1771, %v1773
    %v1775 = vrot.slane %v1761, %v1774
    %v1776 = vcombine.high %v1755, %v494
    %v1778 = vunpack.c.l.s4 1983009808
    %v1779 = vunpack.c.0.s8 %v1778
    %v1780 = vlaneseq
    %v1781 = vshrl.u32 %v1780, 7
    %v1782 = vsub.s32 %v1779, %v1781
    %v1783 = vrot.slane %v1755, %v1782
    %v1785 = vunpack.c.l.s4 1983009808
    %v1786 = vunpack.c.0.s8 %v1785
    %v1787 = vlaneseq
    %v1788 = vshrl.u32 %v1787, 7
    %v1789 = vsub.s32 %v1786, %v1788
    %v1790 = vrot.slane %v1776, %v1789
    %v1791 = vcombine.low %v1768, %v1783
    %v1792 = vcombine.high %v1768, %v1783
    %v1794 = vunpack.c.l.s4 1934713408
    %v1795 = vunpack.c.0.s8 %v1794
    %v1796 = vlaneseq
    %v1797 = vshrl.u32 %v1796, 7
    %v1798 = vsub.s32 %v1795, %v1797
    %v1799 = vrot.slane %v1791, %v1798
    %v1801 = vunpack.c.l.s4 1934713408
    %v1802 = vunpack.c.0.s8 %v1801
    %v1803 = vlaneseq
    %v1804 = vshrl.u32 %v1803, 7
    %v1805 = vsub.s32 %v1802, %v1804
    %v1806 = vrot.slane %v1792, %v1805
    %v1807 = vcombine.low %v1775, %v1790
    %v1808 = vcombine.high %v1775, %v1790
    %v1810 = vunpack.c.l.s4 1934713408
    %v1811 = vunpack.c.0.s8 %v1810
    %v1812 = vlaneseq
    %v1813 = vshrl.u32 %v1812, 7
    %v1814 = vsub.s32 %v1811, %v1813
    %v1815 = vrot.slane %v1807, %v1814
    %v1817 = vunpack.c.l.s4 1934713408
    %v1818 = vunpack.c.0.s8 %v1817
    %v1819 = vlaneseq
    %v1820 = vshrl.u32 %v1819, 7
    %v1821 = vsub.s32 %v1818, %v1820
    %v1822 = vrot.slane %v1808, %v1821
    %v1823 = vcombine.high %v1799, 0
    %v1824 = vcombine.high %v1806, 0
    %v1825 = vcombine.high %v1815, 0
    %v1826 = vcombine.high %v1822, 0
    %v1827 = vcombine.high %v1751, %v497
    %v1829 = vunpack.c.l.s4 1983009808
    %v1830 = vunpack.c.0.s8 %v1829
    %v1831 = vlaneseq
    %v1832 = vshrl.u32 %v1831, 7
    %v1833 = vsub.s32 %v1830, %v1832
    %v1834 = vrot.slane %v1751, %v1833
    %v1836 = vunpack.c.l.s4 1983009808
    %v1837 = vunpack.c.0.s8 %v1836
    %v1838 = vlaneseq
    %v1839 = vshrl.u32 %v1838, 7
    %v1840 = vsub.s32 %v1837, %v1839
    %v1841 = vrot.slane %v1827, %v1840
    %v1842 = vcombine.high %v1759, %v497
    %v1844 = vunpack.c.l.s4 1983009808
    %v1845 = vunpack.c.0.s8 %v1844
    %v1846 = vlaneseq
    %v1847 = vshrl.u32 %v1846, 7
    %v1848 = vsub.s32 %v1845, %v1847
    %v1849 = vrot.slane %v1759, %v1848
    %v1851 = vunpack.c.l.s4 1983009808
    %v1852 = vunpack.c.0.s8 %v1851
    %v1853 = vlaneseq
    %v1854 = vshrl.u32 %v1853, 7
    %v1855 = vsub.s32 %v1852, %v1854
    %v1856 = vrot.slane %v1842, %v1855
    %v1857 = vcombine.low %v1834, %v1849
    %v1858 = vcombine.high %v1834, %v1849
    %v1860 = vunpack.c.l.s4 1934713408
    %v1861 = vunpack.c.0.s8 %v1860
    %v1862 = vlaneseq
    %v1863 = vshrl.u32 %v1862, 7
    %v1864 = vsub.s32 %v1861, %v1863
    %v1865 = vrot.slane %v1857, %v1864
    %v1867 = vunpack.c.l.s4 1934713408
    %v1868 = vunpack.c.0.s8 %v1867
    %v1869 = vlaneseq
    %v1870 = vshrl.u32 %v1869, 7
    %v1871 = vsub.s32 %v1868, %v1870
    %v1872 = vrot.slane %v1858, %v1871
    %v1873 = vcombine.low %v1841, %v1856
    %v1874 = vcombine.high %v1841, %v1856
    %v1876 = vunpack.c.l.s4 1934713408
    %v1877 = vunpack.c.0.s8 %v1876
    %v1878 = vlaneseq
    %v1879 = vshrl.u32 %v1878, 7
    %v1880 = vsub.s32 %v1877, %v1879
    %v1881 = vrot.slane %v1873, %v1880
    %v1883 = vunpack.c.l.s4 1934713408
    %v1884 = vunpack.c.0.s8 %v1883
    %v1885 = vlaneseq
    %v1886 = vshrl.u32 %v1885, 7
    %v1887 = vsub.s32 %v1884, %v1886
    %v1888 = vrot.slane %v1874, %v1887
    %v1889 = vcombine.high %v1865, 0
    %v1890 = vcombine.high %v1872, 0
    %v1891 = vcombine.high %v1881, 0
    %v1892 = vcombine.high %v1888, 0
    %v1893 = vcombine.low %v1799, %v1806
    %v1895 = vunpack.c.l.s4 1983009808
    %v1896 = vunpack.c.0.s8 %v1895
    %v1897 = vlaneseq
    %v1898 = vshrl.u32 %v1897, 7
    %v1899 = vsub.s32 %v1896, %v1898
    %v1900 = vrot.slane %v1893, %v1899
    %v1901 = vcombine.low %v1823, %v1824
    %v1903 = vunpack.c.l.s4 1983009808
    %v1904 = vunpack.c.0.s8 %v1903
    %v1905 = vlaneseq
    %v1906 = vshrl.u32 %v1905, 7
    %v1907 = vsub.s32 %v1904, %v1906
    %v1908 = vrot.slane %v1901, %v1907
    %v1909 = vcombine.low %v1815, %v1822
    %v1911 = vunpack.c.l.s4 1983009808
    %v1912 = vunpack.c.0.s8 %v1911
    %v1913 = vlaneseq
    %v1914 = vshrl.u32 %v1913, 7
    %v1915 = vsub.s32 %v1912, %v1914
    %v1916 = vrot.slane %v1909, %v1915
    %v1917 = vcombine.low %v1825, %v1826
    %v1919 = vunpack.c.l.s4 1983009808
    %v1920 = vunpack.c.0.s8 %v1919
    %v1921 = vlaneseq
    %v1922 = vshrl.u32 %v1921, 7
    %v1923 = vsub.s32 %v1920, %v1922
    %v1924 = vrot.slane %v1917, %v1923
    %v1925 = vcombine.low %v1900, %v1908
    %v1927 = vunpack.c.l.s4 1934713408
    %v1928 = vunpack.c.0.s8 %v1927
    %v1929 = vlaneseq
    %v1930 = vshrl.u32 %v1929, 7
    %v1931 = vsub.s32 %v1928, %v1930
    %v1932 = vrot.slane %v1925, %v1931
    %v1933 = vcombine.low %v1916, %v1924
    %v1935 = vunpack.c.l.s4 1934713408
    %v1936 = vunpack.c.0.s8 %v1935
    %v1937 = vlaneseq
    %v1938 = vshrl.u32 %v1937, 7
    %v1939 = vsub.s32 %v1936, %v1938
    %v1940 = vrot.slane %v1933, %v1939
    %v1941 = vcombine.low %v1932, %v1940
    %v1942 = vcombine.high %v1932, %v1940
    %v1943 = vcombine.low %v1865, %v1872
    %v1945 = vunpack.c.l.s4 1983009808
    %v1946 = vunpack.c.0.s8 %v1945
    %v1947 = vlaneseq
    %v1948 = vshrl.u32 %v1947, 7
    %v1949 = vsub.s32 %v1946, %v1948
    %v1950 = vrot.slane %v1943, %v1949
    %v1951 = vcombine.low %v1889, %v1890
    %v1953 = vunpack.c.l.s4 1983009808
    %v1954 = vunpack.c.0.s8 %v1953
    %v1955 = vlaneseq
    %v1956 = vshrl.u32 %v1955, 7
    %v1957 = vsub.s32 %v1954, %v1956
    %v1958 = vrot.slane %v1951, %v1957
    %v1959 = vcombine.low %v1881, %v1888
    %v1961 = vunpack.c.l.s4 1983009808
    %v1962 = vunpack.c.0.s8 %v1961
    %v1963 = vlaneseq
    %v1964 = vshrl.u32 %v1963, 7
    %v1965 = vsub.s32 %v1962, %v1964
    %v1966 = vrot.slane %v1959, %v1965
    %v1967 = vcombine.low %v1891, %v1892
    %v1969 = vunpack.c.l.s4 1983009808
    %v1970 = vunpack.c.0.s8 %v1969
    %v1971 = vlaneseq
    %v1972 = vshrl.u32 %v1971, 7
    %v1973 = vsub.s32 %v1970, %v1972
    %v1974 = vrot.slane %v1967, %v1973
    %v1975 = vcombine.low %v1950, %v1958
    %v1977 = vunpack.c.l.s4 1934713408
    %v1978 = vunpack.c.0.s8 %v1977
    %v1979 = vlaneseq
    %v1980 = vshrl.u32 %v1979, 7
    %v1981 = vsub.s32 %v1978, %v1980
    %v1982 = vrot.slane %v1975, %v1981
    %v1983 = vcombine.low %v1966, %v1974
    %v1985 = vunpack.c.l.s4 1934713408
    %v1986 = vunpack.c.0.s8 %v1985
    %v1987 = vlaneseq
    %v1988 = vshrl.u32 %v1987, 7
    %v1989 = vsub.s32 %v1986, %v1988
    %v1990 = vrot.slane %v1983, %v1989
    %v1991 = vcombine.low %v1982, %v1990
    %v1992 = vcombine.high %v1982, %v1990
    %v1995 = vpack.i.b16 %v1991, %v1941
    %v1996 = vshrl.u32 %v1941, 16
    %v1997 = vshrl.u32 %v1991, 16
    %v1998 = vpack.i.b16 %v1997, %v1996
    %v2001 = vpack.i.b16 %v1992, %v1942
    %v2002 = vshrl.u32 %v1942, 16
    %v2003 = vshrl.u32 %v1992, 16
    %v2004 = vpack.i.b16 %v2003, %v2002
    %2005 = vrot.lane.b32.xlu0 %v1998, 32
    %v2006 = vpop.permute.xlu0 %2005
    %2007 = vrot.lane.b32.xlu0 %v2001, 64
    %v2008 = vpop.permute.xlu0 %2007
    %2009 = vrot.lane.b32.xlu0 %v2004, 96
    %v2010 = vpop.permute.xlu0 %2009
    %v2013 = vsel %vm1283, %v1995, %v2006
    %vm2014 = vcmask 523264
    %v2016 = vsel %vm2014, %v2013, %v2008
    %vm2017 = vcmask 785408
    %v2019 = vsel %vm2017, %v2016, %v2010
    %s2021 = sadd.s32 %s454, 1
    %s2022 = sld [smem:[#allocation3 + %s2021]]
    %v2023 = vstv %s2022
    %vm2024 = vcmp.ge.s32.totalorder %v452, %v2023
    %vm2025 = vcmp.ge.s32.totalorder %v453, %v2023
    %v2026 = vsel %vm2024, 1, 0
    %v2027 = vsel %vm2025, 1, 0
    %vm2028 = vcmp.eq.s32.totalorder %v2026, 1
    %vm2029 = vcmp.eq.s32.totalorder %v2027, 1
    %v2030 = vsel %vm2028, 0.0, %v394
    %v2031 = vsel %vm2029, 0.0, %v398
    %v2032 = vmul.f32 %v2030, 0.17677669
    %v2033 = vmul.f32 %v2031, 0.17677669
    %v2034 = vsel %vm2028, 0.0, %v396
    %v2035 = vsel %vm2029, 0.0, %v400
    %v2036 = vpack.c.bf16 %v2033, %v2032
    %2038 = vrot.lane.b32.xlu0 %v2036, 96
    %v2039 = vpop.permute.xlu0 %2038
    %2040 = vrot.lane.b32.xlu0 %v2036, 64
    %v2041 = vpop.permute.xlu0 %2040
    %2042 = vrot.lane.b32.xlu0 %v2036, 32
    %v2043 = vpop.permute.xlu0 %2042
    %v2046 = vpack.i.b16 %v2039, %v2036
    %v2048 = vshrl.u32 %v2036, 16
    %v2049 = vshrl.u32 %v2039, 16
    %v2050 = vpack.i.b16 %v2049, %v2048
    %v2054 = vpack.i.b16 %v2043, %v2041
    %v2056 = vshrl.u32 %v2041, 16
    %v2057 = vshrl.u32 %v2043, 16
    %v2058 = vpack.i.b16 %v2057, %v2056
    %v2060 = vcombine.high %v2046, %v494
    %v2062 = vunpack.c.l.s4 1983009808
    %v2063 = vunpack.c.0.s8 %v2062
    %v2064 = vlaneseq
    %v2065 = vshrl.u32 %v2064, 7
    %v2066 = vsub.s32 %v2063, %v2065
    %v2067 = vrot.slane %v2046, %v2066
    %v2069 = vunpack.c.l.s4 1983009808
    %v2070 = vunpack.c.0.s8 %v2069
    %v2071 = vlaneseq
    %v2072 = vshrl.u32 %v2071, 7
    %v2073 = vsub.s32 %v2070, %v2072
    %v2074 = vrot.slane %v2060, %v2073
    %v2075 = vcombine.high %v2054, %v494
    %v2077 = vunpack.c.l.s4 1983009808
    %v2078 = vunpack.c.0.s8 %v2077
    %v2079 = vlaneseq
    %v2080 = vshrl.u32 %v2079, 7
    %v2081 = vsub.s32 %v2078, %v2080
    %v2082 = vrot.slane %v2054, %v2081
    %v2084 = vunpack.c.l.s4 1983009808
    %v2085 = vunpack.c.0.s8 %v2084
    %v2086 = vlaneseq
    %v2087 = vshrl.u32 %v2086, 7
    %v2088 = vsub.s32 %v2085, %v2087
    %v2089 = vrot.slane %v2075, %v2088
    %v2090 = vcombine.low %v2067, %v2082
    %v2091 = vcombine.high %v2067, %v2082
    %v2093 = vunpack.c.l.s4 1934713408
    %v2094 = vunpack.c.0.s8 %v2093
    %v2095 = vlaneseq
    %v2096 = vshrl.u32 %v2095, 7
    %v2097 = vsub.s32 %v2094, %v2096
    %v2098 = vrot.slane %v2090, %v2097
    %v2100 = vunpack.c.l.s4 1934713408
    %v2101 = vunpack.c.0.s8 %v2100
    %v2102 = vlaneseq
    %v2103 = vshrl.u32 %v2102, 7
    %v2104 = vsub.s32 %v2101, %v2103
    %v2105 = vrot.slane %v2091, %v2104
    %v2106 = vcombine.low %v2074, %v2089
    %v2107 = vcombine.high %v2074, %v2089
    %v2109 = vunpack.c.l.s4 1934713408
    %v2110 = vunpack.c.0.s8 %v2109
    %v2111 = vlaneseq
    %v2112 = vshrl.u32 %v2111, 7
    %v2113 = vsub.s32 %v2110, %v2112
    %v2114 = vrot.slane %v2106, %v2113
    %v2116 = vunpack.c.l.s4 1934713408
    %v2117 = vunpack.c.0.s8 %v2116
    %v2118 = vlaneseq
    %v2119 = vshrl.u32 %v2118, 7
    %v2120 = vsub.s32 %v2117, %v2119
    %v2121 = vrot.slane %v2107, %v2120
    %v2122 = vcombine.high %v2098, 0
    %v2123 = vcombine.high %v2105, 0
    %v2124 = vcombine.high %v2114, 0
    %v2125 = vcombine.high %v2121, 0
    %v2126 = vcombine.high %v2050, %v497
    %v2128 = vunpack.c.l.s4 1983009808
    %v2129 = vunpack.c.0.s8 %v2128
    %v2130 = vlaneseq
    %v2131 = vshrl.u32 %v2130, 7
    %v2132 = vsub.s32 %v2129, %v2131
    %v2133 = vrot.slane %v2050, %v2132
    %v2135 = vunpack.c.l.s4 1983009808
    %v2136 = vunpack.c.0.s8 %v2135
    %v2137 = vlaneseq
    %v2138 = vshrl.u32 %v2137, 7
    %v2139 = vsub.s32 %v2136, %v2138
    %v2140 = vrot.slane %v2126, %v2139
    %v2141 = vcombine.high %v2058, %v497
    %v2143 = vunpack.c.l.s4 1983009808
    %v2144 = vunpack.c.0.s8 %v2143
    %v2145 = vlaneseq
    %v2146 = vshrl.u32 %v2145, 7
    %v2147 = vsub.s32 %v2144, %v2146
    %v2148 = vrot.slane %v2058, %v2147
    %v2150 = vunpack.c.l.s4 1983009808
    %v2151 = vunpack.c.0.s8 %v2150
    %v2152 = vlaneseq
    %v2153 = vshrl.u32 %v2152, 7
    %v2154 = vsub.s32 %v2151, %v2153
    %v2155 = vrot.slane %v2141, %v2154
    %v2156 = vcombine.low %v2133, %v2148
    %v2157 = vcombine.high %v2133, %v2148
    %v2159 = vunpack.c.l.s4 1934713408
    %v2160 = vunpack.c.0.s8 %v2159
    %v2161 = vlaneseq
    %v2162 = vshrl.u32 %v2161, 7
    %v2163 = vsub.s32 %v2160, %v2162
    %v2164 = vrot.slane %v2156, %v2163
    %v2166 = vunpack.c.l.s4 1934713408
    %v2167 = vunpack.c.0.s8 %v2166
    %v2168 = vlaneseq
    %v2169 = vshrl.u32 %v2168, 7
    %v2170 = vsub.s32 %v2167, %v2169
    %v2171 = vrot.slane %v2157, %v2170
    %v2172 = vcombine.low %v2140, %v2155
    %v2173 = vcombine.high %v2140, %v2155
    %v2175 = vunpack.c.l.s4 1934713408
    %v2176 = vunpack.c.0.s8 %v2175
    %v2177 = vlaneseq
    %v2178 = vshrl.u32 %v2177, 7
    %v2179 = vsub.s32 %v2176, %v2178
    %v2180 = vrot.slane %v2172, %v2179
    %v2182 = vunpack.c.l.s4 1934713408
    %v2183 = vunpack.c.0.s8 %v2182
    %v2184 = vlaneseq
    %v2185 = vshrl.u32 %v2184, 7
    %v2186 = vsub.s32 %v2183, %v2185
    %v2187 = vrot.slane %v2173, %v2186
    %v2188 = vcombine.high %v2164, 0
    %v2189 = vcombine.high %v2171, 0
    %v2190 = vcombine.high %v2180, 0
    %v2191 = vcombine.high %v2187, 0
    %v2192 = vcombine.low %v2098, %v2105
    %v2194 = vunpack.c.l.s4 1983009808
    %v2195 = vunpack.c.0.s8 %v2194
    %v2196 = vlaneseq
    %v2197 = vshrl.u32 %v2196, 7
    %v2198 = vsub.s32 %v2195, %v2197
    %v2199 = vrot.slane %v2192, %v2198
    %v2200 = vcombine.low %v2122, %v2123
    %v2202 = vunpack.c.l.s4 1983009808
    %v2203 = vunpack.c.0.s8 %v2202
    %v2204 = vlaneseq
    %v2205 = vshrl.u32 %v2204, 7
    %v2206 = vsub.s32 %v2203, %v2205
    %v2207 = vrot.slane %v2200, %v2206
    %v2208 = vcombine.low %v2114, %v2121
    %v2210 = vunpack.c.l.s4 1983009808
    %v2211 = vunpack.c.0.s8 %v2210
    %v2212 = vlaneseq
    %v2213 = vshrl.u32 %v2212, 7
    %v2214 = vsub.s32 %v2211, %v2213
    %v2215 = vrot.slane %v2208, %v2214
    %v2216 = vcombine.low %v2124, %v2125
    %v2218 = vunpack.c.l.s4 1983009808
    %v2219 = vunpack.c.0.s8 %v2218
    %v2220 = vlaneseq
    %v2221 = vshrl.u32 %v2220, 7
    %v2222 = vsub.s32 %v2219, %v2221
    %v2223 = vrot.slane %v2216, %v2222
    %v2224 = vcombine.low %v2199, %v2207
    %v2226 = vunpack.c.l.s4 1934713408
    %v2227 = vunpack.c.0.s8 %v2226
    %v2228 = vlaneseq
    %v2229 = vshrl.u32 %v2228, 7
    %v2230 = vsub.s32 %v2227, %v2229
    %v2231 = vrot.slane %v2224, %v2230
    %v2232 = vcombine.low %v2215, %v2223
    %v2234 = vunpack.c.l.s4 1934713408
    %v2235 = vunpack.c.0.s8 %v2234
    %v2236 = vlaneseq
    %v2237 = vshrl.u32 %v2236, 7
    %v2238 = vsub.s32 %v2235, %v2237
    %v2239 = vrot.slane %v2232, %v2238
    %v2240 = vcombine.low %v2231, %v2239
    %v2241 = vcombine.high %v2231, %v2239
    %v2242 = vcombine.low %v2164, %v2171
    %v2244 = vunpack.c.l.s4 1983009808
    %v2245 = vunpack.c.0.s8 %v2244
    %v2246 = vlaneseq
    %v2247 = vshrl.u32 %v2246, 7
    %v2248 = vsub.s32 %v2245, %v2247
    %v2249 = vrot.slane %v2242, %v2248
    %v2250 = vcombine.low %v2188, %v2189
    %v2252 = vunpack.c.l.s4 1983009808
    %v2253 = vunpack.c.0.s8 %v2252
    %v2254 = vlaneseq
    %v2255 = vshrl.u32 %v2254, 7
    %v2256 = vsub.s32 %v2253, %v2255
    %v2257 = vrot.slane %v2250, %v2256
    %v2258 = vcombine.low %v2180, %v2187
    %v2260 = vunpack.c.l.s4 1983009808
    %v2261 = vunpack.c.0.s8 %v2260
    %v2262 = vlaneseq
    %v2263 = vshrl.u32 %v2262, 7
    %v2264 = vsub.s32 %v2261, %v2263
    %v2265 = vrot.slane %v2258, %v2264
    %v2266 = vcombine.low %v2190, %v2191
    %v2268 = vunpack.c.l.s4 1983009808
    %v2269 = vunpack.c.0.s8 %v2268
    %v2270 = vlaneseq
    %v2271 = vshrl.u32 %v2270, 7
    %v2272 = vsub.s32 %v2269, %v2271
    %v2273 = vrot.slane %v2266, %v2272
    %v2274 = vcombine.low %v2249, %v2257
    %v2276 = vunpack.c.l.s4 1934713408
    %v2277 = vunpack.c.0.s8 %v2276
    %v2278 = vlaneseq
    %v2279 = vshrl.u32 %v2278, 7
    %v2280 = vsub.s32 %v2277, %v2279
    %v2281 = vrot.slane %v2274, %v2280
    %v2282 = vcombine.low %v2265, %v2273
    %v2284 = vunpack.c.l.s4 1934713408
    %v2285 = vunpack.c.0.s8 %v2284
    %v2286 = vlaneseq
    %v2287 = vshrl.u32 %v2286, 7
    %v2288 = vsub.s32 %v2285, %v2287
    %v2289 = vrot.slane %v2282, %v2288
    %v2290 = vcombine.low %v2281, %v2289
    %v2291 = vcombine.high %v2281, %v2289
    %v2294 = vpack.i.b16 %v2290, %v2240
    %v2295 = vshrl.u32 %v2240, 16
    %v2296 = vshrl.u32 %v2290, 16
    %v2297 = vpack.i.b16 %v2296, %v2295
    %v2300 = vpack.i.b16 %v2291, %v2241
    %v2301 = vshrl.u32 %v2241, 16
    %v2302 = vshrl.u32 %v2291, 16
    %v2303 = vpack.i.b16 %v2302, %v2301
    %v2304 = vpack.c.bf16 %v2035, %v2034
    %2306 = vrot.lane.b32.xlu0 %v2304, 96
    %v2307 = vpop.permute.xlu0 %2306
    %2308 = vrot.lane.b32.xlu0 %v2304, 64
    %v2309 = vpop.permute.xlu0 %2308
    %2310 = vrot.lane.b32.xlu0 %v2304, 32
    %v2311 = vpop.permute.xlu0 %2310
    %v2314 = vpack.i.b16 %v2307, %v2304
    %v2316 = vshrl.u32 %v2304, 16
    %v2317 = vshrl.u32 %v2307, 16
    %v2318 = vpack.i.b16 %v2317, %v2316
    %v2322 = vpack.i.b16 %v2311, %v2309
    %v2324 = vshrl.u32 %v2309, 16
    %v2325 = vshrl.u32 %v2311, 16
    %v2326 = vpack.i.b16 %v2325, %v2324
    %v2328 = vcombine.high %v2314, %v494
    %v2330 = vunpack.c.l.s4 1983009808
    %v2331 = vunpack.c.0.s8 %v2330
    %v2332 = vlaneseq
    %v2333 = vshrl.u32 %v2332, 7
    %v2334 = vsub.s32 %v2331, %v2333
    %v2335 = vrot.slane %v2314, %v2334
    %v2337 = vunpack.c.l.s4 1983009808
    %v2338 = vunpack.c.0.s8 %v2337
    %v2339 = vlaneseq
    %v2340 = vshrl.u32 %v2339, 7
    %v2341 = vsub.s32 %v2338, %v2340
    %v2342 = vrot.slane %v2328, %v2341
    %v2343 = vcombine.high %v2322, %v494
    %v2345 = vunpack.c.l.s4 1983009808
    %v2346 = vunpack.c.0.s8 %v2345
    %v2347 = vlaneseq
    %v2348 = vshrl.u32 %v2347, 7
    %v2349 = vsub.s32 %v2346, %v2348
    %v2350 = vrot.slane %v2322, %v2349
    %v2352 = vunpack.c.l.s4 1983009808
    %v2353 = vunpack.c.0.s8 %v2352
    %v2354 = vlaneseq
    %v2355 = vshrl.u32 %v2354, 7
    %v2356 = vsub.s32 %v2353, %v2355
    %v2357 = vrot.slane %v2343, %v2356
    %v2358 = vcombine.low %v2335, %v2350
    %v2359 = vcombine.high %v2335, %v2350
    %v2361 = vunpack.c.l.s4 1934713408
    %v2362 = vunpack.c.0.s8 %v2361
    %v2363 = vlaneseq
    %v2364 = vshrl.u32 %v2363, 7
    %v2365 = vsub.s32 %v2362, %v2364
    %v2366 = vrot.slane %v2358, %v2365
    %v2368 = vunpack.c.l.s4 1934713408
    %v2369 = vunpack.c.0.s8 %v2368
    %v2370 = vlaneseq
    %v2371 = vshrl.u32 %v2370, 7
    %v2372 = vsub.s32 %v2369, %v2371
    %v2373 = vrot.slane %v2359, %v2372
    %v2374 = vcombine.low %v2342, %v2357
    %v2375 = vcombine.high %v2342, %v2357
    %v2377 = vunpack.c.l.s4 1934713408
    %v2378 = vunpack.c.0.s8 %v2377
    %v2379 = vlaneseq
    %v2380 = vshrl.u32 %v2379, 7
    %v2381 = vsub.s32 %v2378, %v2380
    %v2382 = vrot.slane %v2374, %v2381
    %v2384 = vunpack.c.l.s4 1934713408
    %v2385 = vunpack.c.0.s8 %v2384
    %v2386 = vlaneseq
    %v2387 = vshrl.u32 %v2386, 7
    %v2388 = vsub.s32 %v2385, %v2387
    %v2389 = vrot.slane %v2375, %v2388
    %v2390 = vcombine.high %v2366, 0
    %v2391 = vcombine.high %v2373, 0
    %v2392 = vcombine.high %v2382, 0
    %v2393 = vcombine.high %v2389, 0
    %v2394 = vcombine.high %v2318, %v497
    %v2396 = vunpack.c.l.s4 1983009808
    %v2397 = vunpack.c.0.s8 %v2396
    %v2398 = vlaneseq
    %v2399 = vshrl.u32 %v2398, 7
    %v2400 = vsub.s32 %v2397, %v2399
    %v2401 = vrot.slane %v2318, %v2400
    %v2403 = vunpack.c.l.s4 1983009808
    %v2404 = vunpack.c.0.s8 %v2403
    %v2405 = vlaneseq
    %v2406 = vshrl.u32 %v2405, 7
    %v2407 = vsub.s32 %v2404, %v2406
    %v2408 = vrot.slane %v2394, %v2407
    %v2409 = vcombine.high %v2326, %v497
    %v2411 = vunpack.c.l.s4 1983009808
    %v2412 = vunpack.c.0.s8 %v2411
    %v2413 = vlaneseq
    %v2414 = vshrl.u32 %v2413, 7
    %v2415 = vsub.s32 %v2412, %v2414
    %v2416 = vrot.slane %v2326, %v2415
    %v2418 = vunpack.c.l.s4 1983009808
    %v2419 = vunpack.c.0.s8 %v2418
    %v2420 = vlaneseq
    %v2421 = vshrl.u32 %v2420, 7
    %v2422 = vsub.s32 %v2419, %v2421
    %v2423 = vrot.slane %v2409, %v2422
    %v2424 = vcombine.low %v2401, %v2416
    %v2425 = vcombine.high %v2401, %v2416
    %v2427 = vunpack.c.l.s4 1934713408
    %v2428 = vunpack.c.0.s8 %v2427
    %v2429 = vlaneseq
    %v2430 = vshrl.u32 %v2429, 7
    %v2431 = vsub.s32 %v2428, %v2430
    %v2432 = vrot.slane %v2424, %v2431
    %v2434 = vunpack.c.l.s4 1934713408
    %v2435 = vunpack.c.0.s8 %v2434
    %v2436 = vlaneseq
    %v2437 = vshrl.u32 %v2436, 7
    %v2438 = vsub.s32 %v2435, %v2437
    %v2439 = vrot.slane %v2425, %v2438
    %v2440 = vcombine.low %v2408, %v2423
    %v2441 = vcombine.high %v2408, %v2423
    %v2443 = vunpack.c.l.s4 1934713408
    %v2444 = vunpack.c.0.s8 %v2443
    %v2445 = vlaneseq
    %v2446 = vshrl.u32 %v2445, 7
    %v2447 = vsub.s32 %v2444, %v2446
    %v2448 = vrot.slane %v2440, %v2447
    %v2450 = vunpack.c.l.s4 1934713408
    %v2451 = vunpack.c.0.s8 %v2450
    %v2452 = vlaneseq
    %v2453 = vshrl.u32 %v2452, 7
    %v2454 = vsub.s32 %v2451, %v2453
    %v2455 = vrot.slane %v2441, %v2454
    %v2456 = vcombine.high %v2432, 0
    %v2457 = vcombine.high %v2439, 0
    %v2458 = vcombine.high %v2448, 0
    %v2459 = vcombine.high %v2455, 0
    %v2460 = vcombine.low %v2366, %v2373
    %v2462 = vunpack.c.l.s4 1983009808
    %v2463 = vunpack.c.0.s8 %v2462
    %v2464 = vlaneseq
    %v2465 = vshrl.u32 %v2464, 7
    %v2466 = vsub.s32 %v2463, %v2465
    %v2467 = vrot.slane %v2460, %v2466
    %v2468 = vcombine.low %v2390, %v2391
    %v2470 = vunpack.c.l.s4 1983009808
    %v2471 = vunpack.c.0.s8 %v2470
    %v2472 = vlaneseq
    %v2473 = vshrl.u32 %v2472, 7
    %v2474 = vsub.s32 %v2471, %v2473
    %v2475 = vrot.slane %v2468, %v2474
    %v2476 = vcombine.low %v2382, %v2389
    %v2478 = vunpack.c.l.s4 1983009808
    %v2479 = vunpack.c.0.s8 %v2478
    %v2480 = vlaneseq
    %v2481 = vshrl.u32 %v2480, 7
    %v2482 = vsub.s32 %v2479, %v2481
    %v2483 = vrot.slane %v2476, %v2482
    %v2484 = vcombine.low %v2392, %v2393
    %v2486 = vunpack.c.l.s4 1983009808
    %v2487 = vunpack.c.0.s8 %v2486
    %v2488 = vlaneseq
    %v2489 = vshrl.u32 %v2488, 7
    %v2490 = vsub.s32 %v2487, %v2489
    %v2491 = vrot.slane %v2484, %v2490
    %v2492 = vcombine.low %v2467, %v2475
    %v2494 = vunpack.c.l.s4 1934713408
    %v2495 = vunpack.c.0.s8 %v2494
    %v2496 = vlaneseq
    %v2497 = vshrl.u32 %v2496, 7
    %v2498 = vsub.s32 %v2495, %v2497
    %v2499 = vrot.slane %v2492, %v2498
    %v2500 = vcombine.low %v2483, %v2491
    %v2502 = vunpack.c.l.s4 1934713408
    %v2503 = vunpack.c.0.s8 %v2502
    %v2504 = vlaneseq
    %v2505 = vshrl.u32 %v2504, 7
    %v2506 = vsub.s32 %v2503, %v2505
    %v2507 = vrot.slane %v2500, %v2506
    %v2508 = vcombine.low %v2499, %v2507
    %v2509 = vcombine.high %v2499, %v2507
    %v2510 = vcombine.low %v2432, %v2439
    %v2512 = vunpack.c.l.s4 1983009808
    %v2513 = vunpack.c.0.s8 %v2512
    %v2514 = vlaneseq
    %v2515 = vshrl.u32 %v2514, 7
    %v2516 = vsub.s32 %v2513, %v2515
    %v2517 = vrot.slane %v2510, %v2516
    %v2518 = vcombine.low %v2456, %v2457
    %v2520 = vunpack.c.l.s4 1983009808
    %v2521 = vunpack.c.0.s8 %v2520
    %v2522 = vlaneseq
    %v2523 = vshrl.u32 %v2522, 7
    %v2524 = vsub.s32 %v2521, %v2523
    %v2525 = vrot.slane %v2518, %v2524
    %v2526 = vcombine.low %v2448, %v2455
    %v2528 = vunpack.c.l.s4 1983009808
    %v2529 = vunpack.c.0.s8 %v2528
    %v2530 = vlaneseq
    %v2531 = vshrl.u32 %v2530, 7
    %v2532 = vsub.s32 %v2529, %v2531
    %v2533 = vrot.slane %v2526, %v2532
    %v2534 = vcombine.low %v2458, %v2459
    %v2536 = vunpack.c.l.s4 1983009808
    %v2537 = vunpack.c.0.s8 %v2536
    %v2538 = vlaneseq
    %v2539 = vshrl.u32 %v2538, 7
    %v2540 = vsub.s32 %v2537, %v2539
    %v2541 = vrot.slane %v2534, %v2540
    %v2542 = vcombine.low %v2517, %v2525
    %v2544 = vunpack.c.l.s4 1934713408
    %v2545 = vunpack.c.0.s8 %v2544
    %v2546 = vlaneseq
    %v2547 = vshrl.u32 %v2546, 7
    %v2548 = vsub.s32 %v2545, %v2547
    %v2549 = vrot.slane %v2542, %v2548
    %v2550 = vcombine.low %v2533, %v2541
    %v2552 = vunpack.c.l.s4 1934713408
    %v2553 = vunpack.c.0.s8 %v2552
    %v2554 = vlaneseq
    %v2555 = vshrl.u32 %v2554, 7
    %v2556 = vsub.s32 %v2553, %v2555
    %v2557 = vrot.slane %v2550, %v2556
    %v2558 = vcombine.low %v2549, %v2557
    %v2559 = vcombine.high %v2549, %v2557
    %v2562 = vpack.i.b16 %v2558, %v2508
    %v2563 = vshrl.u32 %v2508, 16
    %v2564 = vshrl.u32 %v2558, 16
    %v2565 = vpack.i.b16 %v2564, %v2563
    %v2568 = vpack.i.b16 %v2559, %v2509
    %v2569 = vshrl.u32 %v2509, 16
    %v2570 = vshrl.u32 %v2559, 16
    %v2571 = vpack.i.b16 %v2570, %v2569
    %v2572 = vpack.c.bf16 %v448, %v445
    %2574 = vrot.lane.b32.xlu0 %v2572, 96
    %v2575 = vpop.permute.xlu0 %2574
    %2576 = vrot.lane.b32.xlu0 %v2572, 64
    %v2577 = vpop.permute.xlu0 %2576
    %2578 = vrot.lane.b32.xlu0 %v2572, 32
    %v2579 = vpop.permute.xlu0 %2578
    %v2582 = vpack.i.b16 %v2575, %v2572
    %v2584 = vshrl.u32 %v2572, 16
    %v2585 = vshrl.u32 %v2575, 16
    %v2586 = vpack.i.b16 %v2585, %v2584
    %v2590 = vpack.i.b16 %v2579, %v2577
    %v2592 = vshrl.u32 %v2577, 16
    %v2593 = vshrl.u32 %v2579, 16
    %v2594 = vpack.i.b16 %v2593, %v2592
    %v2596 = vcombine.high %v2582, %v494
    %v2598 = vunpack.c.l.s4 1983009808
    %v2599 = vunpack.c.0.s8 %v2598
    %v2600 = vlaneseq
    %v2601 = vshrl.u32 %v2600, 7
    %v2602 = vsub.s32 %v2599, %v2601
    %v2603 = vrot.slane %v2582, %v2602
    %v2605 = vunpack.c.l.s4 1983009808
    %v2606 = vunpack.c.0.s8 %v2605
    %v2607 = vlaneseq
    %v2608 = vshrl.u32 %v2607, 7
    %v2609 = vsub.s32 %v2606, %v2608
    %v2610 = vrot.slane %v2596, %v2609
    %v2611 = vcombine.high %v2590, %v494
    %v2613 = vunpack.c.l.s4 1983009808
    %v2614 = vunpack.c.0.s8 %v2613
    %v2615 = vlaneseq
    %v2616 = vshrl.u32 %v2615, 7
    %v2617 = vsub.s32 %v2614, %v2616
    %v2618 = vrot.slane %v2590, %v2617
    %v2620 = vunpack.c.l.s4 1983009808
    %v2621 = vunpack.c.0.s8 %v2620
    %v2622 = vlaneseq
    %v2623 = vshrl.u32 %v2622, 7
    %v2624 = vsub.s32 %v2621, %v2623
    %v2625 = vrot.slane %v2611, %v2624
    %v2626 = vcombine.low %v2603, %v2618
    %v2627 = vcombine.high %v2603, %v2618
    %v2629 = vunpack.c.l.s4 1934713408
    %v2630 = vunpack.c.0.s8 %v2629
    %v2631 = vlaneseq
    %v2632 = vshrl.u32 %v2631, 7
    %v2633 = vsub.s32 %v2630, %v2632
    %v2634 = vrot.slane %v2626, %v2633
    %v2636 = vunpack.c.l.s4 1934713408
    %v2637 = vunpack.c.0.s8 %v2636
    %v2638 = vlaneseq
    %v2639 = vshrl.u32 %v2638, 7
    %v2640 = vsub.s32 %v2637, %v2639
    %v2641 = vrot.slane %v2627, %v2640
    %v2642 = vcombine.low %v2610, %v2625
    %v2643 = vcombine.high %v2610, %v2625
    %v2645 = vunpack.c.l.s4 1934713408
    %v2646 = vunpack.c.0.s8 %v2645
    %v2647 = vlaneseq
    %v2648 = vshrl.u32 %v2647, 7
    %v2649 = vsub.s32 %v2646, %v2648
    %v2650 = vrot.slane %v2642, %v2649
    %v2652 = vunpack.c.l.s4 1934713408
    %v2653 = vunpack.c.0.s8 %v2652
    %v2654 = vlaneseq
    %v2655 = vshrl.u32 %v2654, 7
    %v2656 = vsub.s32 %v2653, %v2655
    %v2657 = vrot.slane %v2643, %v2656
    %v2658 = vcombine.high %v2634, 0
    %v2659 = vcombine.high %v2641, 0
    %v2660 = vcombine.high %v2650, 0
    %v2661 = vcombine.high %v2657, 0
    %v2662 = vcombine.high %v2586, %v497
    %v2664 = vunpack.c.l.s4 1983009808
    %v2665 = vunpack.c.0.s8 %v2664
    %v2666 = vlaneseq
    %v2667 = vshrl.u32 %v2666, 7
    %v2668 = vsub.s32 %v2665, %v2667
    %v2669 = vrot.slane %v2586, %v2668
    %v2671 = vunpack.c.l.s4 1983009808
    %v2672 = vunpack.c.0.s8 %v2671
    %v2673 = vlaneseq
    %v2674 = vshrl.u32 %v2673, 7
    %v2675 = vsub.s32 %v2672, %v2674
    %v2676 = vrot.slane %v2662, %v2675
    %v2677 = vcombine.high %v2594, %v497
    %v2679 = vunpack.c.l.s4 1983009808
    %v2680 = vunpack.c.0.s8 %v2679
    %v2681 = vlaneseq
    %v2682 = vshrl.u32 %v2681, 7
    %v2683 = vsub.s32 %v2680, %v2682
    %v2684 = vrot.slane %v2594, %v2683
    %v2686 = vunpack.c.l.s4 1983009808
    %v2687 = vunpack.c.0.s8 %v2686
    %v2688 = vlaneseq
    %v2689 = vshrl.u32 %v2688, 7
    %v2690 = vsub.s32 %v2687, %v2689
    %v2691 = vrot.slane %v2677, %v2690
    %v2692 = vcombine.low %v2669, %v2684
    %v2693 = vcombine.high %v2669, %v2684
    %v2695 = vunpack.c.l.s4 1934713408
    %v2696 = vunpack.c.0.s8 %v2695
    %v2697 = vlaneseq
    %v2698 = vshrl.u32 %v2697, 7
    %v2699 = vsub.s32 %v2696, %v2698
    %v2700 = vrot.slane %v2692, %v2699
    %v2702 = vunpack.c.l.s4 1934713408
    %v2703 = vunpack.c.0.s8 %v2702
    %v2704 = vlaneseq
    %v2705 = vshrl.u32 %v2704, 7
    %v2706 = vsub.s32 %v2703, %v2705
    %v2707 = vrot.slane %v2693, %v2706
    %v2708 = vcombine.low %v2676, %v2691
    %v2709 = vcombine.high %v2676, %v2691
    %v2711 = vunpack.c.l.s4 1934713408
    %v2712 = vunpack.c.0.s8 %v2711
    %v2713 = vlaneseq
    %v2714 = vshrl.u32 %v2713, 7
    %v2715 = vsub.s32 %v2712, %v2714
    %v2716 = vrot.slane %v2708, %v2715
    %v2718 = vunpack.c.l.s4 1934713408
    %v2719 = vunpack.c.0.s8 %v2718
    %v2720 = vlaneseq
    %v2721 = vshrl.u32 %v2720, 7
    %v2722 = vsub.s32 %v2719, %v2721
    %v2723 = vrot.slane %v2709, %v2722
    %v2724 = vcombine.high %v2700, 0
    %v2725 = vcombine.high %v2707, 0
    %v2726 = vcombine.high %v2716, 0
    %v2727 = vcombine.high %v2723, 0
    %v2728 = vcombine.low %v2634, %v2641
    %v2730 = vunpack.c.l.s4 1983009808
    %v2731 = vunpack.c.0.s8 %v2730
    %v2732 = vlaneseq
    %v2733 = vshrl.u32 %v2732, 7
    %v2734 = vsub.s32 %v2731, %v2733
    %v2735 = vrot.slane %v2728, %v2734
    %v2736 = vcombine.low %v2658, %v2659
    %v2738 = vunpack.c.l.s4 1983009808
    %v2739 = vunpack.c.0.s8 %v2738
    %v2740 = vlaneseq
    %v2741 = vshrl.u32 %v2740, 7
    %v2742 = vsub.s32 %v2739, %v2741
    %v2743 = vrot.slane %v2736, %v2742
    %v2744 = vcombine.low %v2650, %v2657
    %v2746 = vunpack.c.l.s4 1983009808
    %v2747 = vunpack.c.0.s8 %v2746
    %v2748 = vlaneseq
    %v2749 = vshrl.u32 %v2748, 7
    %v2750 = vsub.s32 %v2747, %v2749
    %v2751 = vrot.slane %v2744, %v2750
    %v2752 = vcombine.low %v2660, %v2661
    %v2754 = vunpack.c.l.s4 1983009808
    %v2755 = vunpack.c.0.s8 %v2754
    %v2756 = vlaneseq
    %v2757 = vshrl.u32 %v2756, 7
    %v2758 = vsub.s32 %v2755, %v2757
    %v2759 = vrot.slane %v2752, %v2758
    %v2760 = vcombine.low %v2735, %v2743
    %v2762 = vunpack.c.l.s4 1934713408
    %v2763 = vunpack.c.0.s8 %v2762
    %v2764 = vlaneseq
    %v2765 = vshrl.u32 %v2764, 7
    %v2766 = vsub.s32 %v2763, %v2765
    %v2767 = vrot.slane %v2760, %v2766
    %v2768 = vcombine.low %v2751, %v2759
    %v2770 = vunpack.c.l.s4 1934713408
    %v2771 = vunpack.c.0.s8 %v2770
    %v2772 = vlaneseq
    %v2773 = vshrl.u32 %v2772, 7
    %v2774 = vsub.s32 %v2771, %v2773
    %v2775 = vrot.slane %v2768, %v2774
    %v2776 = vcombine.low %v2767, %v2775
    %v2777 = vcombine.high %v2767, %v2775
    %v2778 = vcombine.low %v2700, %v2707
    %v2780 = vunpack.c.l.s4 1983009808
    %v2781 = vunpack.c.0.s8 %v2780
    %v2782 = vlaneseq
    %v2783 = vshrl.u32 %v2782, 7
    %v2784 = vsub.s32 %v2781, %v2783
    %v2785 = vrot.slane %v2778, %v2784
    %v2786 = vcombine.low %v2724, %v2725
    %v2788 = vunpack.c.l.s4 1983009808
    %v2789 = vunpack.c.0.s8 %v2788
    %v2790 = vlaneseq
    %v2791 = vshrl.u32 %v2790, 7
    %v2792 = vsub.s32 %v2789, %v2791
    %v2793 = vrot.slane %v2786, %v2792
    %v2794 = vcombine.low %v2716, %v2723
    %v2796 = vunpack.c.l.s4 1983009808
    %v2797 = vunpack.c.0.s8 %v2796
    %v2798 = vlaneseq
    %v2799 = vshrl.u32 %v2798, 7
    %v2800 = vsub.s32 %v2797, %v2799
    %v2801 = vrot.slane %v2794, %v2800
    %v2802 = vcombine.low %v2726, %v2727
    %v2804 = vunpack.c.l.s4 1983009808
    %v2805 = vunpack.c.0.s8 %v2804
    %v2806 = vlaneseq
    %v2807 = vshrl.u32 %v2806, 7
    %v2808 = vsub.s32 %v2805, %v2807
    %v2809 = vrot.slane %v2802, %v2808
    %v2810 = vcombine.low %v2785, %v2793
    %v2812 = vunpack.c.l.s4 1934713408
    %v2813 = vunpack.c.0.s8 %v2812
    %v2814 = vlaneseq
    %v2815 = vshrl.u32 %v2814, 7
    %v2816 = vsub.s32 %v2813, %v2815
    %v2817 = vrot.slane %v2810, %v2816
    %v2818 = vcombine.low %v2801, %v2809
    %v2820 = vunpack.c.l.s4 1934713408
    %v2821 = vunpack.c.0.s8 %v2820
    %v2822 = vlaneseq
    %v2823 = vshrl.u32 %v2822, 7
    %v2824 = vsub.s32 %v2821, %v2823
    %v2825 = vrot.slane %v2818, %v2824
    %v2826 = vcombine.low %v2817, %v2825
    %v2827 = vcombine.high %v2817, %v2825
    %v2830 = vpack.i.b16 %v2826, %v2776
    %v2832 = vshrl.u32 %v2776, 16
    %v2833 = vshrl.u32 %v2826, 16
    %v2834 = vpack.i.b16 %v2833, %v2832
    %v2838 = vpack.i.b16 %v2827, %v2777
    %v2840 = vshrl.u32 %v2777, 16
    %v2841 = vshrl.u32 %v2827, 16
    %v2842 = vpack.i.b16 %v2841, %v2840
    %v2845 = vsel %vm1283, %v2294, 0
    %v2848 = vsel %vm1283, %v2562, 0
    %2850 = vmatprep.subr.bf16.mxu0 0
    %2851 = vmatpush1.bf16.xpose.msra.mxu0 0
    %2852 = vmatprep.subr.bf16.mxu0 0
    %2853 = vmatpush1.bf16.xpose.msra.mxu0 0
    %2854 = vmatprep.subr.bf16.mxu0 0
    %2855 = vmatpush1.bf16.xpose.msra.mxu0 0
    %2856 = vmatprep.subr.bf16.mxu0 0
    %2857 = vmatpush1.bf16.xpose.msra.mxu0 0
    %2858 = vmatprep.subr.bf16.mxu0 0
    %2859 = vmatpush1.bf16.xpose.msra.mxu0 0
    %2860 = vmatprep.subr.bf16.mxu0 0
    %2861 = vmatpush1.bf16.xpose.msra.mxu0 0
    %2862 = vmatprep.subr.bf16.mxu0 0
    %2863 = vmatpush1.bf16.xpose.msra.mxu0 0
    %2864 = vmatprep.subr.bf16.mxu0 0
    %2865 = vmatpush1.bf16.xpose.msra.mxu0 %v2848
    %2866 = vmatprep.subr.bf16.mxu0 0
    %2867 = vmatpush2.bf16.xpose.msra.mxu0 0
    %2868 = vmatprep.subr.bf16.mxu0 0
    %2869 = vmatpush2.bf16.xpose.msra.mxu0 0
    %2870 = vmatprep.subr.bf16.mxu0 0
    %2871 = vmatpush2.bf16.xpose.msra.mxu0 0
    %2872 = vmatprep.subr.bf16.mxu0 0
    %2873 = vmatpush2.bf16.xpose.msra.mxu0 0
    %2874 = vmatprep.subr.bf16.mxu0 0
    %2875 = vmatpush2.bf16.xpose.msra.mxu0 0
    %2876 = vmatprep.subr.bf16.mxu0 0
    %2877 = vmatpush2.bf16.xpose.msra.mxu0 0
    %2878 = vmatprep.subr.bf16.mxu0 0
    %2879 = vmatpush2.bf16.xpose.msra.mxu0 0
    %2880 = vmatprep.subr.bf16.mxu0 0
    %2881 = vmatpush2.bf16.xpose.msra.mxu0 0
    %2882 = vmatprep.mubr.bf16.mxu0 0
    %2883 = vmatmul.mubr.bf16.gmra.mxu0 %v2845
    %v2884 = vpop.f32.mrf.mxu0
    %v2885 = vadd.f32 0.0, %v2884
    %v2886 = vpop.f32.mrf.mxu0
    %v2887 = vpop.f32.mrf.mxu0
    %v2888 = vadd.f32 0.0, %v2887
    %v2889 = vpop.f32.mrf.mxu0
    %2890 = vdwg.mxu0
    %v2892 = vsel %vm1283, %v2297, 0
    %v2895 = vsel %vm1283, %v2565, 0
    %2897 = vmatprep.subr.bf16.mxu0 0
    %2898 = vmatpush1.bf16.xpose.msra.mxu0 0
    %2899 = vmatprep.subr.bf16.mxu0 0
    %2900 = vmatpush1.bf16.xpose.msra.mxu0 0
    %2901 = vmatprep.subr.bf16.mxu0 0
    %2902 = vmatpush1.bf16.xpose.msra.mxu0 0
    %2903 = vmatprep.subr.bf16.mxu0 0
    %2904 = vmatpush1.bf16.xpose.msra.mxu0 0
    %2905 = vmatprep.subr.bf16.mxu0 0
    %2906 = vmatpush1.bf16.xpose.msra.mxu0 0
    %2907 = vmatprep.subr.bf16.mxu0 0
    %2908 = vmatpush1.bf16.xpose.msra.mxu0 0
    %2909 = vmatprep.subr.bf16.mxu0 0
    %2910 = vmatpush1.bf16.xpose.msra.mxu0 0
    %2911 = vmatprep.subr.bf16.mxu0 0
    %2912 = vmatpush1.bf16.xpose.msra.mxu0 %v2895
    %2913 = vmatprep.subr.bf16.mxu0 0
    %2914 = vmatpush2.bf16.xpose.msra.mxu0 0
    %2915 = vmatprep.subr.bf16.mxu0 0
    %2916 = vmatpush2.bf16.xpose.msra.mxu0 0
    %2917 = vmatprep.subr.bf16.mxu0 0
    %2918 = vmatpush2.bf16.xpose.msra.mxu0 0
    %2919 = vmatprep.subr.bf16.mxu0 0
    %2920 = vmatpush2.bf16.xpose.msra.mxu0 0
    %2921 = vmatprep.subr.bf16.mxu0 0
    %2922 = vmatpush2.bf16.xpose.msra.mxu0 0
    %2923 = vmatprep.subr.bf16.mxu0 0
    %2924 = vmatpush2.bf16.xpose.msra.mxu0 0
    %2925 = vmatprep.subr.bf16.mxu0 0
    %2926 = vmatpush2.bf16.xpose.msra.mxu0 0
    %2927 = vmatprep.subr.bf16.mxu0 0
    %2928 = vmatpush2.bf16.xpose.msra.mxu0 0
    %2929 = vmatprep.mubr.bf16.mxu0 0
    %2930 = vmatmul.mubr.bf16.gmra.mxu0 %v2892
    %v2931 = vpop.f32.mrf.mxu0
    %v2932 = vadd.f32 0.0, %v2931
    %v2933 = vpop.f32.mrf.mxu0
    %v2934 = vpop.f32.mrf.mxu0
    %v2935 = vadd.f32 0.0, %v2934
    %v2936 = vpop.f32.mrf.mxu0
    %2937 = vdwg.mxu0
    %v2939 = vsel %vm1283, %v2300, 0
    %v2942 = vsel %vm1283, %v2568, 0
    %2944 = vmatprep.subr.bf16.mxu0 0
    %2945 = vmatpush1.bf16.xpose.msra.mxu0 0
    %2946 = vmatprep.subr.bf16.mxu0 0
    %2947 = vmatpush1.bf16.xpose.msra.mxu0 0
    %2948 = vmatprep.subr.bf16.mxu0 0
    %2949 = vmatpush1.bf16.xpose.msra.mxu0 0
    %2950 = vmatprep.subr.bf16.mxu0 0
    %2951 = vmatpush1.bf16.xpose.msra.mxu0 0
    %2952 = vmatprep.subr.bf16.mxu0 0
    %2953 = vmatpush1.bf16.xpose.msra.mxu0 0
    %2954 = vmatprep.subr.bf16.mxu0 0
    %2955 = vmatpush1.bf16.xpose.msra.mxu0 0
    %2956 = vmatprep.subr.bf16.mxu0 0
    %2957 = vmatpush1.bf16.xpose.msra.mxu0 0
    %2958 = vmatprep.subr.bf16.mxu0 0
    %2959 = vmatpush1.bf16.xpose.msra.mxu0 %v2942
    %2960 = vmatprep.subr.bf16.mxu0 0
    %2961 = vmatpush2.bf16.xpose.msra.mxu0 0
    %2962 = vmatprep.subr.bf16.mxu0 0
    %2963 = vmatpush2.bf16.xpose.msra.mxu0 0
    %2964 = vmatprep.subr.bf16.mxu0 0
    %2965 = vmatpush2.bf16.xpose.msra.mxu0 0
    %2966 = vmatprep.subr.bf16.mxu0 0
    %2967 = vmatpush2.bf16.xpose.msra.mxu0 0
    %2968 = vmatprep.subr.bf16.mxu0 0
    %2969 = vmatpush2.bf16.xpose.msra.mxu0 0
    %2970 = vmatprep.subr.bf16.mxu0 0
    %2971 = vmatpush2.bf16.xpose.msra.mxu0 0
    %2972 = vmatprep.subr.bf16.mxu0 0
    %2973 = vmatpush2.bf16.xpose.msra.mxu0 0
    %2974 = vmatprep.subr.bf16.mxu0 0
    %2975 = vmatpush2.bf16.xpose.msra.mxu0 0
    %2976 = vmatprep.mubr.bf16.mxu0 0
    %2977 = vmatmul.mubr.bf16.gmra.mxu0 %v2939
    %v2978 = vpop.f32.mrf.mxu0
    %v2979 = vadd.f32 0.0, %v2978
    %v2980 = vpop.f32.mrf.mxu0
    %v2981 = vpop.f32.mrf.mxu0
    %v2982 = vadd.f32 0.0, %v2981
    %v2983 = vpop.f32.mrf.mxu0
    %2984 = vdwg.mxu0
    %v2986 = vsel %vm1283, %v2303, 0
    %v2989 = vsel %vm1283, %v2571, 0
    %2991 = vmatprep.subr.bf16.mxu0 0
    %2992 = vmatpush1.bf16.xpose.msra.mxu0 0
    %2993 = vmatprep.subr.bf16.mxu0 0
    %2994 = vmatpush1.bf16.xpose.msra.mxu0 0
    %2995 = vmatprep.subr.bf16.mxu0 0
    %2996 = vmatpush1.bf16.xpose.msra.mxu0 0
    %2997 = vmatprep.subr.bf16.mxu0 0
    %2998 = vmatpush1.bf16.xpose.msra.mxu0 0
    %2999 = vmatprep.subr.bf16.mxu0 0
    %3000 = vmatpush1.bf16.xpose.msra.mxu0 0
    %3001 = vmatprep.subr.bf16.mxu0 0
    %3002 = vmatpush1.bf16.xpose.msra.mxu0 0
    %3003 = vmatprep.subr.bf16.mxu0 0
    %3004 = vmatpush1.bf16.xpose.msra.mxu0 0
    %3005 = vmatprep.subr.bf16.mxu0 0
    %3006 = vmatpush1.bf16.xpose.msra.mxu0 %v2989
    %3007 = vmatprep.subr.bf16.mxu0 0
    %3008 = vmatpush2.bf16.xpose.msra.mxu0 0
    %3009 = vmatprep.subr.bf16.mxu0 0
    %3010 = vmatpush2.bf16.xpose.msra.mxu0 0
    %3011 = vmatprep.subr.bf16.mxu0 0
    %3012 = vmatpush2.bf16.xpose.msra.mxu0 0
    %3013 = vmatprep.subr.bf16.mxu0 0
    %3014 = vmatpush2.bf16.xpose.msra.mxu0 0
    %3015 = vmatprep.subr.bf16.mxu0 0
    %3016 = vmatpush2.bf16.xpose.msra.mxu0 0
    %3017 = vmatprep.subr.bf16.mxu0 0
    %3018 = vmatpush2.bf16.xpose.msra.mxu0 0
    %3019 = vmatprep.subr.bf16.mxu0 0
    %3020 = vmatpush2.bf16.xpose.msra.mxu0 0
    %3021 = vmatprep.subr.bf16.mxu0 0
    %3022 = vmatpush2.bf16.xpose.msra.mxu0 0
    %3023 = vmatprep.mubr.bf16.mxu0 0
    %3024 = vmatmul.mubr.bf16.gmra.mxu0 %v2986
    %v3025 = vpop.f32.mrf.mxu0
    %v3026 = vadd.f32 0.0, %v3025
    %v3027 = vpop.f32.mrf.mxu0
    %v3028 = vpop.f32.mrf.mxu0
    %v3029 = vadd.f32 0.0, %v3028
    %v3030 = vpop.f32.mrf.mxu0
    %3031 = vdwg.mxu0
    %v3032 = vsel %vm1472, %v2885, -inf
    %3033 = vmax.xlane.f32.xlu0 %v3032
    %v3034 = vpop.xlane.xlu0 %3033
    %v3035 = vsel %vm1472, %v2888, -inf
    %3036 = vmax.xlane.f32.xlu0 %v3035
    %v3037 = vpop.xlane.xlu0 %3036
    %v3038 = vsel %vm1472, %v2932, -inf
    %3039 = vmax.xlane.f32.xlu0 %v3038
    %v3040 = vpop.xlane.xlu0 %3039
    %v3041 = vsel %vm1472, %v2935, -inf
    %3042 = vmax.xlane.f32.xlu0 %v3041
    %v3043 = vpop.xlane.xlu0 %3042
    %v3044 = vsel %vm1472, %v2979, -inf
    %3045 = vmax.xlane.f32.xlu0 %v3044
    %v3046 = vpop.xlane.xlu0 %3045
    %v3047 = vsel %vm1472, %v2982, -inf
    %3048 = vmax.xlane.f32.xlu0 %v3047
    %v3049 = vpop.xlane.xlu0 %3048
    %v3050 = vsel %vm1472, %v3026, -inf
    %3051 = vmax.xlane.f32.xlu0 %v3050
    %v3052 = vpop.xlane.xlu0 %3051
    %v3053 = vsel %vm1472, %v3029, -inf
    %3054 = vmax.xlane.f32.xlu0 %v3053
    %v3055 = vpop.xlane.xlu0 %3054
    %v3056 = vsub.f32 %v2885, %v3034
    %v3057 = vsub.f32 %v2888, %v3037
    %v3058 = vsub.f32 %v2932, %v3040
    %v3059 = vsub.f32 %v2935, %v3043
    %v3060 = vsub.f32 %v2979, %v3046
    %v3061 = vsub.f32 %v2982, %v3049
    %v3062 = vsub.f32 %v3026, %v3052
    %v3063 = vsub.f32 %v3029, %v3055
    %v3064 = vmul.f32 %v3056, 1.442695
    %v3065 = vpow.pop %v3064
    %v3066 = vmul.f32 %v3057, 1.442695
    %v3067 = vpow.pop %v3066
    %v3068 = vmul.f32 %v3058, 1.442695
    %v3069 = vpow.pop %v3068
    %v3070 = vmul.f32 %v3059, 1.442695
    %v3071 = vpow.pop %v3070
    %v3072 = vmul.f32 %v3060, 1.442695
    %v3073 = vpow.pop %v3072
    %v3074 = vmul.f32 %v3061, 1.442695
    %v3075 = vpow.pop %v3074
    %v3076 = vmul.f32 %v3062, 1.442695
    %v3077 = vpow.pop %v3076
    %v3078 = vmul.f32 %v3063, 1.442695
    %v3079 = vpow.pop %v3078
    %v3080 = vsel %vm1472, %v3065, 0.0
    %3081 = vadd.xlane.f32.xlu0 %v3080
    %v3082 = vpop.xlane.xlu0 %3081
    %v3083 = vsel %vm1472, %v3067, 0.0
    %3084 = vadd.xlane.f32.xlu0 %v3083
    %v3085 = vpop.xlane.xlu0 %3084
    %v3086 = vsel %vm1472, %v3069, 0.0
    %3087 = vadd.xlane.f32.xlu0 %v3086
    %v3088 = vpop.xlane.xlu0 %3087
    %v3089 = vsel %vm1472, %v3071, 0.0
    %3090 = vadd.xlane.f32.xlu0 %v3089
    %v3091 = vpop.xlane.xlu0 %3090
    %v3092 = vsel %vm1472, %v3073, 0.0
    %3093 = vadd.xlane.f32.xlu0 %v3092
    %v3094 = vpop.xlane.xlu0 %3093
    %v3095 = vsel %vm1472, %v3075, 0.0
    %3096 = vadd.xlane.f32.xlu0 %v3095
    %v3097 = vpop.xlane.xlu0 %3096
    %v3098 = vsel %vm1472, %v3077, 0.0
    %3099 = vadd.xlane.f32.xlu0 %v3098
    %v3100 = vpop.xlane.xlu0 %3099
    %v3101 = vsel %vm1472, %v3079, 0.0
    %3102 = vadd.xlane.f32.xlu0 %v3101
    %v3103 = vpop.xlane.xlu0 %3102
    %v3104 = vrcp.pop %v3082
    %v3105 = vrcp.pop %v3085
    %v3106 = vrcp.pop %v3088
    %v3107 = vrcp.pop %v3091
    %v3108 = vrcp.pop %v3094
    %v3109 = vrcp.pop %v3097
    %v3110 = vrcp.pop %v3100
    %v3111 = vrcp.pop %v3103
    %v3112 = vmul.f32 %v3065, %v3104
    %v3113 = vmul.f32 %v3067, %v3105
    %v3114 = vmul.f32 %v3069, %v3106
    %v3115 = vmul.f32 %v3071, %v3107
    %v3116 = vmul.f32 %v3073, %v3108
    %v3117 = vmul.f32 %v3075, %v3109
    %v3118 = vmul.f32 %v3077, %v3110
    %v3119 = vmul.f32 %v3079, %v3111
    %v3120 = vpack.c.bf16 %v3113, %v3112
    %v3121 = vpack.c.bf16 %v3115, %v3114
    %v3122 = vpack.c.bf16 %v3117, %v3116
    %v3123 = vpack.c.bf16 %v3119, %v3118
    %v3125 = vsel %vm1472, %v3120, 0
    %3127 = vmatprep.subr.bf16.mxu0 0
    %3128 = vmatpush1.bf16.msra.mxu0 0
    %3129 = vmatprep.subr.bf16.mxu0 0
    %3130 = vmatpush1.bf16.msra.mxu0 0
    %3131 = vmatprep.subr.bf16.mxu0 0
    %3132 = vmatpush1.bf16.msra.mxu0 0
    %3133 = vmatprep.subr.bf16.mxu0 0
    %3134 = vmatpush1.bf16.msra.mxu0 0
    %3135 = vmatprep.subr.bf16.mxu0 0
    %3136 = vmatpush1.bf16.msra.mxu0 0
    %3137 = vmatprep.subr.bf16.mxu0 0
    %3138 = vmatpush1.bf16.msra.mxu0 0
    %3139 = vmatprep.subr.bf16.mxu0 0
    %3140 = vmatpush1.bf16.msra.mxu0 0
    %3141 = vmatprep.subr.bf16.mxu0 0
    %3142 = vmatpush1.bf16.msra.mxu0 %v2830
    %3143 = vmatprep.subr.bf16.mxu0 0
    %3144 = vmatpush2.bf16.msra.mxu0 0
    %3145 = vmatprep.subr.bf16.mxu0 0
    %3146 = vmatpush2.bf16.msra.mxu0 0
    %3147 = vmatprep.subr.bf16.mxu0 0
    %3148 = vmatpush2.bf16.msra.mxu0 0
    %3149 = vmatprep.subr.bf16.mxu0 0
    %3150 = vmatpush2.bf16.msra.mxu0 0
    %3151 = vmatprep.subr.bf16.mxu0 0
    %3152 = vmatpush2.bf16.msra.mxu0 0
    %3153 = vmatprep.subr.bf16.mxu0 0
    %3154 = vmatpush2.bf16.msra.mxu0 0
    %3155 = vmatprep.subr.bf16.mxu0 0
    %3156 = vmatpush2.bf16.msra.mxu0 0
    %3157 = vmatprep.subr.bf16.mxu0 0
    %3158 = vmatpush2.bf16.msra.mxu0 0
    %3159 = vmatprep.mubr.bf16.mxu0 0
    %3160 = vmatmul.mubr.bf16.gmra.mxu0 %v3125
    %v3161 = vpop.f32.mrf.mxu0
    %v3162 = vadd.f32 0.0, %v3161
    %v3163 = vpop.f32.mrf.mxu0
    %v3164 = vpop.f32.mrf.mxu0
    %v3165 = vadd.f32 0.0, %v3164
    %v3166 = vpop.f32.mrf.mxu0
    %3167 = vdwg.mxu0
    %v3169 = vsel %vm1472, %v3121, 0
    %3171 = vmatprep.subr.bf16.mxu0 0
    %3172 = vmatpush1.bf16.msra.mxu0 0
    %3173 = vmatprep.subr.bf16.mxu0 0
    %3174 = vmatpush1.bf16.msra.mxu0 0
    %3175 = vmatprep.subr.bf16.mxu0 0
    %3176 = vmatpush1.bf16.msra.mxu0 0
    %3177 = vmatprep.subr.bf16.mxu0 0
    %3178 = vmatpush1.bf16.msra.mxu0 0
    %3179 = vmatprep.subr.bf16.mxu0 0
    %3180 = vmatpush1.bf16.msra.mxu0 0
    %3181 = vmatprep.subr.bf16.mxu0 0
    %3182 = vmatpush1.bf16.msra.mxu0 0
    %3183 = vmatprep.subr.bf16.mxu0 0
    %3184 = vmatpush1.bf16.msra.mxu0 0
    %3185 = vmatprep.subr.bf16.mxu0 0
    %3186 = vmatpush1.bf16.msra.mxu0 %v2834
    %3187 = vmatprep.subr.bf16.mxu0 0
    %3188 = vmatpush2.bf16.msra.mxu0 0
    %3189 = vmatprep.subr.bf16.mxu0 0
    %3190 = vmatpush2.bf16.msra.mxu0 0
    %3191 = vmatprep.subr.bf16.mxu0 0
    %3192 = vmatpush2.bf16.msra.mxu0 0
    %3193 = vmatprep.subr.bf16.mxu0 0
    %3194 = vmatpush2.bf16.msra.mxu0 0
    %3195 = vmatprep.subr.bf16.mxu0 0
    %3196 = vmatpush2.bf16.msra.mxu0 0
    %3197 = vmatprep.subr.bf16.mxu0 0
    %3198 = vmatpush2.bf16.msra.mxu0 0
    %3199 = vmatprep.subr.bf16.mxu0 0
    %3200 = vmatpush2.bf16.msra.mxu0 0
    %3201 = vmatprep.subr.bf16.mxu0 0
    %3202 = vmatpush2.bf16.msra.mxu0 0
    %3203 = vmatprep.mubr.bf16.mxu0 0
    %3204 = vmatmul.mubr.bf16.gmra.mxu0 %v3169
    %v3205 = vpop.f32.mrf.mxu0
    %v3206 = vadd.f32 0.0, %v3205
    %v3207 = vpop.f32.mrf.mxu0
    %v3208 = vpop.f32.mrf.mxu0
    %v3209 = vadd.f32 0.0, %v3208
    %v3210 = vpop.f32.mrf.mxu0
    %3211 = vdwg.mxu0
    %v3213 = vsel %vm1472, %v3122, 0
    %3215 = vmatprep.subr.bf16.mxu0 0
    %3216 = vmatpush1.bf16.msra.mxu0 0
    %3217 = vmatprep.subr.bf16.mxu0 0
    %3218 = vmatpush1.bf16.msra.mxu0 0
    %3219 = vmatprep.subr.bf16.mxu0 0
    %3220 = vmatpush1.bf16.msra.mxu0 0
    %3221 = vmatprep.subr.bf16.mxu0 0
    %3222 = vmatpush1.bf16.msra.mxu0 0
    %3223 = vmatprep.subr.bf16.mxu0 0
    %3224 = vmatpush1.bf16.msra.mxu0 0
    %3225 = vmatprep.subr.bf16.mxu0 0
    %3226 = vmatpush1.bf16.msra.mxu0 0
    %3227 = vmatprep.subr.bf16.mxu0 0
    %3228 = vmatpush1.bf16.msra.mxu0 0
    %3229 = vmatprep.subr.bf16.mxu0 0
    %3230 = vmatpush1.bf16.msra.mxu0 %v2838
    %3231 = vmatprep.subr.bf16.mxu0 0
    %3232 = vmatpush2.bf16.msra.mxu0 0
    %3233 = vmatprep.subr.bf16.mxu0 0
    %3234 = vmatpush2.bf16.msra.mxu0 0
    %3235 = vmatprep.subr.bf16.mxu0 0
    %3236 = vmatpush2.bf16.msra.mxu0 0
    %3237 = vmatprep.subr.bf16.mxu0 0
    %3238 = vmatpush2.bf16.msra.mxu0 0
    %3239 = vmatprep.subr.bf16.mxu0 0
    %3240 = vmatpush2.bf16.msra.mxu0 0
    %3241 = vmatprep.subr.bf16.mxu0 0
    %3242 = vmatpush2.bf16.msra.mxu0 0
    %3243 = vmatprep.subr.bf16.mxu0 0
    %3244 = vmatpush2.bf16.msra.mxu0 0
    %3245 = vmatprep.subr.bf16.mxu0 0
    %3246 = vmatpush2.bf16.msra.mxu0 0
    %3247 = vmatprep.mubr.bf16.mxu0 0
    %3248 = vmatmul.mubr.bf16.gmra.mxu0 %v3213
    %v3249 = vpop.f32.mrf.mxu0
    %v3250 = vadd.f32 0.0, %v3249
    %v3251 = vpop.f32.mrf.mxu0
    %v3252 = vpop.f32.mrf.mxu0
    %v3253 = vadd.f32 0.0, %v3252
    %v3254 = vpop.f32.mrf.mxu0
    %3255 = vdwg.mxu0
    %v3257 = vsel %vm1472, %v3123, 0
    %3259 = vmatprep.subr.bf16.mxu0 0
    %3260 = vmatpush1.bf16.msra.mxu0 0
    %3261 = vmatprep.subr.bf16.mxu0 0
    %3262 = vmatpush1.bf16.msra.mxu0 0
    %3263 = vmatprep.subr.bf16.mxu0 0
    %3264 = vmatpush1.bf16.msra.mxu0 0
    %3265 = vmatprep.subr.bf16.mxu0 0
    %3266 = vmatpush1.bf16.msra.mxu0 0
    %3267 = vmatprep.subr.bf16.mxu0 0
    %3268 = vmatpush1.bf16.msra.mxu0 0
    %3269 = vmatprep.subr.bf16.mxu0 0
    %3270 = vmatpush1.bf16.msra.mxu0 0
    %3271 = vmatprep.subr.bf16.mxu0 0
    %3272 = vmatpush1.bf16.msra.mxu0 0
    %3273 = vmatprep.subr.bf16.mxu0 0
    %3274 = vmatpush1.bf16.msra.mxu0 %v2842
    %3275 = vmatprep.subr.bf16.mxu0 0
    %3276 = vmatpush2.bf16.msra.mxu0 0
    %3277 = vmatprep.subr.bf16.mxu0 0
    %3278 = vmatpush2.bf16.msra.mxu0 0
    %3279 = vmatprep.subr.bf16.mxu0 0
    %3280 = vmatpush2.bf16.msra.mxu0 0
    %3281 = vmatprep.subr.bf16.mxu0 0
    %3282 = vmatpush2.bf16.msra.mxu0 0
    %3283 = vmatprep.subr.bf16.mxu0 0
    %3284 = vmatpush2.bf16.msra.mxu0 0
    %3285 = vmatprep.subr.bf16.mxu0 0
    %3286 = vmatpush2.bf16.msra.mxu0 0
    %3287 = vmatprep.subr.bf16.mxu0 0
    %3288 = vmatpush2.bf16.msra.mxu0 0
    %3289 = vmatprep.subr.bf16.mxu0 0
    %3290 = vmatpush2.bf16.msra.mxu0 0
    %3291 = vmatprep.mubr.bf16.mxu0 0
    %3292 = vmatmul.mubr.bf16.gmra.mxu0 %v3257
    %v3293 = vpop.f32.mrf.mxu0
    %v3294 = vadd.f32 0.0, %v3293
    %v3295 = vpop.f32.mrf.mxu0
    %v3296 = vpop.f32.mrf.mxu0
    %v3297 = vadd.f32 0.0, %v3296
    %v3298 = vpop.f32.mrf.mxu0
    %3299 = vdwg.mxu0
    %v3300 = vpack.c.bf16 %v3165, %v3162
    %v3301 = vpack.c.bf16 %v3209, %v3206
    %v3302 = vpack.c.bf16 %v3253, %v3250
    %v3303 = vpack.c.bf16 %v3297, %v3294
    %v3306 = vpack.i.b16 %v3301, %v3300
    %v3308 = vshrl.u32 %v3300, 16
    %v3309 = vshrl.u32 %v3301, 16
    %v3310 = vpack.i.b16 %v3309, %v3308
    %v3314 = vpack.i.b16 %v3303, %v3302
    %v3316 = vshrl.u32 %v3302, 16
    %v3317 = vshrl.u32 %v3303, 16
    %v3318 = vpack.i.b16 %v3317, %v3316
    %v3320 = vcombine.high %v3306, %v494
    %v3322 = vunpack.c.l.s4 1983009808
    %v3323 = vunpack.c.0.s8 %v3322
    %v3324 = vlaneseq
    %v3325 = vshrl.u32 %v3324, 7
    %v3326 = vsub.s32 %v3323, %v3325
    %v3327 = vrot.slane %v3306, %v3326
    %v3329 = vunpack.c.l.s4 1983009808
    %v3330 = vunpack.c.0.s8 %v3329
    %v3331 = vlaneseq
    %v3332 = vshrl.u32 %v3331, 7
    %v3333 = vsub.s32 %v3330, %v3332
    %v3334 = vrot.slane %v3320, %v3333
    %v3335 = vcombine.high %v3314, %v494
    %v3337 = vunpack.c.l.s4 1983009808
    %v3338 = vunpack.c.0.s8 %v3337
    %v3339 = vlaneseq
    %v3340 = vshrl.u32 %v3339, 7
    %v3341 = vsub.s32 %v3338, %v3340
    %v3342 = vrot.slane %v3314, %v3341
    %v3344 = vunpack.c.l.s4 1983009808
    %v3345 = vunpack.c.0.s8 %v3344
    %v3346 = vlaneseq
    %v3347 = vshrl.u32 %v3346, 7
    %v3348 = vsub.s32 %v3345, %v3347
    %v3349 = vrot.slane %v3335, %v3348
    %v3350 = vcombine.low %v3327, %v3342
    %v3351 = vcombine.high %v3327, %v3342
    %v3353 = vunpack.c.l.s4 1934713408
    %v3354 = vunpack.c.0.s8 %v3353
    %v3355 = vlaneseq
    %v3356 = vshrl.u32 %v3355, 7
    %v3357 = vsub.s32 %v3354, %v3356
    %v3358 = vrot.slane %v3350, %v3357
    %v3360 = vunpack.c.l.s4 1934713408
    %v3361 = vunpack.c.0.s8 %v3360
    %v3362 = vlaneseq
    %v3363 = vshrl.u32 %v3362, 7
    %v3364 = vsub.s32 %v3361, %v3363
    %v3365 = vrot.slane %v3351, %v3364
    %v3366 = vcombine.low %v3334, %v3349
    %v3367 = vcombine.high %v3334, %v3349
    %v3369 = vunpack.c.l.s4 1934713408
    %v3370 = vunpack.c.0.s8 %v3369
    %v3371 = vlaneseq
    %v3372 = vshrl.u32 %v3371, 7
    %v3373 = vsub.s32 %v3370, %v3372
    %v3374 = vrot.slane %v3366, %v3373
    %v3376 = vunpack.c.l.s4 1934713408
    %v3377 = vunpack.c.0.s8 %v3376
    %v3378 = vlaneseq
    %v3379 = vshrl.u32 %v3378, 7
    %v3380 = vsub.s32 %v3377, %v3379
    %v3381 = vrot.slane %v3367, %v3380
    %v3382 = vcombine.high %v3358, 0
    %v3383 = vcombine.high %v3365, 0
    %v3384 = vcombine.high %v3374, 0
    %v3385 = vcombine.high %v3381, 0
    %v3386 = vcombine.high %v3310, %v497
    %v3388 = vunpack.c.l.s4 1983009808
    %v3389 = vunpack.c.0.s8 %v3388
    %v3390 = vlaneseq
    %v3391 = vshrl.u32 %v3390, 7
    %v3392 = vsub.s32 %v3389, %v3391
    %v3393 = vrot.slane %v3310, %v3392
    %v3395 = vunpack.c.l.s4 1983009808
    %v3396 = vunpack.c.0.s8 %v3395
    %v3397 = vlaneseq
    %v3398 = vshrl.u32 %v3397, 7
    %v3399 = vsub.s32 %v3396, %v3398
    %v3400 = vrot.slane %v3386, %v3399
    %v3401 = vcombine.high %v3318, %v497
    %v3403 = vunpack.c.l.s4 1983009808
    %v3404 = vunpack.c.0.s8 %v3403
    %v3405 = vlaneseq
    %v3406 = vshrl.u32 %v3405, 7
    %v3407 = vsub.s32 %v3404, %v3406
    %v3408 = vrot.slane %v3318, %v3407
    %v3410 = vunpack.c.l.s4 1983009808
    %v3411 = vunpack.c.0.s8 %v3410
    %v3412 = vlaneseq
    %v3413 = vshrl.u32 %v3412, 7
    %v3414 = vsub.s32 %v3411, %v3413
    %v3415 = vrot.slane %v3401, %v3414
    %v3416 = vcombine.low %v3393, %v3408
    %v3417 = vcombine.high %v3393, %v3408
    %v3419 = vunpack.c.l.s4 1934713408
    %v3420 = vunpack.c.0.s8 %v3419
    %v3421 = vlaneseq
    %v3422 = vshrl.u32 %v3421, 7
    %v3423 = vsub.s32 %v3420, %v3422
    %v3424 = vrot.slane %v3416, %v3423
    %v3426 = vunpack.c.l.s4 1934713408
    %v3427 = vunpack.c.0.s8 %v3426
    %v3428 = vlaneseq
    %v3429 = vshrl.u32 %v3428, 7
    %v3430 = vsub.s32 %v3427, %v3429
    %v3431 = vrot.slane %v3417, %v3430
    %v3432 = vcombine.low %v3400, %v3415
    %v3433 = vcombine.high %v3400, %v3415
    %v3435 = vunpack.c.l.s4 1934713408
    %v3436 = vunpack.c.0.s8 %v3435
    %v3437 = vlaneseq
    %v3438 = vshrl.u32 %v3437, 7
    %v3439 = vsub.s32 %v3436, %v3438
    %v3440 = vrot.slane %v3432, %v3439
    %v3442 = vunpack.c.l.s4 1934713408
    %v3443 = vunpack.c.0.s8 %v3442
    %v3444 = vlaneseq
    %v3445 = vshrl.u32 %v3444, 7
    %v3446 = vsub.s32 %v3443, %v3445
    %v3447 = vrot.slane %v3433, %v3446
    %v3448 = vcombine.high %v3424, 0
    %v3449 = vcombine.high %v3431, 0
    %v3450 = vcombine.high %v3440, 0
    %v3451 = vcombine.high %v3447, 0
    %v3452 = vcombine.low %v3358, %v3365
    %v3454 = vunpack.c.l.s4 1983009808
    %v3455 = vunpack.c.0.s8 %v3454
    %v3456 = vlaneseq
    %v3457 = vshrl.u32 %v3456, 7
    %v3458 = vsub.s32 %v3455, %v3457
    %v3459 = vrot.slane %v3452, %v3458
    %v3460 = vcombine.low %v3382, %v3383
    %v3462 = vunpack.c.l.s4 1983009808
    %v3463 = vunpack.c.0.s8 %v3462
    %v3464 = vlaneseq
    %v3465 = vshrl.u32 %v3464, 7
    %v3466 = vsub.s32 %v3463, %v3465
    %v3467 = vrot.slane %v3460, %v3466
    %v3468 = vcombine.low %v3374, %v3381
    %v3470 = vunpack.c.l.s4 1983009808
    %v3471 = vunpack.c.0.s8 %v3470
    %v3472 = vlaneseq
    %v3473 = vshrl.u32 %v3472, 7
    %v3474 = vsub.s32 %v3471, %v3473
    %v3475 = vrot.slane %v3468, %v3474
    %v3476 = vcombine.low %v3384, %v3385
    %v3478 = vunpack.c.l.s4 1983009808
    %v3479 = vunpack.c.0.s8 %v3478
    %v3480 = vlaneseq
    %v3481 = vshrl.u32 %v3480, 7
    %v3482 = vsub.s32 %v3479, %v3481
    %v3483 = vrot.slane %v3476, %v3482
    %v3484 = vcombine.low %v3459, %v3467
    %v3486 = vunpack.c.l.s4 1934713408
    %v3487 = vunpack.c.0.s8 %v3486
    %v3488 = vlaneseq
    %v3489 = vshrl.u32 %v3488, 7
    %v3490 = vsub.s32 %v3487, %v3489
    %v3491 = vrot.slane %v3484, %v3490
    %v3492 = vcombine.low %v3475, %v3483
    %v3494 = vunpack.c.l.s4 1934713408
    %v3495 = vunpack.c.0.s8 %v3494
    %v3496 = vlaneseq
    %v3497 = vshrl.u32 %v3496, 7
    %v3498 = vsub.s32 %v3495, %v3497
    %v3499 = vrot.slane %v3492, %v3498
    %v3500 = vcombine.low %v3491, %v3499
    %v3501 = vcombine.high %v3491, %v3499
    %v3502 = vcombine.low %v3424, %v3431
    %v3504 = vunpack.c.l.s4 1983009808
    %v3505 = vunpack.c.0.s8 %v3504
    %v3506 = vlaneseq
    %v3507 = vshrl.u32 %v3506, 7
    %v3508 = vsub.s32 %v3505, %v3507
    %v3509 = vrot.slane %v3502, %v3508
    %v3510 = vcombine.low %v3448, %v3449
    %v3512 = vunpack.c.l.s4 1983009808
    %v3513 = vunpack.c.0.s8 %v3512
    %v3514 = vlaneseq
    %v3515 = vshrl.u32 %v3514, 7
    %v3516 = vsub.s32 %v3513, %v3515
    %v3517 = vrot.slane %v3510, %v3516
    %v3518 = vcombine.low %v3440, %v3447
    %v3520 = vunpack.c.l.s4 1983009808
    %v3521 = vunpack.c.0.s8 %v3520
    %v3522 = vlaneseq
    %v3523 = vshrl.u32 %v3522, 7
    %v3524 = vsub.s32 %v3521, %v3523
    %v3525 = vrot.slane %v3518, %v3524
    %v3526 = vcombine.low %v3450, %v3451
    %v3528 = vunpack.c.l.s4 1983009808
    %v3529 = vunpack.c.0.s8 %v3528
    %v3530 = vlaneseq
    %v3531 = vshrl.u32 %v3530, 7
    %v3532 = vsub.s32 %v3529, %v3531
    %v3533 = vrot.slane %v3526, %v3532
    %v3534 = vcombine.low %v3509, %v3517
    %v3536 = vunpack.c.l.s4 1934713408
    %v3537 = vunpack.c.0.s8 %v3536
    %v3538 = vlaneseq
    %v3539 = vshrl.u32 %v3538, 7
    %v3540 = vsub.s32 %v3537, %v3539
    %v3541 = vrot.slane %v3534, %v3540
    %v3542 = vcombine.low %v3525, %v3533
    %v3544 = vunpack.c.l.s4 1934713408
    %v3545 = vunpack.c.0.s8 %v3544
    %v3546 = vlaneseq
    %v3547 = vshrl.u32 %v3546, 7
    %v3548 = vsub.s32 %v3545, %v3547
    %v3549 = vrot.slane %v3542, %v3548
    %v3550 = vcombine.low %v3541, %v3549
    %v3551 = vcombine.high %v3541, %v3549
    %v3554 = vpack.i.b16 %v3550, %v3500
    %v3555 = vshrl.u32 %v3500, 16
    %v3556 = vshrl.u32 %v3550, 16
    %v3557 = vpack.i.b16 %v3556, %v3555
    %v3560 = vpack.i.b16 %v3551, %v3501
    %v3561 = vshrl.u32 %v3501, 16
    %v3562 = vshrl.u32 %v3551, 16
    %v3563 = vpack.i.b16 %v3562, %v3561
    %3564 = vrot.lane.b32.xlu0 %v3557, 32
    %v3565 = vpop.permute.xlu0 %3564
    %3566 = vrot.lane.b32.xlu0 %v3560, 64
    %v3567 = vpop.permute.xlu0 %3566
    %3568 = vrot.lane.b32.xlu0 %v3563, 96
    %v3569 = vpop.permute.xlu0 %3568
    %v3572 = vsel %vm1283, %v3554, %v3565
    %v3574 = vsel %vm2014, %v3572, %v3567
    %v3576 = vsel %vm2017, %v3574, %v3569
    %v3578 = vld [vmem:[#allocation9] sm:$0xf]
    %v3579 = vld [vmem:[#allocation9 + $0x4] sm:$0xf]
    %v3580 = vld [vmem:[#allocation9 + $0x8] sm:$0xf]
    %v3581 = vld [vmem:[#allocation9 + $0xc] sm:$0xf]
    %v3582 = vld [vmem:[#allocation9 + $0x10] sm:$0xf]
    %v3583 = vld [vmem:[#allocation9 + $0x14] sm:$0xf]
    %v3584 = vld [vmem:[#allocation9 + $0x18] sm:$0xf]
    %v3585 = vld [vmem:[#allocation9 + $0x1c] sm:$0xf]
    %v3586 = vld [vmem:[#allocation9 + $0x20] sm:$0xf]
    %v3587 = vld [vmem:[#allocation9 + $0x24] sm:$0xf]
    %v3588 = vld [vmem:[#allocation9 + $0x28] sm:$0xf]
    %v3589 = vld [vmem:[#allocation9 + $0x2c] sm:$0xf]
    %v3590 = vld [vmem:[#allocation9 + $0x30] sm:$0xf]
    %v3591 = vld [vmem:[#allocation9 + $0x34] sm:$0xf]
    %v3592 = vld [vmem:[#allocation9 + $0x38] sm:$0xf]
    %v3593 = vld [vmem:[#allocation9 + $0x3c] sm:$0xf]
    %v3594 = vld [vmem:[%s6] sm:$0x1]
    %v3596 = vlaneseq
    %v3597 = vshrl.u32 %v3596, 7
    %v3598 = vsub.s32 0, %v3597
    %v3599 = vrot.slane %v3594, %v3598
    %v3617 = vunpack.c.l.b16 %v3578
    %v3618 = vunpack.c.l.b16 %v3579
    %v3619 = vunpack.c.l.b16 %v3580
    %v3620 = vunpack.c.l.b16 %v3581
    %v3621 = vunpack.c.l.b16 %v3582
    %v3622 = vunpack.c.l.b16 %v3583
    %v3623 = vunpack.c.l.b16 %v3584
    %v3624 = vunpack.c.l.b16 %v3585
    %v3625 = vunpack.c.l.b16 %v3586
    %v3626 = vunpack.c.l.b16 %v3587
    %v3627 = vunpack.c.l.b16 %v3588
    %v3628 = vunpack.c.l.b16 %v3589
    %v3629 = vunpack.c.l.b16 %v3590
    %v3630 = vunpack.c.l.b16 %v3591
    %v3631 = vunpack.c.l.b16 %v3592
    %v3632 = vunpack.c.l.b16 %v3593
    %v3633 = vpack.c.b16 %v3618, %v3617
    %v3634 = vpack.c.b16 %v3620, %v3619
    %v3635 = vpack.c.b16 %v3622, %v3621
    %v3636 = vpack.c.b16 %v3624, %v3623
    %v3637 = vpack.c.b16 %v3626, %v3625
    %v3638 = vpack.c.b16 %v3628, %v3627
    %v3639 = vpack.c.b16 %v3630, %v3629
    %v3640 = vpack.c.b16 %v3632, %v3631
    %3649 = vmatprep.subr.bf16.mxu0 0
    %3650 = vmatpush1.bf16.msra.mxu0 %v3640
    %3651 = vmatprep.subr.bf16.mxu0 0
    %3652 = vmatpush1.bf16.msra.mxu0 %v3639
    %3653 = vmatprep.subr.bf16.mxu0 0
    %3654 = vmatpush1.bf16.msra.mxu0 %v3638
    %3655 = vmatprep.subr.bf16.mxu0 0
    %3656 = vmatpush1.bf16.msra.mxu0 %v3637
    %3657 = vmatprep.subr.bf16.mxu0 0
    %3658 = vmatpush1.bf16.msra.mxu0 %v3636
    %3659 = vmatprep.subr.bf16.mxu0 0
    %3660 = vmatpush1.bf16.msra.mxu0 %v3635
    %3661 = vmatprep.subr.bf16.mxu0 0
    %3662 = vmatpush1.bf16.msra.mxu0 %v3634
    %3663 = vmatprep.subr.bf16.mxu0 0
    %3664 = vmatpush1.bf16.msra.mxu0 %v3633
    %3665 = vmatprep.subr.bf16.mxu0 0
    %3666 = vmatpush2.bf16.msra.mxu0 0
    %3667 = vmatprep.subr.bf16.mxu0 0
    %3668 = vmatpush2.bf16.msra.mxu0 0
    %3669 = vmatprep.subr.bf16.mxu0 0
    %3670 = vmatpush2.bf16.msra.mxu0 0
    %3671 = vmatprep.subr.bf16.mxu0 0
    %3672 = vmatpush2.bf16.msra.mxu0 0
    %3673 = vmatprep.subr.bf16.mxu0 0
    %3674 = vmatpush2.bf16.msra.mxu0 0
    %3675 = vmatprep.subr.bf16.mxu0 0
    %3676 = vmatpush2.bf16.msra.mxu0 0
    %3677 = vmatprep.subr.bf16.mxu0 0
    %3678 = vmatpush2.bf16.msra.mxu0 0
    %3679 = vmatprep.subr.bf16.mxu0 0
    %3680 = vmatpush2.bf16.msra.mxu0 0
    %3681 = vmatprep.mubr.bf16.mxu0 0
    %3682 = vmatmul.mubr.bf16.gmra.mxu0 %v2019
    %v3683 = vpop.f32.mrf.mxu0
    %v3684 = vadd.f32 %v3599, %v3683
    %v3685 = vpop.f32.mrf.mxu0
    %v3686 = vpop.f32.mrf.mxu0
    %v3687 = vadd.f32 %v3599, %v3686
    %v3688 = vpop.f32.mrf.mxu0
    %3689 = vmatprep.mubr.bf16.mxu0 0
    %3690 = vmatmul.mubr.bf16.gmra.mxu0 %v3576
    %v3691 = vpop.f32.mrf.mxu0
    %v3692 = vadd.f32 %v3599, %v3691
    %v3693 = vpop.f32.mrf.mxu0
    %v3694 = vpop.f32.mrf.mxu0
    %v3695 = vadd.f32 %v3599, %v3694
    %v3696 = vpop.f32.mrf.mxu0
    %3697 = vdwg.mxu0
    %v3698 = vadd.f32 %v183, %v3684
    %v3699 = vadd.f32 %v184, %v3687
    %v3700 = vadd.f32 %v185, %v3692
    %v3701 = vadd.f32 %v186, %v3695
    %v3702 = vld [vmem:[%s7] sm:$0x1]
    %v3703 = vld [vmem:[%s8] sm:$0x1]
    %3704 = vadd.xlane.f32.xlu0 %v3698
    %v3705 = vpop.xlane.xlu0 %3704
    %3706 = vadd.xlane.f32.xlu0 %v3699
    %v3707 = vpop.xlane.xlu0 %3706
    %3708 = vadd.xlane.f32.xlu0 %v3700
    %v3709 = vpop.xlane.xlu0 %3708
    %3710 = vadd.xlane.f32.xlu0 %v3701
    %v3711 = vpop.xlane.xlu0 %3710
    %v3712 = vmul.f32 %v3705, %v130
    %v3713 = vmul.f32 %v3707, %v130
    %v3714 = vmul.f32 %v3709, %v130
    %v3715 = vmul.f32 %v3711, %v130
    %v3716 = vsub.f32 %v3698, %v3712
    %v3717 = vsub.f32 %v3699, %v3713
    %v3718 = vsub.f32 %v3700, %v3714
    %v3719 = vsub.f32 %v3701, %v3715
    %v3720 = vmul.f32 %v3716, %v3716
    %v3721 = vmul.f32 %v3717, %v3717
    %v3722 = vmul.f32 %v3718, %v3718
    %v3723 = vmul.f32 %v3719, %v3719
    %3724 = vadd.xlane.f32.xlu0 %v3720
    %v3725 = vpop.xlane.xlu0 %3724
    %3726 = vadd.xlane.f32.xlu0 %v3721
    %v3727 = vpop.xlane.xlu0 %3726
    %3728 = vadd.xlane.f32.xlu0 %v3722
    %v3729 = vpop.xlane.xlu0 %3728
    %3730 = vadd.xlane.f32.xlu0 %v3723
    %v3731 = vpop.xlane.xlu0 %3730
    %v3732 = vmul.f32 %v3725, %v130
    %v3733 = vmul.f32 %v3727, %v130
    %v3734 = vmul.f32 %v3729, %v130
    %v3735 = vmul.f32 %v3731, %v130
    %v3736 = vadd.f32 %v3732, 1e-05
    %v3737 = vadd.f32 %v3733, 1e-05
    %v3738 = vadd.f32 %v3734, 1e-05
    %v3739 = vadd.f32 %v3735, 1e-05
    %v3740 = vrsqrt.pop %v3736
    %v3741 = vrsqrt.pop %v3737
    %v3742 = vrsqrt.pop %v3738
    %v3743 = vrsqrt.pop %v3739
    %v3744 = vmul.f32 %v3716, %v3740
    %v3745 = vmul.f32 %v3717, %v3741
    %v3746 = vmul.f32 %v3718, %v3742
    %v3747 = vmul.f32 %v3719, %v3743
    %v3749 = vlaneseq
    %v3750 = vshrl.u32 %v3749, 7
    %v3751 = vsub.s32 0, %v3750
    %v3752 = vrot.slane %v3702, %v3751
    %v3754 = vmul.f32 %v3744, %v3752
    %v3755 = vmul.f32 %v3745, %v3752
    %v3756 = vmul.f32 %v3746, %v3752
    %v3757 = vmul.f32 %v3747, %v3752
    %v3759 = vlaneseq
    %v3760 = vshrl.u32 %v3759, 7
    %v3761 = vsub.s32 0, %v3760
    %v3762 = vrot.slane %v3703, %v3761
    %v3764 = vadd.f32 %v3754, %v3762
    %v3765 = vadd.f32 %v3755, %v3762
    %v3766 = vadd.f32 %v3756, %v3762
    %v3767 = vadd.f32 %v3757, %v3762
    %v3768 = vpack.c.bf16 %v3765, %v3764
    %v3769 = vpack.c.bf16 %v3767, %v3766
    %v3770 = vld [vmem:[#allocation10] sm:$0xff]
    %v3771 = vld [vmem:[#allocation10 + $0x8] sm:$0xff]
    %v3772 = vld [vmem:[#allocation10 + $0x10] sm:$0xff]
    %v3773 = vld [vmem:[#allocation10 + $0x18] sm:$0xff]
    %v3774 = vld [vmem:[#allocation10 + $0x20] sm:$0xff]
    %v3775 = vld [vmem:[#allocation10 + $0x28] sm:$0xff]
    %v3776 = vld [vmem:[#allocation10 + $0x30] sm:$0xff]
    %v3777 = vld [vmem:[#allocation10 + $0x38] sm:$0xff]
    %v3778 = vld [vmem:[#allocation10 + $0x40] sm:$0xff]
    %v3779 = vld [vmem:[#allocation10 + $0x48] sm:$0xff]
    %v3780 = vld [vmem:[#allocation10 + $0x50] sm:$0xff]
    %v3781 = vld [vmem:[#allocation10 + $0x58] sm:$0xff]
    %v3782 = vld [vmem:[#allocation10 + $0x60] sm:$0xff]
    %v3783 = vld [vmem:[#allocation10 + $0x68] sm:$0xff]
    %v3784 = vld [vmem:[#allocation10 + $0x70] sm:$0xff]
    %v3785 = vld [vmem:[#allocation10 + $0x78] sm:$0xff]
    %v3786 = vld [vmem:[#allocation10 + $0x80] sm:$0xff]
    %v3787 = vld [vmem:[#allocation10 + $0x88] sm:$0xff]
    %v3788 = vld [vmem:[#allocation10 + $0x90] sm:$0xff]
    %v3789 = vld [vmem:[#allocation10 + $0x98] sm:$0xff]
    %v3790 = vld [vmem:[#allocation10 + $0xa0] sm:$0xff]
    %v3791 = vld [vmem:[#allocation10 + $0xa8] sm:$0xff]
    %v3792 = vld [vmem:[#allocation10 + $0xb0] sm:$0xff]
    %v3793 = vld [vmem:[#allocation10 + $0xb8] sm:$0xff]
    %v3794 = vld [vmem:[#allocation10 + $0xc0] sm:$0xff]
    %v3795 = vld [vmem:[#allocation10 + $0xc8] sm:$0xff]
    %v3796 = vld [vmem:[#allocation10 + $0xd0] sm:$0xff]
    %v3797 = vld [vmem:[#allocation10 + $0xd8] sm:$0xff]
    %v3798 = vld [vmem:[#allocation10 + $0xe0] sm:$0xff]
    %v3799 = vld [vmem:[#allocation10 + $0xe8] sm:$0xff]
    %v3800 = vld [vmem:[#allocation10 + $0xf0] sm:$0xff]
    %v3801 = vld [vmem:[#allocation10 + $0xf8] sm:$0xff]
    %v3802 = vld [vmem:[%s10] sm:$0xf]
    %v3804 = vlaneseq
    %v3805 = vshrl.u32 %v3804, 7
    %v3806 = vsub.s32 0, %v3805
    %v3807 = vrot.slane %v3802, %v3806
    %v3808 = vlaneseq
    %v3809 = vshrl.u32 %v3808, 7
    %v3810 = vsub.s32 1, %v3809
    %v3811 = vrot.slane %v3802, %v3810
    %v3812 = vlaneseq
    %v3813 = vshrl.u32 %v3812, 7
    %v3814 = vsub.s32 2, %v3813
    %v3815 = vrot.slane %v3802, %v3814
    %v3816 = vlaneseq
    %v3817 = vshrl.u32 %v3816, 7
    %v3818 = vsub.s32 3, %v3817
    %v3819 = vrot.slane %v3802, %v3818
    %v3856 = vunpack.c.l.b16 %v3770
    %v3857 = vunpack.c.h.b16 %v3770
    %v3858 = vunpack.c.l.b16 %v3771
    %v3859 = vunpack.c.h.b16 %v3771
    %v3860 = vunpack.c.l.b16 %v3772
    %v3861 = vunpack.c.h.b16 %v3772
    %v3862 = vunpack.c.l.b16 %v3773
    %v3863 = vunpack.c.h.b16 %v3773
    %v3864 = vunpack.c.l.b16 %v3774
    %v3865 = vunpack.c.h.b16 %v3774
    %v3866 = vunpack.c.l.b16 %v3775
    %v3867 = vunpack.c.h.b16 %v3775
    %v3868 = vunpack.c.l.b16 %v3776
    %v3869 = vunpack.c.h.b16 %v3776
    %v3870 = vunpack.c.l.b16 %v3777
    %v3871 = vunpack.c.h.b16 %v3777
    %v3872 = vunpack.c.l.b16 %v3778
    %v3873 = vunpack.c.h.b16 %v3778
    %v3874 = vunpack.c.l.b16 %v3779
    %v3875 = vunpack.c.h.b16 %v3779
    %v3876 = vunpack.c.l.b16 %v3780
    %v3877 = vunpack.c.h.b16 %v3780
    %v3878 = vunpack.c.l.b16 %v3781
    %v3879 = vunpack.c.h.b16 %v3781
    %v3880 = vunpack.c.l.b16 %v3782
    %v3881 = vunpack.c.h.b16 %v3782
    %v3882 = vunpack.c.l.b16 %v3783
    %v3883 = vunpack.c.h.b16 %v3783
    %v3884 = vunpack.c.l.b16 %v3784
    %v3885 = vunpack.c.h.b16 %v3784
    %v3886 = vunpack.c.l.b16 %v3785
    %v3887 = vunpack.c.h.b16 %v3785
    %v3888 = vunpack.c.l.b16 %v3786
    %v3889 = vunpack.c.h.b16 %v3786
    %v3890 = vunpack.c.l.b16 %v3787
    %v3891 = vunpack.c.h.b16 %v3787
    %v3892 = vunpack.c.l.b16 %v3788
    %v3893 = vunpack.c.h.b16 %v3788
    %v3894 = vunpack.c.l.b16 %v3789
    %v3895 = vunpack.c.h.b16 %v3789
    %v3896 = vunpack.c.l.b16 %v3790
    %v3897 = vunpack.c.h.b16 %v3790
    %v3898 = vunpack.c.l.b16 %v3791
    %v3899 = vunpack.c.h.b16 %v3791
    %v3900 = vunpack.c.l.b16 %v3792
    %v3901 = vunpack.c.h.b16 %v3792
    %v3902 = vunpack.c.l.b16 %v3793
    %v3903 = vunpack.c.h.b16 %v3793
    %v3904 = vunpack.c.l.b16 %v3794
    %v3905 = vunpack.c.h.b16 %v3794
    %v3906 = vunpack.c.l.b16 %v3795
    %v3907 = vunpack.c.h.b16 %v3795
    %v3908 = vunpack.c.l.b16 %v3796
    %v3909 = vunpack.c.h.b16 %v3796
    %v3910 = vunpack.c.l.b16 %v3797
    %v3911 = vunpack.c.h.b16 %v3797
    %v3912 = vunpack.c.l.b16 %v3798
    %v3913 = vunpack.c.h.b16 %v3798
    %v3914 = vunpack.c.l.b16 %v3799
    %v3915 = vunpack.c.h.b16 %v3799
    %v3916 = vunpack.c.l.b16 %v3800
    %v3917 = vunpack.c.h.b16 %v3800
    %v3918 = vunpack.c.l.b16 %v3801
    %v3919 = vunpack.c.h.b16 %v3801
    %v3920 = vpack.c.b16 %v3860, %v3856
    %v3921 = vpack.c.b16 %v3861, %v3857
    %v3922 = vpack.c.b16 %v3862, %v3858
    %v3923 = vpack.c.b16 %v3863, %v3859
    %v3924 = vpack.c.b16 %v3868, %v3864
    %v3925 = vpack.c.b16 %v3869, %v3865
    %v3926 = vpack.c.b16 %v3870, %v3866
    %v3927 = vpack.c.b16 %v3871, %v3867
    %v3928 = vpack.c.b16 %v3876, %v3872
    %v3929 = vpack.c.b16 %v3877, %v3873
    %v3930 = vpack.c.b16 %v3878, %v3874
    %v3931 = vpack.c.b16 %v3879, %v3875
    %v3932 = vpack.c.b16 %v3884, %v3880
    %v3933 = vpack.c.b16 %v3885, %v3881
    %v3934 = vpack.c.b16 %v3886, %v3882
    %v3935 = vpack.c.b16 %v3887, %v3883
    %v3936 = vpack.c.b16 %v3892, %v3888
    %v3937 = vpack.c.b16 %v3893, %v3889
    %v3938 = vpack.c.b16 %v3894, %v3890
    %v3939 = vpack.c.b16 %v3895, %v3891
    %v3940 = vpack.c.b16 %v3900, %v3896
    %v3941 = vpack.c.b16 %v3901, %v3897
    %v3942 = vpack.c.b16 %v3902, %v3898
    %v3943 = vpack.c.b16 %v3903, %v3899
    %v3944 = vpack.c.b16 %v3908, %v3904
    %v3945 = vpack.c.b16 %v3909, %v3905
    %v3946 = vpack.c.b16 %v3910, %v3906
    %v3947 = vpack.c.b16 %v3911, %v3907
    %v3948 = vpack.c.b16 %v3916, %v3912
    %v3949 = vpack.c.b16 %v3917, %v3913
    %v3950 = vpack.c.b16 %v3918, %v3914
    %v3951 = vpack.c.b16 %v3919, %v3915
    %3984 = vmatprep.subr.bf16.mxu0 %v3949
    %3985 = vmatpush1.bf16.msra.mxu0 %v3948
    %3986 = vmatprep.subr.bf16.mxu0 %v3945
    %3987 = vmatpush1.bf16.msra.mxu0 %v3944
    %3988 = vmatprep.subr.bf16.mxu0 %v3941
    %3989 = vmatpush1.bf16.msra.mxu0 %v3940
    %3990 = vmatprep.subr.bf16.mxu0 %v3937
    %3991 = vmatpush1.bf16.msra.mxu0 %v3936
    %3992 = vmatprep.subr.bf16.mxu0 %v3933
    %3993 = vmatpush1.bf16.msra.mxu0 %v3932
    %3994 = vmatprep.subr.bf16.mxu0 %v3929
    %3995 = vmatpush1.bf16.msra.mxu0 %v3928
    %3996 = vmatprep.subr.bf16.mxu0 %v3925
    %3997 = vmatpush1.bf16.msra.mxu0 %v3924
    %3998 = vmatprep.subr.bf16.mxu0 %v3921
    %3999 = vmatpush1.bf16.msra.mxu0 %v3920
    %4000 = vmatprep.subr.bf16.mxu0 0
    %4001 = vmatpush2.bf16.msra.mxu0 0
    %4002 = vmatprep.subr.bf16.mxu0 0
    %4003 = vmatpush2.bf16.msra.mxu0 0
    %4004 = vmatprep.subr.bf16.mxu0 0
    %4005 = vmatpush2.bf16.msra.mxu0 0
    %4006 = vmatprep.subr.bf16.mxu0 0
    %4007 = vmatpush2.bf16.msra.mxu0 0
    %4008 = vmatprep.subr.bf16.mxu0 0
    %4009 = vmatpush2.bf16.msra.mxu0 0
    %4010 = vmatprep.subr.bf16.mxu0 0
    %4011 = vmatpush2.bf16.msra.mxu0 0
    %4012 = vmatprep.subr.bf16.mxu0 0
    %4013 = vmatpush2.bf16.msra.mxu0 0
    %4014 = vmatprep.subr.bf16.mxu0 0
    %4015 = vmatpush2.bf16.msra.mxu0 0
    %4016 = vmatprep.mubr.bf16.mxu0 0
    %4017 = vmatmul.mubr.bf16.gmra.mxu0 %v3768
    %v4018 = vpop.f32.mrf.mxu0
    %v4019 = vadd.f32 %v3807, %v4018
    %v4020 = vpop.f32.mrf.mxu0
    %v4021 = vadd.f32 %v3811, %v4020
    %v4022 = vpop.f32.mrf.mxu0
    %v4023 = vadd.f32 %v3807, %v4022
    %v4024 = vpop.f32.mrf.mxu0
    %v4025 = vadd.f32 %v3811, %v4024
    %4026 = vmatprep.mubr.bf16.mxu0 0
    %4027 = vmatmul.mubr.bf16.gmra.mxu0 %v3769
    %v4028 = vpop.f32.mrf.mxu0
    %v4029 = vadd.f32 %v3807, %v4028
    %v4030 = vpop.f32.mrf.mxu0
    %v4031 = vadd.f32 %v3811, %v4030
    %v4032 = vpop.f32.mrf.mxu0
    %v4033 = vadd.f32 %v3807, %v4032
    %v4034 = vpop.f32.mrf.mxu0
    %v4035 = vadd.f32 %v3811, %v4034
    %4036 = vdwg.mxu0
    %4037 = vmatprep.subr.bf16.mxu0 %v3951
    %4038 = vmatpush1.bf16.msra.mxu0 %v3950
    %4039 = vmatprep.subr.bf16.mxu0 %v3947
    %4040 = vmatpush1.bf16.msra.mxu0 %v3946
    %4041 = vmatprep.subr.bf16.mxu0 %v3943
    %4042 = vmatpush1.bf16.msra.mxu0 %v3942
    %4043 = vmatprep.subr.bf16.mxu0 %v3939
    %4044 = vmatpush1.bf16.msra.mxu0 %v3938
    %4045 = vmatprep.subr.bf16.mxu0 %v3935
    %4046 = vmatpush1.bf16.msra.mxu0 %v3934
    %4047 = vmatprep.subr.bf16.mxu0 %v3931
    %4048 = vmatpush1.bf16.msra.mxu0 %v3930
    %4049 = vmatprep.subr.bf16.mxu0 %v3927
    %4050 = vmatpush1.bf16.msra.mxu0 %v3926
    %4051 = vmatprep.subr.bf16.mxu0 %v3923
    %4052 = vmatpush1.bf16.msra.mxu0 %v3922
    %4053 = vmatprep.subr.bf16.mxu0 0
    %4054 = vmatpush2.bf16.msra.mxu0 0
    %4055 = vmatprep.subr.bf16.mxu0 0
    %4056 = vmatpush2.bf16.msra.mxu0 0
    %4057 = vmatprep.subr.bf16.mxu0 0
    %4058 = vmatpush2.bf16.msra.mxu0 0
    %4059 = vmatprep.subr.bf16.mxu0 0
    %4060 = vmatpush2.bf16.msra.mxu0 0
    %4061 = vmatprep.subr.bf16.mxu0 0
    %4062 = vmatpush2.bf16.msra.mxu0 0
    %4063 = vmatprep.subr.bf16.mxu0 0
    %4064 = vmatpush2.bf16.msra.mxu0 0
    %4065 = vmatprep.subr.bf16.mxu0 0
    %4066 = vmatpush2.bf16.msra.mxu0 0
    %4067 = vmatprep.subr.bf16.mxu0 0
    %4068 = vmatpush2.bf16.msra.mxu0 0
    %4069 = vmatprep.mubr.bf16.mxu0 0
    %4070 = vmatmul.mubr.bf16.gmra.mxu0 %v3768
    %v4071 = vpop.f32.mrf.mxu0
    %v4072 = vadd.f32 %v3815, %v4071
    %v4073 = vpop.f32.mrf.mxu0
    %v4074 = vadd.f32 %v3819, %v4073
    %v4075 = vpop.f32.mrf.mxu0
    %v4076 = vadd.f32 %v3815, %v4075
    %v4077 = vpop.f32.mrf.mxu0
    %v4078 = vadd.f32 %v3819, %v4077
    %4079 = vmatprep.mubr.bf16.mxu0 0
    %4080 = vmatmul.mubr.bf16.gmra.mxu0 %v3769
    %v4081 = vpop.f32.mrf.mxu0
    %v4082 = vadd.f32 %v3815, %v4081
    %v4083 = vpop.f32.mrf.mxu0
    %v4084 = vadd.f32 %v3819, %v4083
    %v4085 = vpop.f32.mrf.mxu0
    %v4086 = vadd.f32 %v3815, %v4085
    %v4087 = vpop.f32.mrf.mxu0
    %v4088 = vadd.f32 %v3819, %v4087
    %4089 = vdwg.mxu0
    %v4090 = vmax.f32 %v4019, 0.0
    %v4091 = vmax.f32 %v4021, 0.0
    %v4092 = vmax.f32 %v4072, 0.0
    %v4093 = vmax.f32 %v4074, 0.0
    %v4094 = vmax.f32 %v4023, 0.0
    %v4095 = vmax.f32 %v4025, 0.0
    %v4096 = vmax.f32 %v4076, 0.0
    %v4097 = vmax.f32 %v4078, 0.0
    %v4098 = vmax.f32 %v4029, 0.0
    %v4099 = vmax.f32 %v4031, 0.0
    %v4100 = vmax.f32 %v4082, 0.0
    %v4101 = vmax.f32 %v4084, 0.0
    %v4102 = vmax.f32 %v4033, 0.0
    %v4103 = vmax.f32 %v4035, 0.0
    %v4104 = vmax.f32 %v4086, 0.0
    %v4105 = vmax.f32 %v4088, 0.0
    %v4106 = vpack.c.bf16 %v4094, %v4090
    %v4107 = vpack.c.bf16 %v4095, %v4091
    %v4108 = vpack.c.bf16 %v4096, %v4092
    %v4109 = vpack.c.bf16 %v4097, %v4093
    %v4110 = vpack.c.bf16 %v4102, %v4098
    %v4111 = vpack.c.bf16 %v4103, %v4099
    %v4112 = vpack.c.bf16 %v4104, %v4100
    %v4113 = vpack.c.bf16 %v4105, %v4101
    %v4114 = vld [vmem:[#allocation12] sm:$0xf]
    %v4115 = vld [vmem:[#allocation12 + $0x4] sm:$0xf]
    %v4116 = vld [vmem:[#allocation12 + $0x8] sm:$0xf]
    %v4117 = vld [vmem:[#allocation12 + $0xc] sm:$0xf]
    %v4118 = vld [vmem:[#allocation12 + $0x10] sm:$0xf]
    %v4119 = vld [vmem:[#allocation12 + $0x14] sm:$0xf]
    %v4120 = vld [vmem:[#allocation12 + $0x18] sm:$0xf]
    %v4121 = vld [vmem:[#allocation12 + $0x1c] sm:$0xf]
    %v4122 = vld [vmem:[#allocation12 + $0x20] sm:$0xf]
    %v4123 = vld [vmem:[#allocation12 + $0x24] sm:$0xf]
    %v4124 = vld [vmem:[#allocation12 + $0x28] sm:$0xf]
    %v4125 = vld [vmem:[#allocation12 + $0x2c] sm:$0xf]
    %v4126 = vld [vmem:[#allocation12 + $0x30] sm:$0xf]
    %v4127 = vld [vmem:[#allocation12 + $0x34] sm:$0xf]
    %v4128 = vld [vmem:[#allocation12 + $0x38] sm:$0xf]
    %v4129 = vld [vmem:[#allocation12 + $0x3c] sm:$0xf]
    %v4130 = vld [vmem:[#allocation12 + $0x40] sm:$0xf]
    %v4131 = vld [vmem:[#allocation12 + $0x44] sm:$0xf]
    %v4132 = vld [vmem:[#allocation12 + $0x48] sm:$0xf]
    %v4133 = vld [vmem:[#allocation12 + $0x4c] sm:$0xf]
    %v4134 = vld [vmem:[#allocation12 + $0x50] sm:$0xf]
    %v4135 = vld [vmem:[#allocation12 + $0x54] sm:$0xf]
    %v4136 = vld [vmem:[#allocation12 + $0x58] sm:$0xf]
    %v4137 = vld [vmem:[#allocation12 + $0x5c] sm:$0xf]
    %v4138 = vld [vmem:[#allocation12 + $0x60] sm:$0xf]
    %v4139 = vld [vmem:[#allocation12 + $0x64] sm:$0xf]
    %v4140 = vld [vmem:[#allocation12 + $0x68] sm:$0xf]
    %v4141 = vld [vmem:[#allocation12 + $0x6c] sm:$0xf]
    %v4142 = vld [vmem:[#allocation12 + $0x70] sm:$0xf]
    %v4143 = vld [vmem:[#allocation12 + $0x74] sm:$0xf]
    %v4144 = vld [vmem:[#allocation12 + $0x78] sm:$0xf]
    %v4145 = vld [vmem:[#allocation12 + $0x7c] sm:$0xf]
    %v4146 = vld [vmem:[#allocation12 + $0x80] sm:$0xf]
    %v4147 = vld [vmem:[#allocation12 + $0x84] sm:$0xf]
    %v4148 = vld [vmem:[#allocation12 + $0x88] sm:$0xf]
    %v4149 = vld [vmem:[#allocation12 + $0x8c] sm:$0xf]
    %v4150 = vld [vmem:[#allocation12 + $0x90] sm:$0xf]
    %v4151 = vld [vmem:[#allocation12 + $0x94] sm:$0xf]
    %v4152 = vld [vmem:[#allocation12 + $0x98] sm:$0xf]
    %v4153 = vld [vmem:[#allocation12 + $0x9c] sm:$0xf]
    %v4154 = vld [vmem:[#allocation12 + $0xa0] sm:$0xf]
    %v4155 = vld [vmem:[#allocation12 + $0xa4] sm:$0xf]
    %v4156 = vld [vmem:[#allocation12 + $0xa8] sm:$0xf]
    %v4157 = vld [vmem:[#allocation12 + $0xac] sm:$0xf]
    %v4158 = vld [vmem:[#allocation12 + $0xb0] sm:$0xf]
    %v4159 = vld [vmem:[#allocation12 + $0xb4] sm:$0xf]
    %v4160 = vld [vmem:[#allocation12 + $0xb8] sm:$0xf]
    %v4161 = vld [vmem:[#allocation12 + $0xbc] sm:$0xf]
    %v4162 = vld [vmem:[#allocation12 + $0xc0] sm:$0xf]
    %v4163 = vld [vmem:[#allocation12 + $0xc4] sm:$0xf]
    %v4164 = vld [vmem:[#allocation12 + $0xc8] sm:$0xf]
    %v4165 = vld [vmem:[#allocation12 + $0xcc] sm:$0xf]
    %v4166 = vld [vmem:[#allocation12 + $0xd0] sm:$0xf]
    %v4167 = vld [vmem:[#allocation12 + $0xd4] sm:$0xf]
    %v4168 = vld [vmem:[#allocation12 + $0xd8] sm:$0xf]
    %v4169 = vld [vmem:[#allocation12 + $0xdc] sm:$0xf]
    %v4170 = vld [vmem:[#allocation12 + $0xe0] sm:$0xf]
    %v4171 = vld [vmem:[#allocation12 + $0xe4] sm:$0xf]
    %v4172 = vld [vmem:[#allocation12 + $0xe8] sm:$0xf]
    %v4173 = vld [vmem:[#allocation12 + $0xec] sm:$0xf]
    %v4174 = vld [vmem:[#allocation12 + $0xf0] sm:$0xf]
    %v4175 = vld [vmem:[#allocation12 + $0xf4] sm:$0xf]
    %v4176 = vld [vmem:[#allocation12 + $0xf8] sm:$0xf]
    %v4177 = vld [vmem:[#allocation12 + $0xfc] sm:$0xf]
    %v4178 = vld [vmem:[%s12] sm:$0x1]
    %v4180 = vlaneseq
    %v4181 = vshrl.u32 %v4180, 7
    %v4182 = vsub.s32 0, %v4181
    %v4183 = vrot.slane %v4178, %v4182
    %v4249 = vunpack.c.l.b16 %v4114
    %v4250 = vunpack.c.l.b16 %v4115
    %v4251 = vunpack.c.l.b16 %v4116
    %v4252 = vunpack.c.l.b16 %v4117
    %v4253 = vunpack.c.l.b16 %v4118
    %v4254 = vunpack.c.l.b16 %v4119
    %v4255 = vunpack.c.l.b16 %v4120
    %v4256 = vunpack.c.l.b16 %v4121
    %v4257 = vunpack.c.l.b16 %v4122
    %v4258 = vunpack.c.l.b16 %v4123
    %v4259 = vunpack.c.l.b16 %v4124
    %v4260 = vunpack.c.l.b16 %v4125
    %v4261 = vunpack.c.l.b16 %v4126
    %v4262 = vunpack.c.l.b16 %v4127
    %v4263 = vunpack.c.l.b16 %v4128
    %v4264 = vunpack.c.l.b16 %v4129
    %v4265 = vunpack.c.l.b16 %v4130
    %v4266 = vunpack.c.l.b16 %v4131
    %v4267 = vunpack.c.l.b16 %v4132
    %v4268 = vunpack.c.l.b16 %v4133
    %v4269 = vunpack.c.l.b16 %v4134
    %v4270 = vunpack.c.l.b16 %v4135
    %v4271 = vunpack.c.l.b16 %v4136
    %v4272 = vunpack.c.l.b16 %v4137
    %v4273 = vunpack.c.l.b16 %v4138
    %v4274 = vunpack.c.l.b16 %v4139
    %v4275 = vunpack.c.l.b16 %v4140
    %v4276 = vunpack.c.l.b16 %v4141
    %v4277 = vunpack.c.l.b16 %v4142
    %v4278 = vunpack.c.l.b16 %v4143
    %v4279 = vunpack.c.l.b16 %v4144
    %v4280 = vunpack.c.l.b16 %v4145
    %v4281 = vunpack.c.l.b16 %v4146
    %v4282 = vunpack.c.l.b16 %v4147
    %v4283 = vunpack.c.l.b16 %v4148
    %v4284 = vunpack.c.l.b16 %v4149
    %v4285 = vunpack.c.l.b16 %v4150
    %v4286 = vunpack.c.l.b16 %v4151
    %v4287 = vunpack.c.l.b16 %v4152
    %v4288 = vunpack.c.l.b16 %v4153
    %v4289 = vunpack.c.l.b16 %v4154
    %v4290 = vunpack.c.l.b16 %v4155
    %v4291 = vunpack.c.l.b16 %v4156
    %v4292 = vunpack.c.l.b16 %v4157
    %v4293 = vunpack.c.l.b16 %v4158
    %v4294 = vunpack.c.l.b16 %v4159
    %v4295 = vunpack.c.l.b16 %v4160
    %v4296 = vunpack.c.l.b16 %v4161
    %v4297 = vunpack.c.l.b16 %v4162
    %v4298 = vunpack.c.l.b16 %v4163
    %v4299 = vunpack.c.l.b16 %v4164
    %v4300 = vunpack.c.l.b16 %v4165
    %v4301 = vunpack.c.l.b16 %v4166
    %v4302 = vunpack.c.l.b16 %v4167
    %v4303 = vunpack.c.l.b16 %v4168
    %v4304 = vunpack.c.l.b16 %v4169
    %v4305 = vunpack.c.l.b16 %v4170
    %v4306 = vunpack.c.l.b16 %v4171
    %v4307 = vunpack.c.l.b16 %v4172
    %v4308 = vunpack.c.l.b16 %v4173
    %v4309 = vunpack.c.l.b16 %v4174
    %v4310 = vunpack.c.l.b16 %v4175
    %v4311 = vunpack.c.l.b16 %v4176
    %v4312 = vunpack.c.l.b16 %v4177
    %v4313 = vpack.c.b16 %v4250, %v4249
    %v4314 = vpack.c.b16 %v4252, %v4251
    %v4315 = vpack.c.b16 %v4254, %v4253
    %v4316 = vpack.c.b16 %v4256, %v4255
    %v4317 = vpack.c.b16 %v4258, %v4257
    %v4318 = vpack.c.b16 %v4260, %v4259
    %v4319 = vpack.c.b16 %v4262, %v4261
    %v4320 = vpack.c.b16 %v4264, %v4263
    %v4321 = vpack.c.b16 %v4266, %v4265
    %v4322 = vpack.c.b16 %v4268, %v4267
    %v4323 = vpack.c.b16 %v4270, %v4269
    %v4324 = vpack.c.b16 %v4272, %v4271
    %v4325 = vpack.c.b16 %v4274, %v4273
    %v4326 = vpack.c.b16 %v4276, %v4275
    %v4327 = vpack.c.b16 %v4278, %v4277
    %v4328 = vpack.c.b16 %v4280, %v4279
    %v4329 = vpack.c.b16 %v4282, %v4281
    %v4330 = vpack.c.b16 %v4284, %v4283
    %v4331 = vpack.c.b16 %v4286, %v4285
    %v4332 = vpack.c.b16 %v4288, %v4287
    %v4333 = vpack.c.b16 %v4290, %v4289
    %v4334 = vpack.c.b16 %v4292, %v4291
    %v4335 = vpack.c.b16 %v4294, %v4293
    %v4336 = vpack.c.b16 %v4296, %v4295
    %v4337 = vpack.c.b16 %v4298, %v4297
    %v4338 = vpack.c.b16 %v4300, %v4299
    %v4339 = vpack.c.b16 %v4302, %v4301
    %v4340 = vpack.c.b16 %v4304, %v4303
    %v4341 = vpack.c.b16 %v4306, %v4305
    %v4342 = vpack.c.b16 %v4308, %v4307
    %v4343 = vpack.c.b16 %v4310, %v4309
    %v4344 = vpack.c.b16 %v4312, %v4311
    %4377 = vmatprep.subr.bf16.mxu0 0
    %4378 = vmatpush1.bf16.msra.mxu0 %v4320
    %4379 = vmatprep.subr.bf16.mxu0 0
    %4380 = vmatpush1.bf16.msra.mxu0 %v4319
    %4381 = vmatprep.subr.bf16.mxu0 0
    %4382 = vmatpush1.bf16.msra.mxu0 %v4318
    %4383 = vmatprep.subr.bf16.mxu0 0
    %4384 = vmatpush1.bf16.msra.mxu0 %v4317
    %4385 = vmatprep.subr.bf16.mxu0 0
    %4386 = vmatpush1.bf16.msra.mxu0 %v4316
    %4387 = vmatprep.subr.bf16.mxu0 0
    %4388 = vmatpush1.bf16.msra.mxu0 %v4315
    %4389 = vmatprep.subr.bf16.mxu0 0
    %4390 = vmatpush1.bf16.msra.mxu0 %v4314
    %4391 = vmatprep.subr.bf16.mxu0 0
    %4392 = vmatpush1.bf16.msra.mxu0 %v4313
    %4393 = vmatprep.subr.bf16.mxu0 0
    %4394 = vmatpush2.bf16.msra.mxu0 %v4328
    %4395 = vmatprep.subr.bf16.mxu0 0
    %4396 = vmatpush2.bf16.msra.mxu0 %v4327
    %4397 = vmatprep.subr.bf16.mxu0 0
    %4398 = vmatpush2.bf16.msra.mxu0 %v4326
    %4399 = vmatprep.subr.bf16.mxu0 0
    %4400 = vmatpush2.bf16.msra.mxu0 %v4325
    %4401 = vmatprep.subr.bf16.mxu0 0
    %4402 = vmatpush2.bf16.msra.mxu0 %v4324
    %4403 = vmatprep.subr.bf16.mxu0 0
    %4404 = vmatpush2.bf16.msra.mxu0 %v4323
    %4405 = vmatprep.subr.bf16.mxu0 0
    %4406 = vmatpush2.bf16.msra.mxu0 %v4322
    %4407 = vmatprep.subr.bf16.mxu0 0
    %4408 = vmatpush2.bf16.msra.mxu0 %v4321
    %4409 = vmatprep.mubr.bf16.mxu0 %v4107
    %4410 = vmatmul.mubr.bf16.gmra.mxu0 %v4106
    %v4411 = vpop.f32.mrf.mxu0
    %v4412 = vadd.f32 %v4183, %v4411
    %v4413 = vpop.f32.mrf.mxu0
    %v4414 = vpop.f32.mrf.mxu0
    %v4415 = vadd.f32 %v4183, %v4414
    %v4416 = vpop.f32.mrf.mxu0
    %4417 = vmatprep.mubr.bf16.mxu0 %v4111
    %4418 = vmatmul.mubr.bf16.gmra.mxu0 %v4110
    %v4419 = vpop.f32.mrf.mxu0
    %v4420 = vadd.f32 %v4183, %v4419
    %v4421 = vpop.f32.mrf.mxu0
    %v4422 = vpop.f32.mrf.mxu0
    %v4423 = vadd.f32 %v4183, %v4422
    %v4424 = vpop.f32.mrf.mxu0
    %4425 = vdwg.mxu0
    %4426 = vmatprep.subr.bf16.mxu0 0
    %4427 = vmatpush1.bf16.msra.mxu0 %v4336
    %4428 = vmatprep.subr.bf16.mxu0 0
    %4429 = vmatpush1.bf16.msra.mxu0 %v4335
    %4430 = vmatprep.subr.bf16.mxu0 0
    %4431 = vmatpush1.bf16.msra.mxu0 %v4334
    %4432 = vmatprep.subr.bf16.mxu0 0
    %4433 = vmatpush1.bf16.msra.mxu0 %v4333
    %4434 = vmatprep.subr.bf16.mxu0 0
    %4435 = vmatpush1.bf16.msra.mxu0 %v4332
    %4436 = vmatprep.subr.bf16.mxu0 0
    %4437 = vmatpush1.bf16.msra.mxu0 %v4331
    %4438 = vmatprep.subr.bf16.mxu0 0
    %4439 = vmatpush1.bf16.msra.mxu0 %v4330
    %4440 = vmatprep.subr.bf16.mxu0 0
    %4441 = vmatpush1.bf16.msra.mxu0 %v4329
    %4442 = vmatprep.subr.bf16.mxu0 0
    %4443 = vmatpush2.bf16.msra.mxu0 %v4344
    %4444 = vmatprep.subr.bf16.mxu0 0
    %4445 = vmatpush2.bf16.msra.mxu0 %v4343
    %4446 = vmatprep.subr.bf16.mxu0 0
    %4447 = vmatpush2.bf16.msra.mxu0 %v4342
    %4448 = vmatprep.subr.bf16.mxu0 0
    %4449 = vmatpush2.bf16.msra.mxu0 %v4341
    %4450 = vmatprep.subr.bf16.mxu0 0
    %4451 = vmatpush2.bf16.msra.mxu0 %v4340
    %4452 = vmatprep.subr.bf16.mxu0 0
    %4453 = vmatpush2.bf16.msra.mxu0 %v4339
    %4454 = vmatprep.subr.bf16.mxu0 0
    %4455 = vmatpush2.bf16.msra.mxu0 %v4338
    %4456 = vmatprep.subr.bf16.mxu0 0
    %4457 = vmatpush2.bf16.msra.mxu0 %v4337
    %4458 = vmatprep.mubr.bf16.mxu0 %v4109
    %4459 = vmatmul.mubr.bf16.gmra.mxu0 %v4108
    %v4460 = vpop.f32.mrf.mxu0
    %v4461 = vadd.f32 %v4412, %v4460
    %v4462 = vpop.f32.mrf.mxu0
    %v4463 = vpop.f32.mrf.mxu0
    %v4464 = vadd.f32 %v4415, %v4463
    %v4465 = vpop.f32.mrf.mxu0
    %4466 = vmatprep.mubr.bf16.mxu0 %v4113
    %4467 = vmatmul.mubr.bf16.gmra.mxu0 %v4112
    %v4468 = vpop.f32.mrf.mxu0
    %v4469 = vadd.f32 %v4420, %v4468
    %v4470 = vpop.f32.mrf.mxu0
    %v4471 = vpop.f32.mrf.mxu0
    %v4472 = vadd.f32 %v4423, %v4471
    %v4473 = vpop.f32.mrf.mxu0
    %4474 = vdwg.mxu0
    %v4475 = vadd.f32 %v3764, %v4461
    %v4476 = vadd.f32 %v3765, %v4464
    %v4477 = vadd.f32 %v3766, %v4469
    %v4478 = vadd.f32 %v3767, %v4472
    %4479 = vst [vmem:[#allocation13] sm:$0xff] %v4475
    %4480 = vst [vmem:[#allocation13 + $0x8] sm:$0xff] %v4476
    %4481 = vst [vmem:[#allocation13 + $0x10] sm:$0xff] %v4477
    %4482 = vst [vmem:[#allocation13 + $0x18] sm:$0xff] %v4478
    // Predicated region
    $region70: #{tpu_custom_call.1} parent=1 // pred_check
      _
    $region71: #{tpu_custom_call.1} parent=1 // pred_check_branch
      %4484 = sbr.rel (0) target = $region73
    $region72: #{tpu_custom_call.1} parent=1 // pred_region
      %s4486 = ssub.s32 512, 512
      %4487 = vsyncadd [#allocation6], %s4486
      %s4488 = sshll.u32 [#allocation13], 4
      %s4489 = int_to_ptr.vmem [resolvable:$true] %s4488
      %4494 = dma.vmem_to_hbm [thread:$0]  %s4489, 512, %s13, [#allocation6], 128, 128, 8
    $region73: #{tpu_custom_call.1} parent=1 // pred_fallthru
      _
    // Predicated region
    $region74: #{tpu_custom_call.1} parent=1 // pred_check
      _
    $region75: #{tpu_custom_call.1} parent=1 // pred_check_branch
      %4496 = sbr.rel (0) target = $region77
    $region76: #{tpu_custom_call.1} parent=1 // pred_region
      %4497 = dma.done [#allocation6], 512
    $region77: #{tpu_custom_call.1} parent=1 // pred_fallthru
      _
    %4498 = vsyncpa [#allocation5], 1
    %4499 = vsyncpa [#allocation8], 1
    %4500 = vsyncpa [#allocation11], 1
    %4501 = vsyncpa [#allocation6], 1

</llo_original>
